<compile_context>
chip_gen: v6e
topology: v6e:2x2x1
jax: 0.10.0
libtpu: 0.0.40
codegen_flags: <defaults>
</compile_context>

<pallas_src>
import jax
import jax.numpy as jnp
from jax import lax
from jax.experimental import pallas as pl
from jax.experimental.pallas import tpu as pltpu

BN_EPS = 1e-5


def _round_up(n, m):
    return ((n + m - 1) // m) * m


def _make_kernel(T, Tb, F, H, E, offs):
    """Build the kernel closure for static shapes / packed-weight row offsets."""

    def kernel(x_ref, w_ref, b_ref, out_ref):
        # x_ref : (T, Tb, F) bf16   time-major batch tile
        # w_ref : (Rw, E)    bf16   packed weights (row offsets in `offs`)
        # b_ref : (8, E)     f32    packed biases
        # out_ref: (Tb, E)   f32
        f32 = jnp.float32

        def mm(a, b):
            # bf16 MXU operands, f32 accumulation.
            return jnp.dot(a.astype(jnp.bfloat16), b, preferred_element_type=f32)

        relu = lambda v: jnp.maximum(v, 0.0)

        # ---- resident parameter views (static slices, loaded once) ----
        w0      = w_ref[offs["w0"]:offs["w0"] + F, :]                    # (F, 2H)  [fwd|rev]
        whh0f   = w_ref[offs["hh0f"]:offs["hh0f"] + H, :H]               # (H, H)
        whh0r   = w_ref[offs["hh0r"]:offs["hh0r"] + H, :H]
        wih1f_f = w_ref[offs["ih1f"]:offs["ih1f"] + H, :H]               # multiplies h_f(t)
        wih1f_r = w_ref[offs["ih1f"] + H:offs["ih1f"] + 2 * H, :H]       # multiplies h_r(t)
        wih1r_f = w_ref[offs["ih1r"]:offs["ih1r"] + H, :H]
        wih1r_r = w_ref[offs["ih1r"] + H:offs["ih1r"] + 2 * H, :H]
        whh1f   = w_ref[offs["hh1f"]:offs["hh1f"] + H, :H]
        wfc_f   = w_ref[offs["fc"]:offs["fc"] + H, :]                    # (H, E) multiplies h1
        wfc_r   = w_ref[offs["fc"] + H:offs["fc"] + 2 * H, :]            # (H, E) multiplies h1r
        wpred   = w_ref[offs["pred"]:offs["pred"] + E, :]                # (E, E)

        b0    = b_ref[0:1, :]        # (1, 2H) ih+hh biases, layer 0, [fwd|rev]
        b1f   = b_ref[1:2, :H]       # (1, H)
        b1r   = b_ref[1:2, H:]       # (1, H)
        bfc   = b_ref[2:3, :]        # (1, E) BatchNorm-folded fc bias
        bpred = b_ref[3:4, :]        # (1, E)

        # ---- layer-0 input projections (independent of the recurrences; the scheduler
        #      hoists these MXU ops freely into the serial chains' idle gaps) ----
        pre0  = [mm(x_ref[t], w0) + b0 for t in range(T)]                # T x (Tb, 2H) f32
        pre0f = [p[:, :H] for p in pre0]
        pre0r = [p[:, H:] for p in pre0]

        # ---- fused fwd/rev layer-0 recurrence, fully unrolled; layer-1 input projections
        #      accumulated on the fly (no y0 VMEM scratch round-trip) ----
        # TODO(synk): if T grows past ~16, switch to lax.fori_loop(unroll=k) with
        # lax.dynamic_slice to bound live ranges and avoid vreg spills.
        p1f = [None] * T
        p1r = [None] * T

        h_f = relu(pre0f[0])                 # t = 0,   h_prev = 0
        h_r = relu(pre0r[T - 1])             # t = T-1, h_prev = 0
        h_r_tlast = h_r                      # layer-0 reverse output at t = T-1 (kept live)
        p1f[0] = mm(h_f, wih1f_f)
        p1r[T - 1] = mm(h_r, wih1f_r)
        for i in range(1, T):
            tr = T - 1 - i
            h_f = relu(pre0f[i] + mm(h_f, whh0f))
            h_r = relu(pre0r[tr] + mm(h_r, whh0r))
            p1f[i] = mm(h_f, wih1f_f)
            p1r[tr] = mm(h_r, wih1f_r)

        # ---- layer-1 reverse @ t = T-1 (h_prev = 0) from live registers, and its half of
        #      the fc matmul — hoisted ahead of the serial layer-1 forward chain ----
        h1r = relu(mm(h_f, wih1r_f) + mm(h_r_tlast, wih1r_r) + b1r)      # (Tb, H)
        z_r = mm(h1r, wfc_r)                                             # (Tb, E)

        # ---- layer-1 forward recurrence ----
        h1 = relu(p1f[0] + p1r[0] + b1f)
        for t in range(1, T):
            h1 = relu(p1f[t] + p1r[t] + b1f + mm(h1, whh1f))

        # ---- fc (eval-mode BatchNorm folded) -> predictor ----
        z = mm(h1, wfc_f) + z_r + bfc                                    # (Tb, E)
        out_ref[...] = mm(z, wpred) + bpred

    return kernel


def vanilla_rnn_forward(params, x):
    """x: (B, T, in_feat) float32, returns (B, emb_size) float32."""
    B, T, F = x.shape
    H = params["w_hh0f"].shape[0]
    E = 2 * H

    # Batch padded to a multiple of 16 (bf16 sublane packing); batch tile for the grid.
    # TODO(synk): for production, also pad H/E to multiples of 128 for MXU/lane density.
    Bp = max(_round_up(B, 16), 16)
    TB_B = Bp if Bp <= 128 else 128
    Bp = _round_up(Bp, TB_B)
    nb = Bp // TB_B

    # Time-major x, bf16 (halves input HBM bytes).
    # TODO(synk): accept x already time-major from upstream to avoid this transpose copy
    # for large inputs (the kernel itself reads x from HBM exactly once via the BlockSpec).
    x_p = jnp.pad(x.astype(jnp.float32), ((0, Bp - B), (0, 0), (0, 0)))
    x_tm = jnp.transpose(x_p, (1, 0, 2)).astype(jnp.bfloat16)            # (T, Bp, F)

    tr = jnp.transpose                                                    # torch (out,in)->(in,out)

    # layer-0 input projection weight: both directions concatenated along lanes
    w0_cat = jnp.concatenate([tr(params["w_ih0f"]), tr(params["w_ih0r"])], axis=1)   # (F, 2H)

    # fold eval-mode BatchNorm1d into fc (exact)
    scale = params["bn_gamma"] * lax.rsqrt(params["bn_var"] + BN_EPS)                # (E,)
    w_fc_fold = tr(params["w_fc"]) * scale[None, :]                                  # (E, E)
    b_fc_fold = (params["b_fc"] - params["bn_mean"]) * scale + params["bn_beta"]     # (E,)

    # ---- pack all weights into one bf16 slab (rows padded to multiples of 16) ----
    wblocks = [
        ("w0",   w0_cat),
        ("hh0f", tr(params["w_hh0f"])),
        ("hh0r", tr(params["w_hh0r"])),
        ("ih1f", tr(params["w_ih1f"])),
        ("ih1r", tr(params["w_ih1r"])),
        ("hh1f", tr(params["w_hh1f"])),
        ("fc",   w_fc_fold),
        ("pred", tr(params["w_pred"])),
    ]
    offs, rows, r = {}, [], 0
    for name, w in wblocks:
        hgt, wid = w.shape
        hp = _round_up(hgt, 16)
        rows.append(jnp.pad(w, ((0, hp - hgt), (0, E - wid))))
        offs[name] = r
        r += hp
    wpack = jnp.concatenate(rows, axis=0).astype(jnp.bfloat16)                       # (r, E)

    # ---- pack all biases into one small f32 slab ----
    bpack = jnp.zeros((8, E), jnp.float32)
    bpack = bpack.at[0, :].set(jnp.concatenate([params["b_ih0f"] + params["b_hh0f"],
                                                params["b_ih0r"] + params["b_hh0r"]]))
    bpack = bpack.at[1, :H].set(params["b_ih1f"] + params["b_hh1f"])
    bpack = bpack.at[1, H:].set(params["b_ih1r"] + params["b_hh1r"])
    bpack = bpack.at[2, :].set(b_fc_fold)
    bpack = bpack.at[3, :].set(params["b_pred"])

    kernel = _make_kernel(T, TB_B, F, H, E, offs)

    # Rough per-tile VMEM need; raise the scoped limit only when big batch tiles require it
    # (v5e scoped default is 16 MiB, v6e/v7x 32 MiB).
    vmem_est = (2 * T * TB_B * F * 2                # double-buffered bf16 x tile
                + 2 * wpack.size * 2 + 2 * bpack.size * 4
                + 6 * T * TB_B * H * 4              # pre0 / pre1 working set (f32)
                + 4 * TB_B * E * 4)
    cparams = {"dimension_semantics": ("parallel",)}
    if vmem_est > 12 * 1024 * 1024:
        cparams["vmem_limit_bytes"] = min(2 * vmem_est, 100 * 1024 * 1024)

    out_p = pl.pallas_call(
        kernel,
        out_shape=jax.ShapeDtypeStruct((Bp, E), jnp.float32),
        grid=(nb,),
        in_specs=[
            pl.BlockSpec((T, TB_B, F), lambda i: (0, i, 0)),     # batch-blocked x tile
            pl.BlockSpec(wpack.shape, lambda i: (0, 0)),         # weights: VMEM-resident
            pl.BlockSpec(bpack.shape, lambda i: (0, 0)),         # biases:  VMEM-resident
        ],
        out_specs=pl.BlockSpec((TB_B, E), lambda i: (i, 0)),
        compiler_params=pltpu.CompilerParams(**cparams),
    )(x_tm, wpack, bpack)
    return out_p[:B]


# ---------------- deterministic parameter init (matches PyTorch shapes) ----------------
def init_params(key, in_feat, emb_size):
    H = emb_size // 2
    E = emb_size
    keys = iter(jax.random.split(key, 24))

    def u(shape, scale):
        return jax.random.uniform(next(keys), shape, jnp.float32, -scale, scale)

    k_rnn = 1.0 / (H ** 0.5)
    params = {}
    for name, in_dim in (("0f", in_feat), ("0r", in_feat), ("1f", 2 * H), ("1r", 2 * H)):
        params[f"w_ih{name}"] = u((H, in_dim), k_rnn)
        params[f"w_hh{name}"] = u((H, H), k_rnn)
        params[f"b_ih{name}"] = u((H,), k_rnn)
        params[f"b_hh{name}"] = u((H,), k_rnn)

    k_lin = 1.0 / (E ** 0.5)
    params["w_fc"] = u((E, E), k_lin)
    params["b_fc"] = u((E,), k_lin)
    params["w_pred"] = u((E, E), k_lin)
    params["b_pred"] = u((E,), k_lin)

    params["bn_gamma"] = jnp.ones((E,), jnp.float32)
    params["bn_beta"] = jnp.zeros((E,), jnp.float32)
    params["bn_mean"] = jnp.zeros((E,), jnp.float32)
    params["bn_var"] = jnp.ones((E,), jnp.float32)
    return params


# ---------------- pure-JAX reference (mirrors PyTorch eval-mode forward) ----------------
def reference_forward(params, x):
    B, T, _ = x.shape
    H = params["w_hh0f"].shape[0]
    P = jax.lax.Precision.HIGHEST

    def run_layer(inp, wif, whf, bif, bhf, wir, whr, bir, bhr):
        xs = jnp.swapaxes(inp, 0, 1)  # (T, B, D)

        def step(w_ih, w_hh, b_ih, b_hh):
            def f(h, x_t):
                h = jax.nn.relu(
                    jnp.matmul(x_t, w_ih.T, precision=P) + b_ih
                    + jnp.matmul(h, w_hh.T, precision=P) + b_hh
                )
                return h, h
            return f

        _, yf = lax.scan(step(wif, whf, bif, bhf), jnp.zeros((B, H), jnp.float32), xs)
        _, yb = lax.scan(step(wir, whr, bir, bhr), jnp.zeros((B, H), jnp.float32), xs[::-1])
        yb = yb[::-1]
        return jnp.swapaxes(jnp.concatenate([yf, yb], axis=-1), 0, 1)  # (B, T, 2H)

    y0 = run_layer(x, params["w_ih0f"], params["w_hh0f"], params["b_ih0f"], params["b_hh0f"],
                   params["w_ih0r"], params["w_hh0r"], params["b_ih0r"], params["b_hh0r"])
    y1 = run_layer(y0, params["w_ih1f"], params["w_hh1f"], params["b_ih1f"], params["b_hh1f"],
                   params["w_ih1r"], params["w_hh1r"], params["b_ih1r"], params["b_hh1r"])
    last = y1[:, -1, :]
    z = jnp.matmul(last, params["w_fc"].T, precision=P) + params["b_fc"]
    z = (z - params["bn_mean"]) / jnp.sqrt(params["bn_var"] + BN_EPS) * params["bn_gamma"] + params["bn_beta"]
    return jnp.matmul(z, params["w_pred"].T, precision=P) + params["b_pred"]


if __name__ == "__main__":
    B, T, in_feat, emb_size = 4, 8, 16, 32   # hidden_size = emb_size // 2 = 16, bi-dir -> 32

    key = jax.random.PRNGKey(0)
    k_param, k_x = jax.random.split(key)
    params = init_params(k_param, in_feat, emb_size)
    x = jax.random.normal(k_x, (B, T, in_feat), jnp.float32)

    out = vanilla_rnn_forward(params, x)
    out = jax.block_until_ready(out)

    ref = jax.block_until_ready(reference_forward(params, x))
    assert out.shape == (B, emb_size)
    # bf16 MXU operands (f32 accumulation) vs a HIGHEST-precision f32 reference -> slightly
    # looser tolerance than the pure-f32 variant; still far below any semantic-bug error.
    assert jnp.allclose(out, ref, atol=3e-2, rtol=3e-2), float(jnp.max(jnp.abs(out - ref)))

    print("KERNEL_OK")
</pallas_src>

<mosaic_0001>
module attributes {stable_mosaic.version = 11 : i64} {
  func.func @kernel(%arg0: i32, %arg1: memref<8x16x16xbf16, #tpu.memory_space<vmem>>, %arg2: memref<192x32xbf16, #tpu.memory_space<vmem>>, %arg3: memref<8x32xf32, #tpu.memory_space<vmem>>, %arg4: memref<16x32xf32, #tpu.memory_space<vmem>>) attributes {dimension_semantics = [#tpu.dimension_semantics<parallel>], iteration_bounds = array<i64: 1>, scalar_prefetch = 0 : i64, scratch_operands = 0 : i64, tpu.core_type = #tpu.core_type<tc>, window_params = [{transform_indices = @transform_0, window_bounds = array<i64: 8, 16, 16>}, {pipeline_mode = #tpu.pipeline_mode<synchronous>, transform_indices = @transform_1, window_bounds = array<i64: 192, 32>}, {pipeline_mode = #tpu.pipeline_mode<synchronous>, transform_indices = @transform_2, window_bounds = array<i64: 8, 32>}, {transform_indices = @transform_3, window_bounds = array<i64: 16, 32>}]} {
    %c0 = arith.constant 0 : index
    %c0_0 = arith.constant 0 : index
    %0 = vector.load %arg2[%c0, %c0_0] : memref<192x32xbf16, #tpu.memory_space<vmem>>, vector<16x32xbf16>
    %c16 = arith.constant 16 : index
    %c0_1 = arith.constant 0 : index
    %1 = vector.load %arg2[%c16, %c0_1] : memref<192x32xbf16, #tpu.memory_space<vmem>>, vector<16x16xbf16>
    %c32 = arith.constant 32 : index
    %c0_2 = arith.constant 0 : index
    %2 = vector.load %arg2[%c32, %c0_2] : memref<192x32xbf16, #tpu.memory_space<vmem>>, vector<16x16xbf16>
    %c48 = arith.constant 48 : index
    %c0_3 = arith.constant 0 : index
    %3 = vector.load %arg2[%c48, %c0_3] : memref<192x32xbf16, #tpu.memory_space<vmem>>, vector<16x16xbf16>
    %c64 = arith.constant 64 : index
    %c0_4 = arith.constant 0 : index
    %4 = vector.load %arg2[%c64, %c0_4] : memref<192x32xbf16, #tpu.memory_space<vmem>>, vector<16x16xbf16>
    %c80 = arith.constant 80 : index
    %c0_5 = arith.constant 0 : index
    %5 = vector.load %arg2[%c80, %c0_5] : memref<192x32xbf16, #tpu.memory_space<vmem>>, vector<16x16xbf16>
    %c96 = arith.constant 96 : index
    %c0_6 = arith.constant 0 : index
    %6 = vector.load %arg2[%c96, %c0_6] : memref<192x32xbf16, #tpu.memory_space<vmem>>, vector<16x16xbf16>
    %c112 = arith.constant 112 : index
    %c0_7 = arith.constant 0 : index
    %7 = vector.load %arg2[%c112, %c0_7] : memref<192x32xbf16, #tpu.memory_space<vmem>>, vector<16x16xbf16>
    %c128 = arith.constant 128 : index
    %c0_8 = arith.constant 0 : index
    %8 = vector.load %arg2[%c128, %c0_8] : memref<192x32xbf16, #tpu.memory_space<vmem>>, vector<16x32xbf16>
    %c144 = arith.constant 144 : index
    %c0_9 = arith.constant 0 : index
    %9 = vector.load %arg2[%c144, %c0_9] : memref<192x32xbf16, #tpu.memory_space<vmem>>, vector<16x32xbf16>
    %c160 = arith.constant 160 : index
    %c0_10 = arith.constant 0 : index
    %10 = vector.load %arg2[%c160, %c0_10] : memref<192x32xbf16, #tpu.memory_space<vmem>>, vector<32x32xbf16>
    %c0_11 = arith.constant 0 : index
    %c0_12 = arith.constant 0 : index
    %11 = vector.load %arg3[%c0_11, %c0_12] : memref<8x32xf32, #tpu.memory_space<vmem>>, vector<1x32xf32>
    %c1 = arith.constant 1 : index
    %c0_13 = arith.constant 0 : index
    %12 = vector.load %arg3[%c1, %c0_13] : memref<8x32xf32, #tpu.memory_space<vmem>>, vector<1x16xf32>
    %c1_14 = arith.constant 1 : index
    %c16_15 = arith.constant 16 : index
    %13 = vector.load %arg3[%c1_14, %c16_15] : memref<8x32xf32, #tpu.memory_space<vmem>>, vector<1x16xf32>
    %c2 = arith.constant 2 : index
    %c0_16 = arith.constant 0 : index
    %14 = vector.load %arg3[%c2, %c0_16] : memref<8x32xf32, #tpu.memory_space<vmem>>, vector<1x32xf32>
    %c3 = arith.constant 3 : index
    %c0_17 = arith.constant 0 : index
    %15 = vector.load %arg3[%c3, %c0_17] : memref<8x32xf32, #tpu.memory_space<vmem>>, vector<1x32xf32>
    %c0_18 = arith.constant 0 : index
    %c0_19 = arith.constant 0 : index
    %c0_20 = arith.constant 0 : index
    %16 = vector.load %arg1[%c0_18, %c0_19, %c0_20] : memref<8x16x16xbf16, #tpu.memory_space<vmem>>, vector<1x16x16xbf16>
    %17 = vector.shape_cast %16 : vector<1x16x16xbf16> to vector<16x16xbf16>
    %cst = arith.constant dense<0.000000e+00> : vector<16x32xf32>
    %18 = tpu.matmul %17, %0, %cst {dimension_numbers = #tpu.dot_dimension_numbers<[1], [0], [0], [1], [0, 0, 1, 1], [], []>} : vector<16x16xbf16>, vector<16x32xbf16>, vector<16x32xf32> -> vector<16x32xf32>
    %19 = vector.broadcast %11 : vector<1x32xf32> to vector<16x32xf32>
    %20 = arith.addf %18, %19 : vector<16x32xf32>
    %c1_21 = arith.constant 1 : index
    %c0_22 = arith.constant 0 : index
    %c0_23 = arith.constant 0 : index
    %21 = vector.load %arg1[%c1_21, %c0_22, %c0_23] : memref<8x16x16xbf16, #tpu.memory_space<vmem>>, vector<1x16x16xbf16>
    %22 = vector.shape_cast %21 : vector<1x16x16xbf16> to vector<16x16xbf16>
    %cst_24 = arith.constant dense<0.000000e+00> : vector<16x32xf32>
    %23 = tpu.matmul %22, %0, %cst_24 {dimension_numbers = #tpu.dot_dimension_numbers<[1], [0], [0], [1], [0, 0, 1, 1], [], []>} : vector<16x16xbf16>, vector<16x32xbf16>, vector<16x32xf32> -> vector<16x32xf32>
    %24 = vector.broadcast %11 : vector<1x32xf32> to vector<16x32xf32>
    %25 = arith.addf %23, %24 : vector<16x32xf32>
    %c2_25 = arith.constant 2 : index
    %c0_26 = arith.constant 0 : index
    %c0_27 = arith.constant 0 : index
    %26 = vector.load %arg1[%c2_25, %c0_26, %c0_27] : memref<8x16x16xbf16, #tpu.memory_space<vmem>>, vector<1x16x16xbf16>
    %27 = vector.shape_cast %26 : vector<1x16x16xbf16> to vector<16x16xbf16>
    %cst_28 = arith.constant dense<0.000000e+00> : vector<16x32xf32>
    %28 = tpu.matmul %27, %0, %cst_28 {dimension_numbers = #tpu.dot_dimension_numbers<[1], [0], [0], [1], [0, 0, 1, 1], [], []>} : vector<16x16xbf16>, vector<16x32xbf16>, vector<16x32xf32> -> vector<16x32xf32>
    %29 = vector.broadcast %11 : vector<1x32xf32> to vector<16x32xf32>
    %30 = arith.addf %28, %29 : vector<16x32xf32>
    %c3_29 = arith.constant 3 : index
    %c0_30 = arith.constant 0 : index
    %c0_31 = arith.constant 0 : index
    %31 = vector.load %arg1[%c3_29, %c0_30, %c0_31] : memref<8x16x16xbf16, #tpu.memory_space<vmem>>, vector<1x16x16xbf16>
    %32 = vector.shape_cast %31 : vector<1x16x16xbf16> to vector<16x16xbf16>
    %cst_32 = arith.constant dense<0.000000e+00> : vector<16x32xf32>
    %33 = tpu.matmul %32, %0, %cst_32 {dimension_numbers = #tpu.dot_dimension_numbers<[1], [0], [0], [1], [0, 0, 1, 1], [], []>} : vector<16x16xbf16>, vector<16x32xbf16>, vector<16x32xf32> -> vector<16x32xf32>
    %34 = vector.broadcast %11 : vector<1x32xf32> to vector<16x32xf32>
    %35 = arith.addf %33, %34 : vector<16x32xf32>
    %c4 = arith.constant 4 : index
    %c0_33 = arith.constant 0 : index
    %c0_34 = arith.constant 0 : index
    %36 = vector.load %arg1[%c4, %c0_33, %c0_34] : memref<8x16x16xbf16, #tpu.memory_space<vmem>>, vector<1x16x16xbf16>
    %37 = vector.shape_cast %36 : vector<1x16x16xbf16> to vector<16x16xbf16>
    %cst_35 = arith.constant dense<0.000000e+00> : vector<16x32xf32>
    %38 = tpu.matmul %37, %0, %cst_35 {dimension_numbers = #tpu.dot_dimension_numbers<[1], [0], [0], [1], [0, 0, 1, 1], [], []>} : vector<16x16xbf16>, vector<16x32xbf16>, vector<16x32xf32> -> vector<16x32xf32>
    %39 = vector.broadcast %11 : vector<1x32xf32> to vector<16x32xf32>
    %40 = arith.addf %38, %39 : vector<16x32xf32>
    %c5 = arith.constant 5 : index
    %c0_36 = arith.constant 0 : index
    %c0_37 = arith.constant 0 : index
    %41 = vector.load %arg1[%c5, %c0_36, %c0_37] : memref<8x16x16xbf16, #tpu.memory_space<vmem>>, vector<1x16x16xbf16>
    %42 = vector.shape_cast %41 : vector<1x16x16xbf16> to vector<16x16xbf16>
    %cst_38 = arith.constant dense<0.000000e+00> : vector<16x32xf32>
    %43 = tpu.matmul %42, %0, %cst_38 {dimension_numbers = #tpu.dot_dimension_numbers<[1], [0], [0], [1], [0, 0, 1, 1], [], []>} : vector<16x16xbf16>, vector<16x32xbf16>, vector<16x32xf32> -> vector<16x32xf32>
    %44 = vector.broadcast %11 : vector<1x32xf32> to vector<16x32xf32>
    %45 = arith.addf %43, %44 : vector<16x32xf32>
    %c6 = arith.constant 6 : index
    %c0_39 = arith.constant 0 : index
    %c0_40 = arith.constant 0 : index
    %46 = vector.load %arg1[%c6, %c0_39, %c0_40] : memref<8x16x16xbf16, #tpu.memory_space<vmem>>, vector<1x16x16xbf16>
    %47 = vector.shape_cast %46 : vector<1x16x16xbf16> to vector<16x16xbf16>
    %cst_41 = arith.constant dense<0.000000e+00> : vector<16x32xf32>
    %48 = tpu.matmul %47, %0, %cst_41 {dimension_numbers = #tpu.dot_dimension_numbers<[1], [0], [0], [1], [0, 0, 1, 1], [], []>} : vector<16x16xbf16>, vector<16x32xbf16>, vector<16x32xf32> -> vector<16x32xf32>
    %49 = vector.broadcast %11 : vector<1x32xf32> to vector<16x32xf32>
    %50 = arith.addf %48, %49 : vector<16x32xf32>
    %c7 = arith.constant 7 : index
    %c0_42 = arith.constant 0 : index
    %c0_43 = arith.constant 0 : index
    %51 = vector.load %arg1[%c7, %c0_42, %c0_43] : memref<8x16x16xbf16, #tpu.memory_space<vmem>>, vector<1x16x16xbf16>
    %52 = vector.shape_cast %51 : vector<1x16x16xbf16> to vector<16x16xbf16>
    %cst_44 = arith.constant dense<0.000000e+00> : vector<16x32xf32>
    %53 = tpu.matmul %52, %0, %cst_44 {dimension_numbers = #tpu.dot_dimension_numbers<[1], [0], [0], [1], [0, 0, 1, 1], [], []>} : vector<16x16xbf16>, vector<16x32xbf16>, vector<16x32xf32> -> vector<16x32xf32>
    %54 = vector.broadcast %11 : vector<1x32xf32> to vector<16x32xf32>
    %55 = arith.addf %53, %54 : vector<16x32xf32>
    %56 = vector.extract_strided_slice %20 {offsets = [0, 0], sizes = [16, 16], strides = [1, 1]} : vector<16x32xf32> to vector<16x16xf32>
    %57 = vector.extract_strided_slice %25 {offsets = [0, 0], sizes = [16, 16], strides = [1, 1]} : vector<16x32xf32> to vector<16x16xf32>
    %58 = vector.extract_strided_slice %30 {offsets = [0, 0], sizes = [16, 16], strides = [1, 1]} : vector<16x32xf32> to vector<16x16xf32>
    %59 = vector.extract_strided_slice %35 {offsets = [0, 0], sizes = [16, 16], strides = [1, 1]} : vector<16x32xf32> to vector<16x16xf32>
    %60 = vector.extract_strided_slice %40 {offsets = [0, 0], sizes = [16, 16], strides = [1, 1]} : vector<16x32xf32> to vector<16x16xf32>
    %61 = vector.extract_strided_slice %45 {offsets = [0, 0], sizes = [16, 16], strides = [1, 1]} : vector<16x32xf32> to vector<16x16xf32>
    %62 = vector.extract_strided_slice %50 {offsets = [0, 0], sizes = [16, 16], strides = [1, 1]} : vector<16x32xf32> to vector<16x16xf32>
    %63 = vector.extract_strided_slice %55 {offsets = [0, 0], sizes = [16, 16], strides = [1, 1]} : vector<16x32xf32> to vector<16x16xf32>
    %64 = vector.extract_strided_slice %20 {offsets = [0, 16], sizes = [16, 16], strides = [1, 1]} : vector<16x32xf32> to vector<16x16xf32>
    %65 = vector.extract_strided_slice %25 {offsets = [0, 16], sizes = [16, 16], strides = [1, 1]} : vector<16x32xf32> to vector<16x16xf32>
    %66 = vector.extract_strided_slice %30 {offsets = [0, 16], sizes = [16, 16], strides = [1, 1]} : vector<16x32xf32> to vector<16x16xf32>
    %67 = vector.extract_strided_slice %35 {offsets = [0, 16], sizes = [16, 16], strides = [1, 1]} : vector<16x32xf32> to vector<16x16xf32>
    %68 = vector.extract_strided_slice %40 {offsets = [0, 16], sizes = [16, 16], strides = [1, 1]} : vector<16x32xf32> to vector<16x16xf32>
    %69 = vector.extract_strided_slice %45 {offsets = [0, 16], sizes = [16, 16], strides = [1, 1]} : vector<16x32xf32> to vector<16x16xf32>
    %70 = vector.extract_strided_slice %50 {offsets = [0, 16], sizes = [16, 16], strides = [1, 1]} : vector<16x32xf32> to vector<16x16xf32>
    %71 = vector.extract_strided_slice %55 {offsets = [0, 16], sizes = [16, 16], strides = [1, 1]} : vector<16x32xf32> to vector<16x16xf32>
    %cst_45 = arith.constant 0.000000e+00 : f32
    %72 = vector.broadcast %cst_45 : f32 to vector<16x16xf32>
    %73 = arith.maximumf %56, %72 : vector<16x16xf32>
    %cst_46 = arith.constant 0.000000e+00 : f32
    %74 = vector.broadcast %cst_46 : f32 to vector<16x16xf32>
    %75 = arith.maximumf %71, %74 : vector<16x16xf32>
    %76 = arith.truncf %73 : vector<16x16xf32> to vector<16x16xbf16>
    %cst_47 = arith.constant dense<0.000000e+00> : vector<16x16xf32>
    %77 = tpu.matmul %76, %3, %cst_47 {dimension_numbers = #tpu.dot_dimension_numbers<[1], [0], [0], [1], [0, 0, 1, 1], [], []>} : vector<16x16xbf16>, vector<16x16xbf16>, vector<16x16xf32> -> vector<16x16xf32>
    %78 = arith.truncf %75 : vector<16x16xf32> to vector<16x16xbf16>
    %cst_48 = arith.constant dense<0.000000e+00> : vector<16x16xf32>
    %79 = tpu.matmul %78, %4, %cst_48 {dimension_numbers = #tpu.dot_dimension_numbers<[1], [0], [0], [1], [0, 0, 1, 1], [], []>} : vector<16x16xbf16>, vector<16x16xbf16>, vector<16x16xf32> -> vector<16x16xf32>
    %80 = arith.truncf %73 : vector<16x16xf32> to vector<16x16xbf16>
    %cst_49 = arith.constant dense<0.000000e+00> : vector<16x16xf32>
    %81 = tpu.matmul %80, %1, %cst_49 {dimension_numbers = #tpu.dot_dimension_numbers<[1], [0], [0], [1], [0, 0, 1, 1], [], []>} : vector<16x16xbf16>, vector<16x16xbf16>, vector<16x16xf32> -> vector<16x16xf32>
    %82 = arith.addf %57, %81 : vector<16x16xf32>
    %cst_50 = arith.constant 0.000000e+00 : f32
    %83 = vector.broadcast %cst_50 : f32 to vector<16x16xf32>
    %84 = arith.maximumf %82, %83 : vector<16x16xf32>
    %85 = arith.truncf %75 : vector<16x16xf32> to vector<16x16xbf16>
    %cst_51 = arith.constant dense<0.000000e+00> : vector<16x16xf32>
    %86 = tpu.matmul %85, %2, %cst_51 {dimension_numbers = #tpu.dot_dimension_numbers<[1], [0], [0], [1], [0, 0, 1, 1], [], []>} : vector<16x16xbf16>, vector<16x16xbf16>, vector<16x16xf32> -> vector<16x16xf32>
    %87 = arith.addf %70, %86 : vector<16x16xf32>
    %cst_52 = arith.constant 0.000000e+00 : f32
    %88 = vector.broadcast %cst_52 : f32 to vector<16x16xf32>
    %89 = arith.maximumf %87, %88 : vector<16x16xf32>
    %90 = arith.truncf %84 : vector<16x16xf32> to vector<16x16xbf16>
    %cst_53 = arith.constant dense<0.000000e+00> : vector<16x16xf32>
    %91 = tpu.matmul %90, %3, %cst_53 {dimension_numbers = #tpu.dot_dimension_numbers<[1], [0], [0], [1], [0, 0, 1, 1], [], []>} : vector<16x16xbf16>, vector<16x16xbf16>, vector<16x16xf32> -> vector<16x16xf32>
    %92 = arith.truncf %89 : vector<16x16xf32> to vector<16x16xbf16>
    %cst_54 = arith.constant dense<0.000000e+00> : vector<16x16xf32>
    %93 = tpu.matmul %92, %4, %cst_54 {dimension_numbers = #tpu.dot_dimension_numbers<[1], [0], [0], [1], [0, 0, 1, 1], [], []>} : vector<16x16xbf16>, vector<16x16xbf16>, vector<16x16xf32> -> vector<16x16xf32>
    %94 = arith.truncf %84 : vector<16x16xf32> to vector<16x16xbf16>
    %cst_55 = arith.constant dense<0.000000e+00> : vector<16x16xf32>
    %95 = tpu.matmul %94, %1, %cst_55 {dimension_numbers = #tpu.dot_dimension_numbers<[1], [0], [0], [1], [0, 0, 1, 1], [], []>} : vector<16x16xbf16>, vector<16x16xbf16>, vector<16x16xf32> -> vector<16x16xf32>
    %96 = arith.addf %58, %95 : vector<16x16xf32>
    %cst_56 = arith.constant 0.000000e+00 : f32
    %97 = vector.broadcast %cst_56 : f32 to vector<16x16xf32>
    %98 = arith.maximumf %96, %97 : vector<16x16xf32>
    %99 = arith.truncf %89 : vector<16x16xf32> to vector<16x16xbf16>
    %cst_57 = arith.constant dense<0.000000e+00> : vector<16x16xf32>
    %100 = tpu.matmul %99, %2, %cst_57 {dimension_numbers = #tpu.dot_dimension_numbers<[1], [0], [0], [1], [0, 0, 1, 1], [], []>} : vector<16x16xbf16>, vector<16x16xbf16>, vector<16x16xf32> -> vector<16x16xf32>
    %101 = arith.addf %69, %100 : vector<16x16xf32>
    %cst_58 = arith.constant 0.000000e+00 : f32
    %102 = vector.broadcast %cst_58 : f32 to vector<16x16xf32>
    %103 = arith.maximumf %101, %102 : vector<16x16xf32>
    %104 = arith.truncf %98 : vector<16x16xf32> to vector<16x16xbf16>
    %cst_59 = arith.constant dense<0.000000e+00> : vector<16x16xf32>
    %105 = tpu.matmul %104, %3, %cst_59 {dimension_numbers = #tpu.dot_dimension_numbers<[1], [0], [0], [1], [0, 0, 1, 1], [], []>} : vector<16x16xbf16>, vector<16x16xbf16>, vector<16x16xf32> -> vector<16x16xf32>
    %106 = arith.truncf %103 : vector<16x16xf32> to vector<16x16xbf16>
    %cst_60 = arith.constant dense<0.000000e+00> : vector<16x16xf32>
    %107 = tpu.matmul %106, %4, %cst_60 {dimension_numbers = #tpu.dot_dimension_numbers<[1], [0], [0], [1], [0, 0, 1, 1], [], []>} : vector<16x16xbf16>, vector<16x16xbf16>, vector<16x16xf32> -> vector<16x16xf32>
    %108 = arith.truncf %98 : vector<16x16xf32> to vector<16x16xbf16>
    %cst_61 = arith.constant dense<0.000000e+00> : vector<16x16xf32>
    %109 = tpu.matmul %108, %1, %cst_61 {dimension_numbers = #tpu.dot_dimension_numbers<[1], [0], [0], [1], [0, 0, 1, 1], [], []>} : vector<16x16xbf16>, vector<16x16xbf16>, vector<16x16xf32> -> vector<16x16xf32>
    %110 = arith.addf %59, %109 : vector<16x16xf32>
    %cst_62 = arith.constant 0.000000e+00 : f32
    %111 = vector.broadcast %cst_62 : f32 to vector<16x16xf32>
    %112 = arith.maximumf %110, %111 : vector<16x16xf32>
    %113 = arith.truncf %103 : vector<16x16xf32> to vector<16x16xbf16>
    %cst_63 = arith.constant dense<0.000000e+00> : vector<16x16xf32>
    %114 = tpu.matmul %113, %2, %cst_63 {dimension_numbers = #tpu.dot_dimension_numbers<[1], [0], [0], [1], [0, 0, 1, 1], [], []>} : vector<16x16xbf16>, vector<16x16xbf16>, vector<16x16xf32> -> vector<16x16xf32>
    %115 = arith.addf %68, %114 : vector<16x16xf32>
    %cst_64 = arith.constant 0.000000e+00 : f32
    %116 = vector.broadcast %cst_64 : f32 to vector<16x16xf32>
    %117 = arith.maximumf %115, %116 : vector<16x16xf32>
    %118 = arith.truncf %112 : vector<16x16xf32> to vector<16x16xbf16>
    %cst_65 = arith.constant dense<0.000000e+00> : vector<16x16xf32>
    %119 = tpu.matmul %118, %3, %cst_65 {dimension_numbers = #tpu.dot_dimension_numbers<[1], [0], [0], [1], [0, 0, 1, 1], [], []>} : vector<16x16xbf16>, vector<16x16xbf16>, vector<16x16xf32> -> vector<16x16xf32>
    %120 = arith.truncf %117 : vector<16x16xf32> to vector<16x16xbf16>
    %cst_66 = arith.constant dense<0.000000e+00> : vector<16x16xf32>
    %121 = tpu.matmul %120, %4, %cst_66 {dimension_numbers = #tpu.dot_dimension_numbers<[1], [0], [0], [1], [0, 0, 1, 1], [], []>} : vector<16x16xbf16>, vector<16x16xbf16>, vector<16x16xf32> -> vector<16x16xf32>
    %122 = arith.truncf %112 : vector<16x16xf32> to vector<16x16xbf16>
    %cst_67 = arith.constant dense<0.000000e+00> : vector<16x16xf32>
    %123 = tpu.matmul %122, %1, %cst_67 {dimension_numbers = #tpu.dot_dimension_numbers<[1], [0], [0], [1], [0, 0, 1, 1], [], []>} : vector<16x16xbf16>, vector<16x16xbf16>, vector<16x16xf32> -> vector<16x16xf32>
    %124 = arith.addf %60, %123 : vector<16x16xf32>
    %cst_68 = arith.constant 0.000000e+00 : f32
    %125 = vector.broadcast %cst_68 : f32 to vector<16x16xf32>
    %126 = arith.maximumf %124, %125 : vector<16x16xf32>
    %127 = arith.truncf %117 : vector<16x16xf32> to vector<16x16xbf16>
    %cst_69 = arith.constant dense<0.000000e+00> : vector<16x16xf32>
    %128 = tpu.matmul %127, %2, %cst_69 {dimension_numbers = #tpu.dot_dimension_numbers<[1], [0], [0], [1], [0, 0, 1, 1], [], []>} : vector<16x16xbf16>, vector<16x16xbf16>, vector<16x16xf32> -> vector<16x16xf32>
    %129 = arith.addf %67, %128 : vector<16x16xf32>
    %cst_70 = arith.constant 0.000000e+00 : f32
    %130 = vector.broadcast %cst_70 : f32 to vector<16x16xf32>
    %131 = arith.maximumf %129, %130 : vector<16x16xf32>
    %132 = arith.truncf %126 : vector<16x16xf32> to vector<16x16xbf16>
    %cst_71 = arith.constant dense<0.000000e+00> : vector<16x16xf32>
    %133 = tpu.matmul %132, %3, %cst_71 {dimension_numbers = #tpu.dot_dimension_numbers<[1], [0], [0], [1], [0, 0, 1, 1], [], []>} : vector<16x16xbf16>, vector<16x16xbf16>, vector<16x16xf32> -> vector<16x16xf32>
    %134 = arith.truncf %131 : vector<16x16xf32> to vector<16x16xbf16>
    %cst_72 = arith.constant dense<0.000000e+00> : vector<16x16xf32>
    %135 = tpu.matmul %134, %4, %cst_72 {dimension_numbers = #tpu.dot_dimension_numbers<[1], [0], [0], [1], [0, 0, 1, 1], [], []>} : vector<16x16xbf16>, vector<16x16xbf16>, vector<16x16xf32> -> vector<16x16xf32>
    %136 = arith.truncf %126 : vector<16x16xf32> to vector<16x16xbf16>
    %cst_73 = arith.constant dense<0.000000e+00> : vector<16x16xf32>
    %137 = tpu.matmul %136, %1, %cst_73 {dimension_numbers = #tpu.dot_dimension_numbers<[1], [0], [0], [1], [0, 0, 1, 1], [], []>} : vector<16x16xbf16>, vector<16x16xbf16>, vector<16x16xf32> -> vector<16x16xf32>
    %138 = arith.addf %61, %137 : vector<16x16xf32>
    %cst_74 = arith.constant 0.000000e+00 : f32
    %139 = vector.broadcast %cst_74 : f32 to vector<16x16xf32>
    %140 = arith.maximumf %138, %139 : vector<16x16xf32>
    %141 = arith.truncf %131 : vector<16x16xf32> to vector<16x16xbf16>
    %cst_75 = arith.constant dense<0.000000e+00> : vector<16x16xf32>
    %142 = tpu.matmul %141, %2, %cst_75 {dimension_numbers = #tpu.dot_dimension_numbers<[1], [0], [0], [1], [0, 0, 1, 1], [], []>} : vector<16x16xbf16>, vector<16x16xbf16>, vector<16x16xf32> -> vector<16x16xf32>
    %143 = arith.addf %66, %142 : vector<16x16xf32>
    %cst_76 = arith.constant 0.000000e+00 : f32
    %144 = vector.broadcast %cst_76 : f32 to vector<16x16xf32>
    %145 = arith.maximumf %143, %144 : vector<16x16xf32>
    %146 = arith.truncf %140 : vector<16x16xf32> to vector<16x16xbf16>
    %cst_77 = arith.constant dense<0.000000e+00> : vector<16x16xf32>
    %147 = tpu.matmul %146, %3, %cst_77 {dimension_numbers = #tpu.dot_dimension_numbers<[1], [0], [0], [1], [0, 0, 1, 1], [], []>} : vector<16x16xbf16>, vector<16x16xbf16>, vector<16x16xf32> -> vector<16x16xf32>
    %148 = arith.truncf %145 : vector<16x16xf32> to vector<16x16xbf16>
    %cst_78 = arith.constant dense<0.000000e+00> : vector<16x16xf32>
    %149 = tpu.matmul %148, %4, %cst_78 {dimension_numbers = #tpu.dot_dimension_numbers<[1], [0], [0], [1], [0, 0, 1, 1], [], []>} : vector<16x16xbf16>, vector<16x16xbf16>, vector<16x16xf32> -> vector<16x16xf32>
    %150 = arith.truncf %140 : vector<16x16xf32> to vector<16x16xbf16>
    %cst_79 = arith.constant dense<0.000000e+00> : vector<16x16xf32>
    %151 = tpu.matmul %150, %1, %cst_79 {dimension_numbers = #tpu.dot_dimension_numbers<[1], [0], [0], [1], [0, 0, 1, 1], [], []>} : vector<16x16xbf16>, vector<16x16xbf16>, vector<16x16xf32> -> vector<16x16xf32>
    %152 = arith.addf %62, %151 : vector<16x16xf32>
    %cst_80 = arith.constant 0.000000e+00 : f32
    %153 = vector.broadcast %cst_80 : f32 to vector<16x16xf32>
    %154 = arith.maximumf %152, %153 : vector<16x16xf32>
    %155 = arith.truncf %145 : vector<16x16xf32> to vector<16x16xbf16>
    %cst_81 = arith.constant dense<0.000000e+00> : vector<16x16xf32>
    %156 = tpu.matmul %155, %2, %cst_81 {dimension_numbers = #tpu.dot_dimension_numbers<[1], [0], [0], [1], [0, 0, 1, 1], [], []>} : vector<16x16xbf16>, vector<16x16xbf16>, vector<16x16xf32> -> vector<16x16xf32>
    %157 = arith.addf %65, %156 : vector<16x16xf32>
    %cst_82 = arith.constant 0.000000e+00 : f32
    %158 = vector.broadcast %cst_82 : f32 to vector<16x16xf32>
    %159 = arith.maximumf %157, %158 : vector<16x16xf32>
    %160 = arith.truncf %154 : vector<16x16xf32> to vector<16x16xbf16>
    %cst_83 = arith.constant dense<0.000000e+00> : vector<16x16xf32>
    %161 = tpu.matmul %160, %3, %cst_83 {dimension_numbers = #tpu.dot_dimension_numbers<[1], [0], [0], [1], [0, 0, 1, 1], [], []>} : vector<16x16xbf16>, vector<16x16xbf16>, vector<16x16xf32> -> vector<16x16xf32>
    %162 = arith.truncf %159 : vector<16x16xf32> to vector<16x16xbf16>
    %cst_84 = arith.constant dense<0.000000e+00> : vector<16x16xf32>
    %163 = tpu.matmul %162, %4, %cst_84 {dimension_numbers = #tpu.dot_dimension_numbers<[1], [0], [0], [1], [0, 0, 1, 1], [], []>} : vector<16x16xbf16>, vector<16x16xbf16>, vector<16x16xf32> -> vector<16x16xf32>
    %164 = arith.truncf %154 : vector<16x16xf32> to vector<16x16xbf16>
    %cst_85 = arith.constant dense<0.000000e+00> : vector<16x16xf32>
    %165 = tpu.matmul %164, %1, %cst_85 {dimension_numbers = #tpu.dot_dimension_numbers<[1], [0], [0], [1], [0, 0, 1, 1], [], []>} : vector<16x16xbf16>, vector<16x16xbf16>, vector<16x16xf32> -> vector<16x16xf32>
    %166 = arith.addf %63, %165 : vector<16x16xf32>
    %cst_86 = arith.constant 0.000000e+00 : f32
    %167 = vector.broadcast %cst_86 : f32 to vector<16x16xf32>
    %168 = arith.maximumf %166, %167 : vector<16x16xf32>
    %169 = arith.truncf %159 : vector<16x16xf32> to vector<16x16xbf16>
    %cst_87 = arith.constant dense<0.000000e+00> : vector<16x16xf32>
    %170 = tpu.matmul %169, %2, %cst_87 {dimension_numbers = #tpu.dot_dimension_numbers<[1], [0], [0], [1], [0, 0, 1, 1], [], []>} : vector<16x16xbf16>, vector<16x16xbf16>, vector<16x16xf32> -> vector<16x16xf32>
    %171 = arith.addf %64, %170 : vector<16x16xf32>
    %cst_88 = arith.constant 0.000000e+00 : f32
    %172 = vector.broadcast %cst_88 : f32 to vector<16x16xf32>
    %173 = arith.maximumf %171, %172 : vector<16x16xf32>
    %174 = arith.truncf %168 : vector<16x16xf32> to vector<16x16xbf16>
    %cst_89 = arith.constant dense<0.000000e+00> : vector<16x16xf32>
    %175 = tpu.matmul %174, %3, %cst_89 {dimension_numbers = #tpu.dot_dimension_numbers<[1], [0], [0], [1], [0, 0, 1, 1], [], []>} : vector<16x16xbf16>, vector<16x16xbf16>, vector<16x16xf32> -> vector<16x16xf32>
    %176 = arith.truncf %173 : vector<16x16xf32> to vector<16x16xbf16>
    %cst_90 = arith.constant dense<0.000000e+00> : vector<16x16xf32>
    %177 = tpu.matmul %176, %4, %cst_90 {dimension_numbers = #tpu.dot_dimension_numbers<[1], [0], [0], [1], [0, 0, 1, 1], [], []>} : vector<16x16xbf16>, vector<16x16xbf16>, vector<16x16xf32> -> vector<16x16xf32>
    %178 = arith.truncf %168 : vector<16x16xf32> to vector<16x16xbf16>
    %cst_91 = arith.constant dense<0.000000e+00> : vector<16x16xf32>
    %179 = tpu.matmul %178, %5, %cst_91 {dimension_numbers = #tpu.dot_dimension_numbers<[1], [0], [0], [1], [0, 0, 1, 1], [], []>} : vector<16x16xbf16>, vector<16x16xbf16>, vector<16x16xf32> -> vector<16x16xf32>
    %180 = arith.truncf %75 : vector<16x16xf32> to vector<16x16xbf16>
    %cst_92 = arith.constant dense<0.000000e+00> : vector<16x16xf32>
    %181 = tpu.matmul %180, %6, %cst_92 {dimension_numbers = #tpu.dot_dimension_numbers<[1], [0], [0], [1], [0, 0, 1, 1], [], []>} : vector<16x16xbf16>, vector<16x16xbf16>, vector<16x16xf32> -> vector<16x16xf32>
    %182 = arith.addf %179, %181 : vector<16x16xf32>
    %183 = vector.broadcast %13 : vector<1x16xf32> to vector<16x16xf32>
    %184 = arith.addf %182, %183 : vector<16x16xf32>
    %cst_93 = arith.constant 0.000000e+00 : f32
    %185 = vector.broadcast %cst_93 : f32 to vector<16x16xf32>
    %186 = arith.maximumf %184, %185 : vector<16x16xf32>
    %187 = arith.truncf %186 : vector<16x16xf32> to vector<16x16xbf16>
    %cst_94 = arith.constant dense<0.000000e+00> : vector<16x32xf32>
    %188 = tpu.matmul %187, %9, %cst_94 {dimension_numbers = #tpu.dot_dimension_numbers<[1], [0], [0], [1], [0, 0, 1, 1], [], []>} : vector<16x16xbf16>, vector<16x32xbf16>, vector<16x32xf32> -> vector<16x32xf32>
    %189 = arith.addf %77, %177 : vector<16x16xf32>
    %190 = vector.broadcast %12 : vector<1x16xf32> to vector<16x16xf32>
    %191 = arith.addf %189, %190 : vector<16x16xf32>
    %cst_95 = arith.constant 0.000000e+00 : f32
    %192 = vector.broadcast %cst_95 : f32 to vector<16x16xf32>
    %193 = arith.maximumf %191, %192 : vector<16x16xf32>
    %194 = arith.addf %91, %163 : vector<16x16xf32>
    %195 = vector.broadcast %12 : vector<1x16xf32> to vector<16x16xf32>
    %196 = arith.addf %194, %195 : vector<16x16xf32>
    %197 = arith.truncf %193 : vector<16x16xf32> to vector<16x16xbf16>
    %cst_96 = arith.constant dense<0.000000e+00> : vector<16x16xf32>
    %198 = tpu.matmul %197, %7, %cst_96 {dimension_numbers = #tpu.dot_dimension_numbers<[1], [0], [0], [1], [0, 0, 1, 1], [], []>} : vector<16x16xbf16>, vector<16x16xbf16>, vector<16x16xf32> -> vector<16x16xf32>
    %199 = arith.addf %196, %198 : vector<16x16xf32>
    %cst_97 = arith.constant 0.000000e+00 : f32
    %200 = vector.broadcast %cst_97 : f32 to vector<16x16xf32>
    %201 = arith.maximumf %199, %200 : vector<16x16xf32>
    %202 = arith.addf %105, %149 : vector<16x16xf32>
    %203 = vector.broadcast %12 : vector<1x16xf32> to vector<16x16xf32>
    %204 = arith.addf %202, %203 : vector<16x16xf32>
    %205 = arith.truncf %201 : vector<16x16xf32> to vector<16x16xbf16>
    %cst_98 = arith.constant dense<0.000000e+00> : vector<16x16xf32>
    %206 = tpu.matmul %205, %7, %cst_98 {dimension_numbers = #tpu.dot_dimension_numbers<[1], [0], [0], [1], [0, 0, 1, 1], [], []>} : vector<16x16xbf16>, vector<16x16xbf16>, vector<16x16xf32> -> vector<16x16xf32>
    %207 = arith.addf %204, %206 : vector<16x16xf32>
    %cst_99 = arith.constant 0.000000e+00 : f32
    %208 = vector.broadcast %cst_99 : f32 to vector<16x16xf32>
    %209 = arith.maximumf %207, %208 : vector<16x16xf32>
    %210 = arith.addf %119, %135 : vector<16x16xf32>
    %211 = vector.broadcast %12 : vector<1x16xf32> to vector<16x16xf32>
    %212 = arith.addf %210, %211 : vector<16x16xf32>
    %213 = arith.truncf %209 : vector<16x16xf32> to vector<16x16xbf16>
    %cst_100 = arith.constant dense<0.000000e+00> : vector<16x16xf32>
    %214 = tpu.matmul %213, %7, %cst_100 {dimension_numbers = #tpu.dot_dimension_numbers<[1], [0], [0], [1], [0, 0, 1, 1], [], []>} : vector<16x16xbf16>, vector<16x16xbf16>, vector<16x16xf32> -> vector<16x16xf32>
    %215 = arith.addf %212, %214 : vector<16x16xf32>
    %cst_101 = arith.constant 0.000000e+00 : f32
    %216 = vector.broadcast %cst_101 : f32 to vector<16x16xf32>
    %217 = arith.maximumf %215, %216 : vector<16x16xf32>
    %218 = arith.addf %133, %121 : vector<16x16xf32>
    %219 = vector.broadcast %12 : vector<1x16xf32> to vector<16x16xf32>
    %220 = arith.addf %218, %219 : vector<16x16xf32>
    %221 = arith.truncf %217 : vector<16x16xf32> to vector<16x16xbf16>
    %cst_102 = arith.constant dense<0.000000e+00> : vector<16x16xf32>
    %222 = tpu.matmul %221, %7, %cst_102 {dimension_numbers = #tpu.dot_dimension_numbers<[1], [0], [0], [1], [0, 0, 1, 1], [], []>} : vector<16x16xbf16>, vector<16x16xbf16>, vector<16x16xf32> -> vector<16x16xf32>
    %223 = arith.addf %220, %222 : vector<16x16xf32>
    %cst_103 = arith.constant 0.000000e+00 : f32
    %224 = vector.broadcast %cst_103 : f32 to vector<16x16xf32>
    %225 = arith.maximumf %223, %224 : vector<16x16xf32>
    %226 = arith.addf %147, %107 : vector<16x16xf32>
    %227 = vector.broadcast %12 : vector<1x16xf32> to vector<16x16xf32>
    %228 = arith.addf %226, %227 : vector<16x16xf32>
    %229 = arith.truncf %225 : vector<16x16xf32> to vector<16x16xbf16>
    %cst_104 = arith.constant dense<0.000000e+00> : vector<16x16xf32>
    %230 = tpu.matmul %229, %7, %cst_104 {dimension_numbers = #tpu.dot_dimension_numbers<[1], [0], [0], [1], [0, 0, 1, 1], [], []>} : vector<16x16xbf16>, vector<16x16xbf16>, vector<16x16xf32> -> vector<16x16xf32>
    %231 = arith.addf %228, %230 : vector<16x16xf32>
    %cst_105 = arith.constant 0.000000e+00 : f32
    %232 = vector.broadcast %cst_105 : f32 to vector<16x16xf32>
    %233 = arith.maximumf %231, %232 : vector<16x16xf32>
    %234 = arith.addf %161, %93 : vector<16x16xf32>
    %235 = vector.broadcast %12 : vector<1x16xf32> to vector<16x16xf32>
    %236 = arith.addf %234, %235 : vector<16x16xf32>
    %237 = arith.truncf %233 : vector<16x16xf32> to vector<16x16xbf16>
    %cst_106 = arith.constant dense<0.000000e+00> : vector<16x16xf32>
    %238 = tpu.matmul %237, %7, %cst_106 {dimension_numbers = #tpu.dot_dimension_numbers<[1], [0], [0], [1], [0, 0, 1, 1], [], []>} : vector<16x16xbf16>, vector<16x16xbf16>, vector<16x16xf32> -> vector<16x16xf32>
    %239 = arith.addf %236, %238 : vector<16x16xf32>
    %cst_107 = arith.constant 0.000000e+00 : f32
    %240 = vector.broadcast %cst_107 : f32 to vector<16x16xf32>
    %241 = arith.maximumf %239, %240 : vector<16x16xf32>
    %242 = arith.addf %175, %79 : vector<16x16xf32>
    %243 = vector.broadcast %12 : vector<1x16xf32> to vector<16x16xf32>
    %244 = arith.addf %242, %243 : vector<16x16xf32>
    %245 = arith.truncf %241 : vector<16x16xf32> to vector<16x16xbf16>
    %cst_108 = arith.constant dense<0.000000e+00> : vector<16x16xf32>
    %246 = tpu.matmul %245, %7, %cst_108 {dimension_numbers = #tpu.dot_dimension_numbers<[1], [0], [0], [1], [0, 0, 1, 1], [], []>} : vector<16x16xbf16>, vector<16x16xbf16>, vector<16x16xf32> -> vector<16x16xf32>
    %247 = arith.addf %244, %246 : vector<16x16xf32>
    %cst_109 = arith.constant 0.000000e+00 : f32
    %248 = vector.broadcast %cst_109 : f32 to vector<16x16xf32>
    %249 = arith.maximumf %247, %248 : vector<16x16xf32>
    %250 = arith.truncf %249 : vector<16x16xf32> to vector<16x16xbf16>
    %cst_110 = arith.constant dense<0.000000e+00> : vector<16x32xf32>
    %251 = tpu.matmul %250, %8, %cst_110 {dimension_numbers = #tpu.dot_dimension_numbers<[1], [0], [0], [1], [0, 0, 1, 1], [], []>} : vector<16x16xbf16>, vector<16x32xbf16>, vector<16x32xf32> -> vector<16x32xf32>
    %252 = arith.addf %251, %188 : vector<16x32xf32>
    %253 = vector.broadcast %14 : vector<1x32xf32> to vector<16x32xf32>
    %254 = arith.addf %252, %253 : vector<16x32xf32>
    %255 = arith.truncf %254 : vector<16x32xf32> to vector<16x32xbf16>
    %cst_111 = arith.constant dense<0.000000e+00> : vector<16x32xf32>
    %256 = tpu.matmul %255, %10, %cst_111 {dimension_numbers = #tpu.dot_dimension_numbers<[1], [0], [0], [1], [0, 0, 1, 1], [], []>} : vector<16x32xbf16>, vector<32x32xbf16>, vector<16x32xf32> -> vector<16x32xf32>
    %257 = vector.broadcast %15 : vector<1x32xf32> to vector<16x32xf32>
    %258 = arith.addf %256, %257 : vector<16x32xf32>
    %c0_112 = arith.constant 0 : index
    %c0_113 = arith.constant 0 : index
    %259 = vector.load %arg4[%c0_112, %c0_113] : memref<16x32xf32, #tpu.memory_space<vmem>>, vector<16x32xf32>
    tpu.vector_store %arg4[%c0_112, %c0_113], %258 {strides = array<i32>} : memref<16x32xf32, #tpu.memory_space<vmem>>, vector<16x32xf32>,
    return
  }
  func.func @transform_0(%arg0: i32) -> (i32, i32, i32) {
    %c0_i32 = arith.constant 0 : i32
    %c0_i32_0 = arith.constant 0 : i32
    %c0_i32_1 = arith.constant 0 : i32
    return %c0_i32, %arg0, %c0_i32_0 : i32, i32, i32
  }
  func.func @transform_1(%arg0: i32) -> (i32, i32) {
    %c0_i32 = arith.constant 0 : i32
    %c0_i32_0 = arith.constant 0 : i32
    %c0_i32_1 = arith.constant 0 : i32
    return %c0_i32, %c0_i32_0 : i32, i32
  }
  func.func @transform_2(%arg0: i32) -> (i32, i32) {
    %c0_i32 = arith.constant 0 : i32
    %c0_i32_0 = arith.constant 0 : i32
    %c0_i32_1 = arith.constant 0 : i32
    return %c0_i32, %c0_i32_0 : i32, i32
  }
  func.func @transform_3(%arg0: i32) -> (i32, i32) {
    %c0_i32 = arith.constant 0 : i32
    %c0_i32_0 = arith.constant 0 : i32
    return %arg0, %c0_i32 : i32, i32
  }
}

</mosaic_0001>

<llo_original>
// kernel: tpu_custom_call.1
$region0: #{tpu_custom_call.1}
  #allocation0 [shape = 'u32[]', space=smem, size = 0x4, offset = 0x4, fixed_abs, tag = 'smem constant byte address 0x4 - core index']
  #allocation1 [shape = 'u32[144,128]{1,0:T(1,128)}', space=vmem, size = 0x12000, scoped, tag = 'internal scratch']
  %s0 = inlined_call_operand.vmem [shape: bf16[8,16,16], index: 0, kind: input, shape index: {}]
  %s1 = inlined_call_operand.vmem [shape: bf16[192,32], index: 1, kind: input, shape index: {}]
  %s2 = inlined_call_operand.vmem [shape: f32[8,32], index: 2, kind: input, shape index: {}]
  %s3 = inlined_call_operand.hbm [shape: f32[16,32], index: 3, kind: output, shape index: {}]
  %s4 = sld [smem:[#allocation0]]
  $region22: #{tpu_custom_call.1} parent=0
    _
  %s6 = ssub.s32 1, %s4
  %s7 = scalar_select 0, %s6, %s4
  $region1: #{tpu_custom_call.1} parent=0
    #allocation2 [shape = 'u8[8192]{0}', space=vmem, size = 0x2000, scoped, tag = 'output window, operand 0, single buffered']
    #allocation3 [shape = 's32[1]{0}', space=sflag, size = 0x4, scoped, tag = 'scoped memory for tpu_custom_call.1']
    %8 = vsyncpa [#allocation3], 0
    // Predicated region
    $region2: #{tpu_custom_call.1} parent=1 // pred_check
      _
    $region3: #{tpu_custom_call.1} parent=1 // pred_check_branch
      %10 = sbr.rel (0) target = $region5
    $region4: #{tpu_custom_call.1} parent=1 // pred_region
      _
    $region5: #{tpu_custom_call.1} parent=1 // pred_fallthru
      _
    // Predicated region
    $region6: #{tpu_custom_call.1} parent=1 // pred_check
      _
    $region7: #{tpu_custom_call.1} parent=1 // pred_check_branch
      %12 = sbr.rel (0) target = $region9
    $region8: #{tpu_custom_call.1} parent=1 // pred_region
      _
    $region9: #{tpu_custom_call.1} parent=1 // pred_fallthru
      _
    // Predicated region
    $region10: #{tpu_custom_call.1} parent=1 // pred_check
      _
    $region11: #{tpu_custom_call.1} parent=1 // pred_check_branch
      %14 = sbr.rel (0) target = $region13
    $region12: #{tpu_custom_call.1} parent=1 // pred_region
      _
    $region13: #{tpu_custom_call.1} parent=1 // pred_fallthru
      _
    %v16 = vld [vmem:[%s1] sm:$0xf]
    %v17 = vld [vmem:[%s1 + $0x4] sm:$0xf]
    %v18 = vld [vmem:[%s1 + $0x8] sm:$0xf]
    %v19 = vld [vmem:[%s1 + $0xc] sm:$0xf]
    %v20 = vld [vmem:[%s1 + $0x10] sm:$0xf]
    %v21 = vld [vmem:[%s1 + $0x14] sm:$0xf]
    %v22 = vld [vmem:[%s1 + $0x18] sm:$0xf]
    %v23 = vld [vmem:[%s1 + $0x1c] sm:$0xf]
    %v24 = vld [vmem:[%s1 + $0x20] sm:$0xf]
    %v25 = vld [vmem:[%s1 + $0x24] sm:$0xf]
    %v26 = vld [vmem:[%s1 + $0x28] sm:$0xf]
    %v27 = vld [vmem:[%s1 + $0x2c] sm:$0xf]
    %v28 = vld [vmem:[%s1 + $0x30] sm:$0xf]
    %v29 = vld [vmem:[%s1 + $0x34] sm:$0xf]
    %v30 = vld [vmem:[%s1 + $0x38] sm:$0xf]
    %v31 = vld [vmem:[%s1 + $0x3c] sm:$0xf]
    %v32 = vld [vmem:[%s1 + $0x40] sm:$0xf]
    %v33 = vld [vmem:[%s1 + $0x44] sm:$0xf]
    %v34 = vld [vmem:[%s1 + $0x48] sm:$0xf]
    %v35 = vld [vmem:[%s1 + $0x4c] sm:$0xf]
    %v36 = vld [vmem:[%s1 + $0x50] sm:$0xf]
    %v37 = vld [vmem:[%s1 + $0x54] sm:$0xf]
    %v38 = vld [vmem:[%s1 + $0x58] sm:$0xf]
    %v39 = vld [vmem:[%s1 + $0x5c] sm:$0xf]
    %v40 = vld [vmem:[%s2] sm:$0x1]
    %v41 = vld [vmem:[%s2 + $0x1] sm:$0x1]
    %v42 = vld [vmem:[%s2 + $0x2] sm:$0x1]
    %v43 = vld [vmem:[%s2 + $0x3] sm:$0x1]
    %v44 = vld [vmem:[%s0] sm:$0xf]
    %v45 = vld [vmem:[%s0 + $0x4] sm:$0xf]
    %v46 = vlaneseq
    %v47 = vshrl.u32 %v46, 7
    %v48 = vsub.s32 0, %v47
    %v49 = vrot.slane %v40, %v48
    %v52 = vunpack.c.l.b16 %v44
    %v53 = vunpack.c.l.b16 %v45
    %v54 = vpack.c.b16 %v53, %v52
    %v57 = vunpack.c.l.b16 %v16
    %v58 = vunpack.c.l.b16 %v17
    %v59 = vpack.c.b16 %v58, %v57
    %vm61 = vcmask 130048
    %v63 = vsel %vm61, %v54, 0
    %65 = vmatprep.subr.bf16.mxu0 0
    %66 = vmatpush1.bf16.msra.mxu0 0
    %67 = vmatprep.subr.bf16.mxu0 0
    %68 = vmatpush1.bf16.msra.mxu0 0
    %69 = vmatprep.subr.bf16.mxu0 0
    %70 = vmatpush1.bf16.msra.mxu0 0
    %71 = vmatprep.subr.bf16.mxu0 0
    %72 = vmatpush1.bf16.msra.mxu0 0
    %73 = vmatprep.subr.bf16.mxu0 0
    %74 = vmatpush1.bf16.msra.mxu0 0
    %75 = vmatprep.subr.bf16.mxu0 0
    %76 = vmatpush1.bf16.msra.mxu0 0
    %77 = vmatprep.subr.bf16.mxu0 0
    %78 = vmatpush1.bf16.msra.mxu0 0
    %79 = vmatprep.subr.bf16.mxu0 0
    %80 = vmatpush1.bf16.msra.mxu0 %v59
    %81 = vmatprep.subr.bf16.mxu0 0
    %82 = vmatpush2.bf16.msra.mxu0 0
    %83 = vmatprep.subr.bf16.mxu0 0
    %84 = vmatpush2.bf16.msra.mxu0 0
    %85 = vmatprep.subr.bf16.mxu0 0
    %86 = vmatpush2.bf16.msra.mxu0 0
    %87 = vmatprep.subr.bf16.mxu0 0
    %88 = vmatpush2.bf16.msra.mxu0 0
    %89 = vmatprep.subr.bf16.mxu0 0
    %90 = vmatpush2.bf16.msra.mxu0 0
    %91 = vmatprep.subr.bf16.mxu0 0
    %92 = vmatpush2.bf16.msra.mxu0 0
    %93 = vmatprep.subr.bf16.mxu0 0
    %94 = vmatpush2.bf16.msra.mxu0 0
    %95 = vmatprep.subr.bf16.mxu0 0
    %96 = vmatpush2.bf16.msra.mxu0 0
    %97 = vmatprep.mubr.bf16.mxu0 0
    %98 = vmatmul.mubr.bf16.gmra.mxu0 %v63
    %v99 = vpop.f32.mrf.mxu0
    %v100 = vadd.f32 %v49, %v99
    %v101 = vpop.f32.mrf.mxu0
    %v102 = vpop.f32.mrf.mxu0
    %v103 = vadd.f32 %v49, %v102
    %v104 = vpop.f32.mrf.mxu0
    %105 = vdwg.mxu0
    %s106 = scalar_lea.vmem %s0, 8
    %v107 = vld [vmem:[%s106] sm:$0xf]
    %v108 = vld [vmem:[%s106 + $0x4] sm:$0xf]
    %v111 = vunpack.c.l.b16 %v107
    %v112 = vunpack.c.l.b16 %v108
    %v113 = vpack.c.b16 %v112, %v111
    %v115 = vsel %vm61, %v113, 0
    %117 = vmatprep.subr.bf16.mxu0 0
    %118 = vmatpush1.bf16.msra.mxu0 0
    %119 = vmatprep.subr.bf16.mxu0 0
    %120 = vmatpush1.bf16.msra.mxu0 0
    %121 = vmatprep.subr.bf16.mxu0 0
    %122 = vmatpush1.bf16.msra.mxu0 0
    %123 = vmatprep.subr.bf16.mxu0 0
    %124 = vmatpush1.bf16.msra.mxu0 0
    %125 = vmatprep.subr.bf16.mxu0 0
    %126 = vmatpush1.bf16.msra.mxu0 0
    %127 = vmatprep.subr.bf16.mxu0 0
    %128 = vmatpush1.bf16.msra.mxu0 0
    %129 = vmatprep.subr.bf16.mxu0 0
    %130 = vmatpush1.bf16.msra.mxu0 0
    %131 = vmatprep.subr.bf16.mxu0 0
    %132 = vmatpush1.bf16.msra.mxu0 %v59
    %133 = vmatprep.subr.bf16.mxu0 0
    %134 = vmatpush2.bf16.msra.mxu0 0
    %135 = vmatprep.subr.bf16.mxu0 0
    %136 = vmatpush2.bf16.msra.mxu0 0
    %137 = vmatprep.subr.bf16.mxu0 0
    %138 = vmatpush2.bf16.msra.mxu0 0
    %139 = vmatprep.subr.bf16.mxu0 0
    %140 = vmatpush2.bf16.msra.mxu0 0
    %141 = vmatprep.subr.bf16.mxu0 0
    %142 = vmatpush2.bf16.msra.mxu0 0
    %143 = vmatprep.subr.bf16.mxu0 0
    %144 = vmatpush2.bf16.msra.mxu0 0
    %145 = vmatprep.subr.bf16.mxu0 0
    %146 = vmatpush2.bf16.msra.mxu0 0
    %147 = vmatprep.subr.bf16.mxu0 0
    %148 = vmatpush2.bf16.msra.mxu0 0
    %149 = vmatprep.mubr.bf16.mxu0 0
    %150 = vmatmul.mubr.bf16.gmra.mxu0 %v115
    %v151 = vpop.f32.mrf.mxu0
    %v152 = vadd.f32 %v49, %v151
    %v153 = vpop.f32.mrf.mxu0
    %v154 = vpop.f32.mrf.mxu0
    %v155 = vadd.f32 %v49, %v154
    %v156 = vpop.f32.mrf.mxu0
    %157 = vdwg.mxu0
    %s158 = scalar_lea.vmem %s0, 16
    %v159 = vld [vmem:[%s158] sm:$0xf]
    %v160 = vld [vmem:[%s158 + $0x4] sm:$0xf]
    %v163 = vunpack.c.l.b16 %v159
    %v164 = vunpack.c.l.b16 %v160
    %v165 = vpack.c.b16 %v164, %v163
    %v167 = vsel %vm61, %v165, 0
    %169 = vmatprep.subr.bf16.mxu0 0
    %170 = vmatpush1.bf16.msra.mxu0 0
    %171 = vmatprep.subr.bf16.mxu0 0
    %172 = vmatpush1.bf16.msra.mxu0 0
    %173 = vmatprep.subr.bf16.mxu0 0
    %174 = vmatpush1.bf16.msra.mxu0 0
    %175 = vmatprep.subr.bf16.mxu0 0
    %176 = vmatpush1.bf16.msra.mxu0 0
    %177 = vmatprep.subr.bf16.mxu0 0
    %178 = vmatpush1.bf16.msra.mxu0 0
    %179 = vmatprep.subr.bf16.mxu0 0
    %180 = vmatpush1.bf16.msra.mxu0 0
    %181 = vmatprep.subr.bf16.mxu0 0
    %182 = vmatpush1.bf16.msra.mxu0 0
    %183 = vmatprep.subr.bf16.mxu0 0
    %184 = vmatpush1.bf16.msra.mxu0 %v59
    %185 = vmatprep.subr.bf16.mxu0 0
    %186 = vmatpush2.bf16.msra.mxu0 0
    %187 = vmatprep.subr.bf16.mxu0 0
    %188 = vmatpush2.bf16.msra.mxu0 0
    %189 = vmatprep.subr.bf16.mxu0 0
    %190 = vmatpush2.bf16.msra.mxu0 0
    %191 = vmatprep.subr.bf16.mxu0 0
    %192 = vmatpush2.bf16.msra.mxu0 0
    %193 = vmatprep.subr.bf16.mxu0 0
    %194 = vmatpush2.bf16.msra.mxu0 0
    %195 = vmatprep.subr.bf16.mxu0 0
    %196 = vmatpush2.bf16.msra.mxu0 0
    %197 = vmatprep.subr.bf16.mxu0 0
    %198 = vmatpush2.bf16.msra.mxu0 0
    %199 = vmatprep.subr.bf16.mxu0 0
    %200 = vmatpush2.bf16.msra.mxu0 0
    %201 = vmatprep.mubr.bf16.mxu0 0
    %202 = vmatmul.mubr.bf16.gmra.mxu0 %v167
    %v203 = vpop.f32.mrf.mxu0
    %v204 = vadd.f32 %v49, %v203
    %v205 = vpop.f32.mrf.mxu0
    %v206 = vpop.f32.mrf.mxu0
    %v207 = vadd.f32 %v49, %v206
    %v208 = vpop.f32.mrf.mxu0
    %209 = vdwg.mxu0
    %s210 = scalar_lea.vmem %s0, 24
    %v211 = vld [vmem:[%s210] sm:$0xf]
    %v212 = vld [vmem:[%s210 + $0x4] sm:$0xf]
    %v215 = vunpack.c.l.b16 %v211
    %v216 = vunpack.c.l.b16 %v212
    %v217 = vpack.c.b16 %v216, %v215
    %v219 = vsel %vm61, %v217, 0
    %221 = vmatprep.subr.bf16.mxu0 0
    %222 = vmatpush1.bf16.msra.mxu0 0
    %223 = vmatprep.subr.bf16.mxu0 0
    %224 = vmatpush1.bf16.msra.mxu0 0
    %225 = vmatprep.subr.bf16.mxu0 0
    %226 = vmatpush1.bf16.msra.mxu0 0
    %227 = vmatprep.subr.bf16.mxu0 0
    %228 = vmatpush1.bf16.msra.mxu0 0
    %229 = vmatprep.subr.bf16.mxu0 0
    %230 = vmatpush1.bf16.msra.mxu0 0
    %231 = vmatprep.subr.bf16.mxu0 0
    %232 = vmatpush1.bf16.msra.mxu0 0
    %233 = vmatprep.subr.bf16.mxu0 0
    %234 = vmatpush1.bf16.msra.mxu0 0
    %235 = vmatprep.subr.bf16.mxu0 0
    %236 = vmatpush1.bf16.msra.mxu0 %v59
    %237 = vmatprep.subr.bf16.mxu0 0
    %238 = vmatpush2.bf16.msra.mxu0 0
    %239 = vmatprep.subr.bf16.mxu0 0
    %240 = vmatpush2.bf16.msra.mxu0 0
    %241 = vmatprep.subr.bf16.mxu0 0
    %242 = vmatpush2.bf16.msra.mxu0 0
    %243 = vmatprep.subr.bf16.mxu0 0
    %244 = vmatpush2.bf16.msra.mxu0 0
    %245 = vmatprep.subr.bf16.mxu0 0
    %246 = vmatpush2.bf16.msra.mxu0 0
    %247 = vmatprep.subr.bf16.mxu0 0
    %248 = vmatpush2.bf16.msra.mxu0 0
    %249 = vmatprep.subr.bf16.mxu0 0
    %250 = vmatpush2.bf16.msra.mxu0 0
    %251 = vmatprep.subr.bf16.mxu0 0
    %252 = vmatpush2.bf16.msra.mxu0 0
    %253 = vmatprep.mubr.bf16.mxu0 0
    %254 = vmatmul.mubr.bf16.gmra.mxu0 %v219
    %v255 = vpop.f32.mrf.mxu0
    %v256 = vadd.f32 %v49, %v255
    %v257 = vpop.f32.mrf.mxu0
    %v258 = vpop.f32.mrf.mxu0
    %v259 = vadd.f32 %v49, %v258
    %v260 = vpop.f32.mrf.mxu0
    %261 = vdwg.mxu0
    %s262 = scalar_lea.vmem %s0, 32
    %v263 = vld [vmem:[%s262] sm:$0xf]
    %v264 = vld [vmem:[%s262 + $0x4] sm:$0xf]
    %v267 = vunpack.c.l.b16 %v263
    %v268 = vunpack.c.l.b16 %v264
    %v269 = vpack.c.b16 %v268, %v267
    %v271 = vsel %vm61, %v269, 0
    %273 = vmatprep.subr.bf16.mxu0 0
    %274 = vmatpush1.bf16.msra.mxu0 0
    %275 = vmatprep.subr.bf16.mxu0 0
    %276 = vmatpush1.bf16.msra.mxu0 0
    %277 = vmatprep.subr.bf16.mxu0 0
    %278 = vmatpush1.bf16.msra.mxu0 0
    %279 = vmatprep.subr.bf16.mxu0 0
    %280 = vmatpush1.bf16.msra.mxu0 0
    %281 = vmatprep.subr.bf16.mxu0 0
    %282 = vmatpush1.bf16.msra.mxu0 0
    %283 = vmatprep.subr.bf16.mxu0 0
    %284 = vmatpush1.bf16.msra.mxu0 0
    %285 = vmatprep.subr.bf16.mxu0 0
    %286 = vmatpush1.bf16.msra.mxu0 0
    %287 = vmatprep.subr.bf16.mxu0 0
    %288 = vmatpush1.bf16.msra.mxu0 %v59
    %289 = vmatprep.subr.bf16.mxu0 0
    %290 = vmatpush2.bf16.msra.mxu0 0
    %291 = vmatprep.subr.bf16.mxu0 0
    %292 = vmatpush2.bf16.msra.mxu0 0
    %293 = vmatprep.subr.bf16.mxu0 0
    %294 = vmatpush2.bf16.msra.mxu0 0
    %295 = vmatprep.subr.bf16.mxu0 0
    %296 = vmatpush2.bf16.msra.mxu0 0
    %297 = vmatprep.subr.bf16.mxu0 0
    %298 = vmatpush2.bf16.msra.mxu0 0
    %299 = vmatprep.subr.bf16.mxu0 0
    %300 = vmatpush2.bf16.msra.mxu0 0
    %301 = vmatprep.subr.bf16.mxu0 0
    %302 = vmatpush2.bf16.msra.mxu0 0
    %303 = vmatprep.subr.bf16.mxu0 0
    %304 = vmatpush2.bf16.msra.mxu0 0
    %305 = vmatprep.mubr.bf16.mxu0 0
    %306 = vmatmul.mubr.bf16.gmra.mxu0 %v271
    %v307 = vpop.f32.mrf.mxu0
    %v308 = vadd.f32 %v49, %v307
    %v309 = vpop.f32.mrf.mxu0
    %v310 = vpop.f32.mrf.mxu0
    %v311 = vadd.f32 %v49, %v310
    %v312 = vpop.f32.mrf.mxu0
    %313 = vdwg.mxu0
    %s314 = scalar_lea.vmem %s0, 40
    %v315 = vld [vmem:[%s314] sm:$0xf]
    %v316 = vld [vmem:[%s314 + $0x4] sm:$0xf]
    %v319 = vunpack.c.l.b16 %v315
    %v320 = vunpack.c.l.b16 %v316
    %v321 = vpack.c.b16 %v320, %v319
    %v323 = vsel %vm61, %v321, 0
    %325 = vmatprep.subr.bf16.mxu0 0
    %326 = vmatpush1.bf16.msra.mxu0 0
    %327 = vmatprep.subr.bf16.mxu0 0
    %328 = vmatpush1.bf16.msra.mxu0 0
    %329 = vmatprep.subr.bf16.mxu0 0
    %330 = vmatpush1.bf16.msra.mxu0 0
    %331 = vmatprep.subr.bf16.mxu0 0
    %332 = vmatpush1.bf16.msra.mxu0 0
    %333 = vmatprep.subr.bf16.mxu0 0
    %334 = vmatpush1.bf16.msra.mxu0 0
    %335 = vmatprep.subr.bf16.mxu0 0
    %336 = vmatpush1.bf16.msra.mxu0 0
    %337 = vmatprep.subr.bf16.mxu0 0
    %338 = vmatpush1.bf16.msra.mxu0 0
    %339 = vmatprep.subr.bf16.mxu0 0
    %340 = vmatpush1.bf16.msra.mxu0 %v59
    %341 = vmatprep.subr.bf16.mxu0 0
    %342 = vmatpush2.bf16.msra.mxu0 0
    %343 = vmatprep.subr.bf16.mxu0 0
    %344 = vmatpush2.bf16.msra.mxu0 0
    %345 = vmatprep.subr.bf16.mxu0 0
    %346 = vmatpush2.bf16.msra.mxu0 0
    %347 = vmatprep.subr.bf16.mxu0 0
    %348 = vmatpush2.bf16.msra.mxu0 0
    %349 = vmatprep.subr.bf16.mxu0 0
    %350 = vmatpush2.bf16.msra.mxu0 0
    %351 = vmatprep.subr.bf16.mxu0 0
    %352 = vmatpush2.bf16.msra.mxu0 0
    %353 = vmatprep.subr.bf16.mxu0 0
    %354 = vmatpush2.bf16.msra.mxu0 0
    %355 = vmatprep.subr.bf16.mxu0 0
    %356 = vmatpush2.bf16.msra.mxu0 0
    %357 = vmatprep.mubr.bf16.mxu0 0
    %358 = vmatmul.mubr.bf16.gmra.mxu0 %v323
    %v359 = vpop.f32.mrf.mxu0
    %v360 = vadd.f32 %v49, %v359
    %v361 = vpop.f32.mrf.mxu0
    %v362 = vpop.f32.mrf.mxu0
    %v363 = vadd.f32 %v49, %v362
    %v364 = vpop.f32.mrf.mxu0
    %365 = vdwg.mxu0
    %s366 = scalar_lea.vmem %s0, 48
    %v367 = vld [vmem:[%s366] sm:$0xf]
    %v368 = vld [vmem:[%s366 + $0x4] sm:$0xf]
    %v371 = vunpack.c.l.b16 %v367
    %v372 = vunpack.c.l.b16 %v368
    %v373 = vpack.c.b16 %v372, %v371
    %v375 = vsel %vm61, %v373, 0
    %377 = vmatprep.subr.bf16.mxu0 0
    %378 = vmatpush1.bf16.msra.mxu0 0
    %379 = vmatprep.subr.bf16.mxu0 0
    %380 = vmatpush1.bf16.msra.mxu0 0
    %381 = vmatprep.subr.bf16.mxu0 0
    %382 = vmatpush1.bf16.msra.mxu0 0
    %383 = vmatprep.subr.bf16.mxu0 0
    %384 = vmatpush1.bf16.msra.mxu0 0
    %385 = vmatprep.subr.bf16.mxu0 0
    %386 = vmatpush1.bf16.msra.mxu0 0
    %387 = vmatprep.subr.bf16.mxu0 0
    %388 = vmatpush1.bf16.msra.mxu0 0
    %389 = vmatprep.subr.bf16.mxu0 0
    %390 = vmatpush1.bf16.msra.mxu0 0
    %391 = vmatprep.subr.bf16.mxu0 0
    %392 = vmatpush1.bf16.msra.mxu0 %v59
    %393 = vmatprep.subr.bf16.mxu0 0
    %394 = vmatpush2.bf16.msra.mxu0 0
    %395 = vmatprep.subr.bf16.mxu0 0
    %396 = vmatpush2.bf16.msra.mxu0 0
    %397 = vmatprep.subr.bf16.mxu0 0
    %398 = vmatpush2.bf16.msra.mxu0 0
    %399 = vmatprep.subr.bf16.mxu0 0
    %400 = vmatpush2.bf16.msra.mxu0 0
    %401 = vmatprep.subr.bf16.mxu0 0
    %402 = vmatpush2.bf16.msra.mxu0 0
    %403 = vmatprep.subr.bf16.mxu0 0
    %404 = vmatpush2.bf16.msra.mxu0 0
    %405 = vmatprep.subr.bf16.mxu0 0
    %406 = vmatpush2.bf16.msra.mxu0 0
    %407 = vmatprep.subr.bf16.mxu0 0
    %408 = vmatpush2.bf16.msra.mxu0 0
    %409 = vmatprep.mubr.bf16.mxu0 0
    %410 = vmatmul.mubr.bf16.gmra.mxu0 %v375
    %v411 = vpop.f32.mrf.mxu0
    %v412 = vadd.f32 %v49, %v411
    %v413 = vpop.f32.mrf.mxu0
    %v414 = vpop.f32.mrf.mxu0
    %v415 = vadd.f32 %v49, %v414
    %v416 = vpop.f32.mrf.mxu0
    %417 = vdwg.mxu0
    %s418 = scalar_lea.vmem %s0, 56
    %v419 = vld [vmem:[%s418] sm:$0xf]
    %v420 = vld [vmem:[%s418 + $0x4] sm:$0xf]
    %v423 = vunpack.c.l.b16 %v419
    %v424 = vunpack.c.l.b16 %v420
    %v425 = vpack.c.b16 %v424, %v423
    %v427 = vsel %vm61, %v425, 0
    %429 = vmatprep.subr.bf16.mxu0 0
    %430 = vmatpush1.bf16.msra.mxu0 0
    %431 = vmatprep.subr.bf16.mxu0 0
    %432 = vmatpush1.bf16.msra.mxu0 0
    %433 = vmatprep.subr.bf16.mxu0 0
    %434 = vmatpush1.bf16.msra.mxu0 0
    %435 = vmatprep.subr.bf16.mxu0 0
    %436 = vmatpush1.bf16.msra.mxu0 0
    %437 = vmatprep.subr.bf16.mxu0 0
    %438 = vmatpush1.bf16.msra.mxu0 0
    %439 = vmatprep.subr.bf16.mxu0 0
    %440 = vmatpush1.bf16.msra.mxu0 0
    %441 = vmatprep.subr.bf16.mxu0 0
    %442 = vmatpush1.bf16.msra.mxu0 0
    %443 = vmatprep.subr.bf16.mxu0 0
    %444 = vmatpush1.bf16.msra.mxu0 %v59
    %445 = vmatprep.subr.bf16.mxu0 0
    %446 = vmatpush2.bf16.msra.mxu0 0
    %447 = vmatprep.subr.bf16.mxu0 0
    %448 = vmatpush2.bf16.msra.mxu0 0
    %449 = vmatprep.subr.bf16.mxu0 0
    %450 = vmatpush2.bf16.msra.mxu0 0
    %451 = vmatprep.subr.bf16.mxu0 0
    %452 = vmatpush2.bf16.msra.mxu0 0
    %453 = vmatprep.subr.bf16.mxu0 0
    %454 = vmatpush2.bf16.msra.mxu0 0
    %455 = vmatprep.subr.bf16.mxu0 0
    %456 = vmatpush2.bf16.msra.mxu0 0
    %457 = vmatprep.subr.bf16.mxu0 0
    %458 = vmatpush2.bf16.msra.mxu0 0
    %459 = vmatprep.subr.bf16.mxu0 0
    %460 = vmatpush2.bf16.msra.mxu0 0
    %461 = vmatprep.mubr.bf16.mxu0 0
    %462 = vmatmul.mubr.bf16.gmra.mxu0 %v427
    %v463 = vpop.f32.mrf.mxu0
    %v464 = vadd.f32 %v49, %v463
    %v465 = vpop.f32.mrf.mxu0
    %v466 = vpop.f32.mrf.mxu0
    %v467 = vadd.f32 %v49, %v466
    %v468 = vpop.f32.mrf.mxu0
    %469 = vdwg.mxu0
    %v470 = vmax.f32 %v100, 0.0
    %v471 = vmax.f32 %v103, 0.0
    %v472 = vmax.f32 %v464, 0.0
    %v473 = vmax.f32 %v467, 0.0
    %v474 = vpack.c.bf16 %v471, %v470
    %v475 = vpack.c.bf16 %v473, %v472
    %477 = vrot.lane.b32.xlu0 %v475, 112
    %v478 = vpop.permute.xlu0 %477
    %v481 = vunpack.c.l.b16 %v24
    %v482 = vunpack.c.l.b16 %v25
    %v483 = vpack.c.b16 %v482, %v481
    %v486 = vsel %vm61, %v478, 0
    %488 = vmatprep.subr.bf16.mxu0 0
    %489 = vmatpush1.bf16.msra.mxu0 0
    %490 = vmatprep.subr.bf16.mxu0 0
    %491 = vmatpush1.bf16.msra.mxu0 0
    %492 = vmatprep.subr.bf16.mxu0 0
    %493 = vmatpush1.bf16.msra.mxu0 0
    %494 = vmatprep.subr.bf16.mxu0 0
    %495 = vmatpush1.bf16.msra.mxu0 0
    %496 = vmatprep.subr.bf16.mxu0 0
    %497 = vmatpush1.bf16.msra.mxu0 0
    %498 = vmatprep.subr.bf16.mxu0 0
    %499 = vmatpush1.bf16.msra.mxu0 0
    %500 = vmatprep.subr.bf16.mxu0 0
    %501 = vmatpush1.bf16.msra.mxu0 0
    %502 = vmatprep.subr.bf16.mxu0 0
    %503 = vmatpush1.bf16.msra.mxu0 %v483
    %504 = vmatprep.subr.bf16.mxu0 0
    %505 = vmatpush2.bf16.msra.mxu0 0
    %506 = vmatprep.subr.bf16.mxu0 0
    %507 = vmatpush2.bf16.msra.mxu0 0
    %508 = vmatprep.subr.bf16.mxu0 0
    %509 = vmatpush2.bf16.msra.mxu0 0
    %510 = vmatprep.subr.bf16.mxu0 0
    %511 = vmatpush2.bf16.msra.mxu0 0
    %512 = vmatprep.subr.bf16.mxu0 0
    %513 = vmatpush2.bf16.msra.mxu0 0
    %514 = vmatprep.subr.bf16.mxu0 0
    %515 = vmatpush2.bf16.msra.mxu0 0
    %516 = vmatprep.subr.bf16.mxu0 0
    %517 = vmatpush2.bf16.msra.mxu0 0
    %518 = vmatprep.subr.bf16.mxu0 0
    %519 = vmatpush2.bf16.msra.mxu0 0
    %520 = vmatprep.mubr.bf16.mxu0 0
    %521 = vmatmul.mubr.bf16.gmra.mxu0 %v486
    %v522 = vpop.f32.mrf.mxu0
    %v523 = vadd.f32 0.0, %v522
    %v524 = vpop.f32.mrf.mxu0
    %v525 = vpop.f32.mrf.mxu0
    %v526 = vadd.f32 0.0, %v525
    %v527 = vpop.f32.mrf.mxu0
    %528 = vdwg.mxu0
    %v531 = vunpack.c.l.b16 %v18
    %v532 = vunpack.c.l.b16 %v19
    %v533 = vpack.c.b16 %v532, %v531
    %v536 = vsel %vm61, %v474, 0
    %538 = vmatprep.subr.bf16.mxu0 0
    %539 = vmatpush1.bf16.msra.mxu0 0
    %540 = vmatprep.subr.bf16.mxu0 0
    %541 = vmatpush1.bf16.msra.mxu0 0
    %542 = vmatprep.subr.bf16.mxu0 0
    %543 = vmatpush1.bf16.msra.mxu0 0
    %544 = vmatprep.subr.bf16.mxu0 0
    %545 = vmatpush1.bf16.msra.mxu0 0
    %546 = vmatprep.subr.bf16.mxu0 0
    %547 = vmatpush1.bf16.msra.mxu0 0
    %548 = vmatprep.subr.bf16.mxu0 0
    %549 = vmatpush1.bf16.msra.mxu0 0
    %550 = vmatprep.subr.bf16.mxu0 0
    %551 = vmatpush1.bf16.msra.mxu0 0
    %552 = vmatprep.subr.bf16.mxu0 0
    %553 = vmatpush1.bf16.msra.mxu0 %v533
    %554 = vmatprep.subr.bf16.mxu0 0
    %555 = vmatpush2.bf16.msra.mxu0 0
    %556 = vmatprep.subr.bf16.mxu0 0
    %557 = vmatpush2.bf16.msra.mxu0 0
    %558 = vmatprep.subr.bf16.mxu0 0
    %559 = vmatpush2.bf16.msra.mxu0 0
    %560 = vmatprep.subr.bf16.mxu0 0
    %561 = vmatpush2.bf16.msra.mxu0 0
    %562 = vmatprep.subr.bf16.mxu0 0
    %563 = vmatpush2.bf16.msra.mxu0 0
    %564 = vmatprep.subr.bf16.mxu0 0
    %565 = vmatpush2.bf16.msra.mxu0 0
    %566 = vmatprep.subr.bf16.mxu0 0
    %567 = vmatpush2.bf16.msra.mxu0 0
    %568 = vmatprep.subr.bf16.mxu0 0
    %569 = vmatpush2.bf16.msra.mxu0 0
    %570 = vmatprep.mubr.bf16.mxu0 0
    %571 = vmatmul.mubr.bf16.gmra.mxu0 %v536
    %v572 = vpop.f32.mrf.mxu0
    %v573 = vadd.f32 0.0, %v572
    %v574 = vpop.f32.mrf.mxu0
    %v575 = vpop.f32.mrf.mxu0
    %v576 = vadd.f32 0.0, %v575
    %v577 = vpop.f32.mrf.mxu0
    %578 = vdwg.mxu0
    %v579 = vadd.f32 %v152, %v573
    %v580 = vadd.f32 %v155, %v576
    %v581 = vmax.f32 %v579, 0.0
    %v582 = vmax.f32 %v580, 0.0
    %v585 = vunpack.c.l.b16 %v20
    %v586 = vunpack.c.l.b16 %v21
    %v587 = vpack.c.b16 %v586, %v585
    %589 = vmatprep.subr.bf16.mxu0 0
    %590 = vmatpush1.bf16.msra.mxu0 0
    %591 = vmatprep.subr.bf16.mxu0 0
    %592 = vmatpush1.bf16.msra.mxu0 0
    %593 = vmatprep.subr.bf16.mxu0 0
    %594 = vmatpush1.bf16.msra.mxu0 0
    %595 = vmatprep.subr.bf16.mxu0 0
    %596 = vmatpush1.bf16.msra.mxu0 0
    %597 = vmatprep.subr.bf16.mxu0 0
    %598 = vmatpush1.bf16.msra.mxu0 0
    %599 = vmatprep.subr.bf16.mxu0 0
    %600 = vmatpush1.bf16.msra.mxu0 0
    %601 = vmatprep.subr.bf16.mxu0 0
    %602 = vmatpush1.bf16.msra.mxu0 0
    %603 = vmatprep.subr.bf16.mxu0 0
    %604 = vmatpush1.bf16.msra.mxu0 %v587
    %605 = vmatprep.subr.bf16.mxu0 0
    %606 = vmatpush2.bf16.msra.mxu0 0
    %607 = vmatprep.subr.bf16.mxu0 0
    %608 = vmatpush2.bf16.msra.mxu0 0
    %609 = vmatprep.subr.bf16.mxu0 0
    %610 = vmatpush2.bf16.msra.mxu0 0
    %611 = vmatprep.subr.bf16.mxu0 0
    %612 = vmatpush2.bf16.msra.mxu0 0
    %613 = vmatprep.subr.bf16.mxu0 0
    %614 = vmatpush2.bf16.msra.mxu0 0
    %615 = vmatprep.subr.bf16.mxu0 0
    %616 = vmatpush2.bf16.msra.mxu0 0
    %617 = vmatprep.subr.bf16.mxu0 0
    %618 = vmatpush2.bf16.msra.mxu0 0
    %619 = vmatprep.subr.bf16.mxu0 0
    %620 = vmatpush2.bf16.msra.mxu0 0
    %621 = vmatprep.mubr.bf16.mxu0 0
    %622 = vmatmul.mubr.bf16.gmra.mxu0 %v486
    %v623 = vpop.f32.mrf.mxu0
    %v624 = vadd.f32 0.0, %v623
    %v625 = vpop.f32.mrf.mxu0
    %v626 = vpop.f32.mrf.mxu0
    %v627 = vadd.f32 0.0, %v626
    %v628 = vpop.f32.mrf.mxu0
    %629 = vdwg.mxu0
    %632 = vrot.lane.b32.xlu0 %v624, 16
    %v633 = vpop.permute.xlu0 %632
    %634 = vrot.lane.b32.xlu0 %v627, 16
    %v635 = vpop.permute.xlu0 %634
    %v638 = vadd.f32 %v412, %v633
    %v639 = vadd.f32 %v415, %v635
    %v640 = vmax.f32 %v638, 0.0
    %v641 = vmax.f32 %v639, 0.0
    %v642 = vpack.c.bf16 %v582, %v581
    %v643 = vpack.c.bf16 %v641, %v640
    %645 = vrot.lane.b32.xlu0 %v643, 112
    %v646 = vpop.permute.xlu0 %645
    %v648 = vsel %vm61, %v646, 0
    %650 = vmatprep.subr.bf16.mxu0 0
    %651 = vmatpush1.bf16.msra.mxu0 0
    %652 = vmatprep.subr.bf16.mxu0 0
    %653 = vmatpush1.bf16.msra.mxu0 0
    %654 = vmatprep.subr.bf16.mxu0 0
    %655 = vmatpush1.bf16.msra.mxu0 0
    %656 = vmatprep.subr.bf16.mxu0 0
    %657 = vmatpush1.bf16.msra.mxu0 0
    %658 = vmatprep.subr.bf16.mxu0 0
    %659 = vmatpush1.bf16.msra.mxu0 0
    %660 = vmatprep.subr.bf16.mxu0 0
    %661 = vmatpush1.bf16.msra.mxu0 0
    %662 = vmatprep.subr.bf16.mxu0 0
    %663 = vmatpush1.bf16.msra.mxu0 0
    %664 = vmatprep.subr.bf16.mxu0 0
    %665 = vmatpush1.bf16.msra.mxu0 %v483
    %666 = vmatprep.subr.bf16.mxu0 0
    %667 = vmatpush2.bf16.msra.mxu0 0
    %668 = vmatprep.subr.bf16.mxu0 0
    %669 = vmatpush2.bf16.msra.mxu0 0
    %670 = vmatprep.subr.bf16.mxu0 0
    %671 = vmatpush2.bf16.msra.mxu0 0
    %672 = vmatprep.subr.bf16.mxu0 0
    %673 = vmatpush2.bf16.msra.mxu0 0
    %674 = vmatprep.subr.bf16.mxu0 0
    %675 = vmatpush2.bf16.msra.mxu0 0
    %676 = vmatprep.subr.bf16.mxu0 0
    %677 = vmatpush2.bf16.msra.mxu0 0
    %678 = vmatprep.subr.bf16.mxu0 0
    %679 = vmatpush2.bf16.msra.mxu0 0
    %680 = vmatprep.subr.bf16.mxu0 0
    %681 = vmatpush2.bf16.msra.mxu0 0
    %682 = vmatprep.mubr.bf16.mxu0 0
    %683 = vmatmul.mubr.bf16.gmra.mxu0 %v648
    %v684 = vpop.f32.mrf.mxu0
    %v685 = vadd.f32 0.0, %v684
    %v686 = vpop.f32.mrf.mxu0
    %v687 = vpop.f32.mrf.mxu0
    %v688 = vadd.f32 0.0, %v687
    %v689 = vpop.f32.mrf.mxu0
    %690 = vdwg.mxu0
    %v692 = vsel %vm61, %v642, 0
    %694 = vmatprep.subr.bf16.mxu0 0
    %695 = vmatpush1.bf16.msra.mxu0 0
    %696 = vmatprep.subr.bf16.mxu0 0
    %697 = vmatpush1.bf16.msra.mxu0 0
    %698 = vmatprep.subr.bf16.mxu0 0
    %699 = vmatpush1.bf16.msra.mxu0 0
    %700 = vmatprep.subr.bf16.mxu0 0
    %701 = vmatpush1.bf16.msra.mxu0 0
    %702 = vmatprep.subr.bf16.mxu0 0
    %703 = vmatpush1.bf16.msra.mxu0 0
    %704 = vmatprep.subr.bf16.mxu0 0
    %705 = vmatpush1.bf16.msra.mxu0 0
    %706 = vmatprep.subr.bf16.mxu0 0
    %707 = vmatpush1.bf16.msra.mxu0 0
    %708 = vmatprep.subr.bf16.mxu0 0
    %709 = vmatpush1.bf16.msra.mxu0 %v533
    %710 = vmatprep.subr.bf16.mxu0 0
    %711 = vmatpush2.bf16.msra.mxu0 0
    %712 = vmatprep.subr.bf16.mxu0 0
    %713 = vmatpush2.bf16.msra.mxu0 0
    %714 = vmatprep.subr.bf16.mxu0 0
    %715 = vmatpush2.bf16.msra.mxu0 0
    %716 = vmatprep.subr.bf16.mxu0 0
    %717 = vmatpush2.bf16.msra.mxu0 0
    %718 = vmatprep.subr.bf16.mxu0 0
    %719 = vmatpush2.bf16.msra.mxu0 0
    %720 = vmatprep.subr.bf16.mxu0 0
    %721 = vmatpush2.bf16.msra.mxu0 0
    %722 = vmatprep.subr.bf16.mxu0 0
    %723 = vmatpush2.bf16.msra.mxu0 0
    %724 = vmatprep.subr.bf16.mxu0 0
    %725 = vmatpush2.bf16.msra.mxu0 0
    %726 = vmatprep.mubr.bf16.mxu0 0
    %727 = vmatmul.mubr.bf16.gmra.mxu0 %v692
    %v728 = vpop.f32.mrf.mxu0
    %v729 = vadd.f32 0.0, %v728
    %v730 = vpop.f32.mrf.mxu0
    %v731 = vpop.f32.mrf.mxu0
    %v732 = vadd.f32 0.0, %v731
    %v733 = vpop.f32.mrf.mxu0
    %734 = vdwg.mxu0
    %v735 = vadd.f32 %v204, %v729
    %v736 = vadd.f32 %v207, %v732
    %v737 = vmax.f32 %v735, 0.0
    %v738 = vmax.f32 %v736, 0.0
    %739 = vmatprep.subr.bf16.mxu0 0
    %740 = vmatpush1.bf16.msra.mxu0 0
    %741 = vmatprep.subr.bf16.mxu0 0
    %742 = vmatpush1.bf16.msra.mxu0 0
    %743 = vmatprep.subr.bf16.mxu0 0
    %744 = vmatpush1.bf16.msra.mxu0 0
    %745 = vmatprep.subr.bf16.mxu0 0
    %746 = vmatpush1.bf16.msra.mxu0 0
    %747 = vmatprep.subr.bf16.mxu0 0
    %748 = vmatpush1.bf16.msra.mxu0 0
    %749 = vmatprep.subr.bf16.mxu0 0
    %750 = vmatpush1.bf16.msra.mxu0 0
    %751 = vmatprep.subr.bf16.mxu0 0
    %752 = vmatpush1.bf16.msra.mxu0 0
    %753 = vmatprep.subr.bf16.mxu0 0
    %754 = vmatpush1.bf16.msra.mxu0 %v587
    %755 = vmatprep.subr.bf16.mxu0 0
    %756 = vmatpush2.bf16.msra.mxu0 0
    %757 = vmatprep.subr.bf16.mxu0 0
    %758 = vmatpush2.bf16.msra.mxu0 0
    %759 = vmatprep.subr.bf16.mxu0 0
    %760 = vmatpush2.bf16.msra.mxu0 0
    %761 = vmatprep.subr.bf16.mxu0 0
    %762 = vmatpush2.bf16.msra.mxu0 0
    %763 = vmatprep.subr.bf16.mxu0 0
    %764 = vmatpush2.bf16.msra.mxu0 0
    %765 = vmatprep.subr.bf16.mxu0 0
    %766 = vmatpush2.bf16.msra.mxu0 0
    %767 = vmatprep.subr.bf16.mxu0 0
    %768 = vmatpush2.bf16.msra.mxu0 0
    %769 = vmatprep.subr.bf16.mxu0 0
    %770 = vmatpush2.bf16.msra.mxu0 0
    %771 = vmatprep.mubr.bf16.mxu0 0
    %772 = vmatmul.mubr.bf16.gmra.mxu0 %v648
    %v773 = vpop.f32.mrf.mxu0
    %v774 = vadd.f32 0.0, %v773
    %v775 = vpop.f32.mrf.mxu0
    %v776 = vpop.f32.mrf.mxu0
    %v777 = vadd.f32 0.0, %v776
    %v778 = vpop.f32.mrf.mxu0
    %779 = vdwg.mxu0
    %782 = vrot.lane.b32.xlu0 %v774, 16
    %v783 = vpop.permute.xlu0 %782
    %784 = vrot.lane.b32.xlu0 %v777, 16
    %v785 = vpop.permute.xlu0 %784
    %v788 = vadd.f32 %v360, %v783
    %v789 = vadd.f32 %v363, %v785
    %v790 = vmax.f32 %v788, 0.0
    %v791 = vmax.f32 %v789, 0.0
    %v792 = vpack.c.bf16 %v738, %v737
    %v793 = vpack.c.bf16 %v791, %v790
    %795 = vrot.lane.b32.xlu0 %v793, 112
    %v796 = vpop.permute.xlu0 %795
    %v798 = vsel %vm61, %v796, 0
    %800 = vmatprep.subr.bf16.mxu0 0
    %801 = vmatpush1.bf16.msra.mxu0 0
    %802 = vmatprep.subr.bf16.mxu0 0
    %803 = vmatpush1.bf16.msra.mxu0 0
    %804 = vmatprep.subr.bf16.mxu0 0
    %805 = vmatpush1.bf16.msra.mxu0 0
    %806 = vmatprep.subr.bf16.mxu0 0
    %807 = vmatpush1.bf16.msra.mxu0 0
    %808 = vmatprep.subr.bf16.mxu0 0
    %809 = vmatpush1.bf16.msra.mxu0 0
    %810 = vmatprep.subr.bf16.mxu0 0
    %811 = vmatpush1.bf16.msra.mxu0 0
    %812 = vmatprep.subr.bf16.mxu0 0
    %813 = vmatpush1.bf16.msra.mxu0 0
    %814 = vmatprep.subr.bf16.mxu0 0
    %815 = vmatpush1.bf16.msra.mxu0 %v483
    %816 = vmatprep.subr.bf16.mxu0 0
    %817 = vmatpush2.bf16.msra.mxu0 0
    %818 = vmatprep.subr.bf16.mxu0 0
    %819 = vmatpush2.bf16.msra.mxu0 0
    %820 = vmatprep.subr.bf16.mxu0 0
    %821 = vmatpush2.bf16.msra.mxu0 0
    %822 = vmatprep.subr.bf16.mxu0 0
    %823 = vmatpush2.bf16.msra.mxu0 0
    %824 = vmatprep.subr.bf16.mxu0 0
    %825 = vmatpush2.bf16.msra.mxu0 0
    %826 = vmatprep.subr.bf16.mxu0 0
    %827 = vmatpush2.bf16.msra.mxu0 0
    %828 = vmatprep.subr.bf16.mxu0 0
    %829 = vmatpush2.bf16.msra.mxu0 0
    %830 = vmatprep.subr.bf16.mxu0 0
    %831 = vmatpush2.bf16.msra.mxu0 0
    %832 = vmatprep.mubr.bf16.mxu0 0
    %833 = vmatmul.mubr.bf16.gmra.mxu0 %v798
    %v834 = vpop.f32.mrf.mxu0
    %v835 = vadd.f32 0.0, %v834
    %v836 = vpop.f32.mrf.mxu0
    %v837 = vpop.f32.mrf.mxu0
    %v838 = vadd.f32 0.0, %v837
    %v839 = vpop.f32.mrf.mxu0
    %840 = vdwg.mxu0
    %v842 = vsel %vm61, %v792, 0
    %844 = vmatprep.subr.bf16.mxu0 0
    %845 = vmatpush1.bf16.msra.mxu0 0
    %846 = vmatprep.subr.bf16.mxu0 0
    %847 = vmatpush1.bf16.msra.mxu0 0
    %848 = vmatprep.subr.bf16.mxu0 0
    %849 = vmatpush1.bf16.msra.mxu0 0
    %850 = vmatprep.subr.bf16.mxu0 0
    %851 = vmatpush1.bf16.msra.mxu0 0
    %852 = vmatprep.subr.bf16.mxu0 0
    %853 = vmatpush1.bf16.msra.mxu0 0
    %854 = vmatprep.subr.bf16.mxu0 0
    %855 = vmatpush1.bf16.msra.mxu0 0
    %856 = vmatprep.subr.bf16.mxu0 0
    %857 = vmatpush1.bf16.msra.mxu0 0
    %858 = vmatprep.subr.bf16.mxu0 0
    %859 = vmatpush1.bf16.msra.mxu0 %v533
    %860 = vmatprep.subr.bf16.mxu0 0
    %861 = vmatpush2.bf16.msra.mxu0 0
    %862 = vmatprep.subr.bf16.mxu0 0
    %863 = vmatpush2.bf16.msra.mxu0 0
    %864 = vmatprep.subr.bf16.mxu0 0
    %865 = vmatpush2.bf16.msra.mxu0 0
    %866 = vmatprep.subr.bf16.mxu0 0
    %867 = vmatpush2.bf16.msra.mxu0 0
    %868 = vmatprep.subr.bf16.mxu0 0
    %869 = vmatpush2.bf16.msra.mxu0 0
    %870 = vmatprep.subr.bf16.mxu0 0
    %871 = vmatpush2.bf16.msra.mxu0 0
    %872 = vmatprep.subr.bf16.mxu0 0
    %873 = vmatpush2.bf16.msra.mxu0 0
    %874 = vmatprep.subr.bf16.mxu0 0
    %875 = vmatpush2.bf16.msra.mxu0 0
    %876 = vmatprep.mubr.bf16.mxu0 0
    %877 = vmatmul.mubr.bf16.gmra.mxu0 %v842
    %v878 = vpop.f32.mrf.mxu0
    %v879 = vadd.f32 0.0, %v878
    %v880 = vpop.f32.mrf.mxu0
    %v881 = vpop.f32.mrf.mxu0
    %v882 = vadd.f32 0.0, %v881
    %v883 = vpop.f32.mrf.mxu0
    %884 = vdwg.mxu0
    %v885 = vadd.f32 %v256, %v879
    %v886 = vadd.f32 %v259, %v882
    %v887 = vmax.f32 %v885, 0.0
    %v888 = vmax.f32 %v886, 0.0
    %889 = vmatprep.subr.bf16.mxu0 0
    %890 = vmatpush1.bf16.msra.mxu0 0
    %891 = vmatprep.subr.bf16.mxu0 0
    %892 = vmatpush1.bf16.msra.mxu0 0
    %893 = vmatprep.subr.bf16.mxu0 0
    %894 = vmatpush1.bf16.msra.mxu0 0
    %895 = vmatprep.subr.bf16.mxu0 0
    %896 = vmatpush1.bf16.msra.mxu0 0
    %897 = vmatprep.subr.bf16.mxu0 0
    %898 = vmatpush1.bf16.msra.mxu0 0
    %899 = vmatprep.subr.bf16.mxu0 0
    %900 = vmatpush1.bf16.msra.mxu0 0
    %901 = vmatprep.subr.bf16.mxu0 0
    %902 = vmatpush1.bf16.msra.mxu0 0
    %903 = vmatprep.subr.bf16.mxu0 0
    %904 = vmatpush1.bf16.msra.mxu0 %v587
    %905 = vmatprep.subr.bf16.mxu0 0
    %906 = vmatpush2.bf16.msra.mxu0 0
    %907 = vmatprep.subr.bf16.mxu0 0
    %908 = vmatpush2.bf16.msra.mxu0 0
    %909 = vmatprep.subr.bf16.mxu0 0
    %910 = vmatpush2.bf16.msra.mxu0 0
    %911 = vmatprep.subr.bf16.mxu0 0
    %912 = vmatpush2.bf16.msra.mxu0 0
    %913 = vmatprep.subr.bf16.mxu0 0
    %914 = vmatpush2.bf16.msra.mxu0 0
    %915 = vmatprep.subr.bf16.mxu0 0
    %916 = vmatpush2.bf16.msra.mxu0 0
    %917 = vmatprep.subr.bf16.mxu0 0
    %918 = vmatpush2.bf16.msra.mxu0 0
    %919 = vmatprep.subr.bf16.mxu0 0
    %920 = vmatpush2.bf16.msra.mxu0 0
    %921 = vmatprep.mubr.bf16.mxu0 0
    %922 = vmatmul.mubr.bf16.gmra.mxu0 %v798
    %v923 = vpop.f32.mrf.mxu0
    %v924 = vadd.f32 0.0, %v923
    %v925 = vpop.f32.mrf.mxu0
    %v926 = vpop.f32.mrf.mxu0
    %v927 = vadd.f32 0.0, %v926
    %v928 = vpop.f32.mrf.mxu0
    %929 = vdwg.mxu0
    %932 = vrot.lane.b32.xlu0 %v924, 16
    %v933 = vpop.permute.xlu0 %932
    %934 = vrot.lane.b32.xlu0 %v927, 16
    %v935 = vpop.permute.xlu0 %934
    %v938 = vadd.f32 %v308, %v933
    %v939 = vadd.f32 %v311, %v935
    %v940 = vmax.f32 %v938, 0.0
    %v941 = vmax.f32 %v939, 0.0
    %v942 = vpack.c.bf16 %v888, %v887
    %v943 = vpack.c.bf16 %v941, %v940
    %945 = vrot.lane.b32.xlu0 %v943, 112
    %v946 = vpop.permute.xlu0 %945
    %v948 = vsel %vm61, %v946, 0
    %950 = vmatprep.subr.bf16.mxu0 0
    %951 = vmatpush1.bf16.msra.mxu0 0
    %952 = vmatprep.subr.bf16.mxu0 0
    %953 = vmatpush1.bf16.msra.mxu0 0
    %954 = vmatprep.subr.bf16.mxu0 0
    %955 = vmatpush1.bf16.msra.mxu0 0
    %956 = vmatprep.subr.bf16.mxu0 0
    %957 = vmatpush1.bf16.msra.mxu0 0
    %958 = vmatprep.subr.bf16.mxu0 0
    %959 = vmatpush1.bf16.msra.mxu0 0
    %960 = vmatprep.subr.bf16.mxu0 0
    %961 = vmatpush1.bf16.msra.mxu0 0
    %962 = vmatprep.subr.bf16.mxu0 0
    %963 = vmatpush1.bf16.msra.mxu0 0
    %964 = vmatprep.subr.bf16.mxu0 0
    %965 = vmatpush1.bf16.msra.mxu0 %v483
    %966 = vmatprep.subr.bf16.mxu0 0
    %967 = vmatpush2.bf16.msra.mxu0 0
    %968 = vmatprep.subr.bf16.mxu0 0
    %969 = vmatpush2.bf16.msra.mxu0 0
    %970 = vmatprep.subr.bf16.mxu0 0
    %971 = vmatpush2.bf16.msra.mxu0 0
    %972 = vmatprep.subr.bf16.mxu0 0
    %973 = vmatpush2.bf16.msra.mxu0 0
    %974 = vmatprep.subr.bf16.mxu0 0
    %975 = vmatpush2.bf16.msra.mxu0 0
    %976 = vmatprep.subr.bf16.mxu0 0
    %977 = vmatpush2.bf16.msra.mxu0 0
    %978 = vmatprep.subr.bf16.mxu0 0
    %979 = vmatpush2.bf16.msra.mxu0 0
    %980 = vmatprep.subr.bf16.mxu0 0
    %981 = vmatpush2.bf16.msra.mxu0 0
    %982 = vmatprep.mubr.bf16.mxu0 0
    %983 = vmatmul.mubr.bf16.gmra.mxu0 %v948
    %v984 = vpop.f32.mrf.mxu0
    %v985 = vadd.f32 0.0, %v984
    %v986 = vpop.f32.mrf.mxu0
    %v987 = vpop.f32.mrf.mxu0
    %v988 = vadd.f32 0.0, %v987
    %v989 = vpop.f32.mrf.mxu0
    %990 = vdwg.mxu0
    %v992 = vsel %vm61, %v942, 0
    %994 = vmatprep.subr.bf16.mxu0 0
    %995 = vmatpush1.bf16.msra.mxu0 0
    %996 = vmatprep.subr.bf16.mxu0 0
    %997 = vmatpush1.bf16.msra.mxu0 0
    %998 = vmatprep.subr.bf16.mxu0 0
    %999 = vmatpush1.bf16.msra.mxu0 0
    %1000 = vmatprep.subr.bf16.mxu0 0
    %1001 = vmatpush1.bf16.msra.mxu0 0
    %1002 = vmatprep.subr.bf16.mxu0 0
    %1003 = vmatpush1.bf16.msra.mxu0 0
    %1004 = vmatprep.subr.bf16.mxu0 0
    %1005 = vmatpush1.bf16.msra.mxu0 0
    %1006 = vmatprep.subr.bf16.mxu0 0
    %1007 = vmatpush1.bf16.msra.mxu0 0
    %1008 = vmatprep.subr.bf16.mxu0 0
    %1009 = vmatpush1.bf16.msra.mxu0 %v533
    %1010 = vmatprep.subr.bf16.mxu0 0
    %1011 = vmatpush2.bf16.msra.mxu0 0
    %1012 = vmatprep.subr.bf16.mxu0 0
    %1013 = vmatpush2.bf16.msra.mxu0 0
    %1014 = vmatprep.subr.bf16.mxu0 0
    %1015 = vmatpush2.bf16.msra.mxu0 0
    %1016 = vmatprep.subr.bf16.mxu0 0
    %1017 = vmatpush2.bf16.msra.mxu0 0
    %1018 = vmatprep.subr.bf16.mxu0 0
    %1019 = vmatpush2.bf16.msra.mxu0 0
    %1020 = vmatprep.subr.bf16.mxu0 0
    %1021 = vmatpush2.bf16.msra.mxu0 0
    %1022 = vmatprep.subr.bf16.mxu0 0
    %1023 = vmatpush2.bf16.msra.mxu0 0
    %1024 = vmatprep.subr.bf16.mxu0 0
    %1025 = vmatpush2.bf16.msra.mxu0 0
    %1026 = vmatprep.mubr.bf16.mxu0 0
    %1027 = vmatmul.mubr.bf16.gmra.mxu0 %v992
    %v1028 = vpop.f32.mrf.mxu0
    %v1029 = vadd.f32 0.0, %v1028
    %v1030 = vpop.f32.mrf.mxu0
    %v1031 = vpop.f32.mrf.mxu0
    %v1032 = vadd.f32 0.0, %v1031
    %v1033 = vpop.f32.mrf.mxu0
    %1034 = vdwg.mxu0
    %v1035 = vadd.f32 %v308, %v1029
    %v1036 = vadd.f32 %v311, %v1032
    %v1037 = vmax.f32 %v1035, 0.0
    %v1038 = vmax.f32 %v1036, 0.0
    %1039 = vmatprep.subr.bf16.mxu0 0
    %1040 = vmatpush1.bf16.msra.mxu0 0
    %1041 = vmatprep.subr.bf16.mxu0 0
    %1042 = vmatpush1.bf16.msra.mxu0 0
    %1043 = vmatprep.subr.bf16.mxu0 0
    %1044 = vmatpush1.bf16.msra.mxu0 0
    %1045 = vmatprep.subr.bf16.mxu0 0
    %1046 = vmatpush1.bf16.msra.mxu0 0
    %1047 = vmatprep.subr.bf16.mxu0 0
    %1048 = vmatpush1.bf16.msra.mxu0 0
    %1049 = vmatprep.subr.bf16.mxu0 0
    %1050 = vmatpush1.bf16.msra.mxu0 0
    %1051 = vmatprep.subr.bf16.mxu0 0
    %1052 = vmatpush1.bf16.msra.mxu0 0
    %1053 = vmatprep.subr.bf16.mxu0 0
    %1054 = vmatpush1.bf16.msra.mxu0 %v587
    %1055 = vmatprep.subr.bf16.mxu0 0
    %1056 = vmatpush2.bf16.msra.mxu0 0
    %1057 = vmatprep.subr.bf16.mxu0 0
    %1058 = vmatpush2.bf16.msra.mxu0 0
    %1059 = vmatprep.subr.bf16.mxu0 0
    %1060 = vmatpush2.bf16.msra.mxu0 0
    %1061 = vmatprep.subr.bf16.mxu0 0
    %1062 = vmatpush2.bf16.msra.mxu0 0
    %1063 = vmatprep.subr.bf16.mxu0 0
    %1064 = vmatpush2.bf16.msra.mxu0 0
    %1065 = vmatprep.subr.bf16.mxu0 0
    %1066 = vmatpush2.bf16.msra.mxu0 0
    %1067 = vmatprep.subr.bf16.mxu0 0
    %1068 = vmatpush2.bf16.msra.mxu0 0
    %1069 = vmatprep.subr.bf16.mxu0 0
    %1070 = vmatpush2.bf16.msra.mxu0 0
    %1071 = vmatprep.mubr.bf16.mxu0 0
    %1072 = vmatmul.mubr.bf16.gmra.mxu0 %v948
    %v1073 = vpop.f32.mrf.mxu0
    %v1074 = vadd.f32 0.0, %v1073
    %v1075 = vpop.f32.mrf.mxu0
    %v1076 = vpop.f32.mrf.mxu0
    %v1077 = vadd.f32 0.0, %v1076
    %v1078 = vpop.f32.mrf.mxu0
    %1079 = vdwg.mxu0
    %1082 = vrot.lane.b32.xlu0 %v1074, 16
    %v1083 = vpop.permute.xlu0 %1082
    %1084 = vrot.lane.b32.xlu0 %v1077, 16
    %v1085 = vpop.permute.xlu0 %1084
    %v1088 = vadd.f32 %v256, %v1083
    %v1089 = vadd.f32 %v259, %v1085
    %v1090 = vmax.f32 %v1088, 0.0
    %v1091 = vmax.f32 %v1089, 0.0
    %v1092 = vpack.c.bf16 %v1038, %v1037
    %v1093 = vpack.c.bf16 %v1091, %v1090
    %1095 = vrot.lane.b32.xlu0 %v1093, 112
    %v1096 = vpop.permute.xlu0 %1095
    %v1098 = vsel %vm61, %v1096, 0
    %1100 = vmatprep.subr.bf16.mxu0 0
    %1101 = vmatpush1.bf16.msra.mxu0 0
    %1102 = vmatprep.subr.bf16.mxu0 0
    %1103 = vmatpush1.bf16.msra.mxu0 0
    %1104 = vmatprep.subr.bf16.mxu0 0
    %1105 = vmatpush1.bf16.msra.mxu0 0
    %1106 = vmatprep.subr.bf16.mxu0 0
    %1107 = vmatpush1.bf16.msra.mxu0 0
    %1108 = vmatprep.subr.bf16.mxu0 0
    %1109 = vmatpush1.bf16.msra.mxu0 0
    %1110 = vmatprep.subr.bf16.mxu0 0
    %1111 = vmatpush1.bf16.msra.mxu0 0
    %1112 = vmatprep.subr.bf16.mxu0 0
    %1113 = vmatpush1.bf16.msra.mxu0 0
    %1114 = vmatprep.subr.bf16.mxu0 0
    %1115 = vmatpush1.bf16.msra.mxu0 %v483
    %1116 = vmatprep.subr.bf16.mxu0 0
    %1117 = vmatpush2.bf16.msra.mxu0 0
    %1118 = vmatprep.subr.bf16.mxu0 0
    %1119 = vmatpush2.bf16.msra.mxu0 0
    %1120 = vmatprep.subr.bf16.mxu0 0
    %1121 = vmatpush2.bf16.msra.mxu0 0
    %1122 = vmatprep.subr.bf16.mxu0 0
    %1123 = vmatpush2.bf16.msra.mxu0 0
    %1124 = vmatprep.subr.bf16.mxu0 0
    %1125 = vmatpush2.bf16.msra.mxu0 0
    %1126 = vmatprep.subr.bf16.mxu0 0
    %1127 = vmatpush2.bf16.msra.mxu0 0
    %1128 = vmatprep.subr.bf16.mxu0 0
    %1129 = vmatpush2.bf16.msra.mxu0 0
    %1130 = vmatprep.subr.bf16.mxu0 0
    %1131 = vmatpush2.bf16.msra.mxu0 0
    %1132 = vmatprep.mubr.bf16.mxu0 0
    %1133 = vmatmul.mubr.bf16.gmra.mxu0 %v1098
    %v1134 = vpop.f32.mrf.mxu0
    %v1135 = vadd.f32 0.0, %v1134
    %v1136 = vpop.f32.mrf.mxu0
    %v1137 = vpop.f32.mrf.mxu0
    %v1138 = vadd.f32 0.0, %v1137
    %v1139 = vpop.f32.mrf.mxu0
    %1140 = vdwg.mxu0
    %v1142 = vsel %vm61, %v1092, 0
    %1144 = vmatprep.subr.bf16.mxu0 0
    %1145 = vmatpush1.bf16.msra.mxu0 0
    %1146 = vmatprep.subr.bf16.mxu0 0
    %1147 = vmatpush1.bf16.msra.mxu0 0
    %1148 = vmatprep.subr.bf16.mxu0 0
    %1149 = vmatpush1.bf16.msra.mxu0 0
    %1150 = vmatprep.subr.bf16.mxu0 0
    %1151 = vmatpush1.bf16.msra.mxu0 0
    %1152 = vmatprep.subr.bf16.mxu0 0
    %1153 = vmatpush1.bf16.msra.mxu0 0
    %1154 = vmatprep.subr.bf16.mxu0 0
    %1155 = vmatpush1.bf16.msra.mxu0 0
    %1156 = vmatprep.subr.bf16.mxu0 0
    %1157 = vmatpush1.bf16.msra.mxu0 0
    %1158 = vmatprep.subr.bf16.mxu0 0
    %1159 = vmatpush1.bf16.msra.mxu0 %v533
    %1160 = vmatprep.subr.bf16.mxu0 0
    %1161 = vmatpush2.bf16.msra.mxu0 0
    %1162 = vmatprep.subr.bf16.mxu0 0
    %1163 = vmatpush2.bf16.msra.mxu0 0
    %1164 = vmatprep.subr.bf16.mxu0 0
    %1165 = vmatpush2.bf16.msra.mxu0 0
    %1166 = vmatprep.subr.bf16.mxu0 0
    %1167 = vmatpush2.bf16.msra.mxu0 0
    %1168 = vmatprep.subr.bf16.mxu0 0
    %1169 = vmatpush2.bf16.msra.mxu0 0
    %1170 = vmatprep.subr.bf16.mxu0 0
    %1171 = vmatpush2.bf16.msra.mxu0 0
    %1172 = vmatprep.subr.bf16.mxu0 0
    %1173 = vmatpush2.bf16.msra.mxu0 0
    %1174 = vmatprep.subr.bf16.mxu0 0
    %1175 = vmatpush2.bf16.msra.mxu0 0
    %1176 = vmatprep.mubr.bf16.mxu0 0
    %1177 = vmatmul.mubr.bf16.gmra.mxu0 %v1142
    %v1178 = vpop.f32.mrf.mxu0
    %v1179 = vadd.f32 0.0, %v1178
    %v1180 = vpop.f32.mrf.mxu0
    %v1181 = vpop.f32.mrf.mxu0
    %v1182 = vadd.f32 0.0, %v1181
    %v1183 = vpop.f32.mrf.mxu0
    %1184 = vdwg.mxu0
    %v1185 = vadd.f32 %v360, %v1179
    %v1186 = vadd.f32 %v363, %v1182
    %v1187 = vmax.f32 %v1185, 0.0
    %v1188 = vmax.f32 %v1186, 0.0
    %1189 = vmatprep.subr.bf16.mxu0 0
    %1190 = vmatpush1.bf16.msra.mxu0 0
    %1191 = vmatprep.subr.bf16.mxu0 0
    %1192 = vmatpush1.bf16.msra.mxu0 0
    %1193 = vmatprep.subr.bf16.mxu0 0
    %1194 = vmatpush1.bf16.msra.mxu0 0
    %1195 = vmatprep.subr.bf16.mxu0 0
    %1196 = vmatpush1.bf16.msra.mxu0 0
    %1197 = vmatprep.subr.bf16.mxu0 0
    %1198 = vmatpush1.bf16.msra.mxu0 0
    %1199 = vmatprep.subr.bf16.mxu0 0
    %1200 = vmatpush1.bf16.msra.mxu0 0
    %1201 = vmatprep.subr.bf16.mxu0 0
    %1202 = vmatpush1.bf16.msra.mxu0 0
    %1203 = vmatprep.subr.bf16.mxu0 0
    %1204 = vmatpush1.bf16.msra.mxu0 %v587
    %1205 = vmatprep.subr.bf16.mxu0 0
    %1206 = vmatpush2.bf16.msra.mxu0 0
    %1207 = vmatprep.subr.bf16.mxu0 0
    %1208 = vmatpush2.bf16.msra.mxu0 0
    %1209 = vmatprep.subr.bf16.mxu0 0
    %1210 = vmatpush2.bf16.msra.mxu0 0
    %1211 = vmatprep.subr.bf16.mxu0 0
    %1212 = vmatpush2.bf16.msra.mxu0 0
    %1213 = vmatprep.subr.bf16.mxu0 0
    %1214 = vmatpush2.bf16.msra.mxu0 0
    %1215 = vmatprep.subr.bf16.mxu0 0
    %1216 = vmatpush2.bf16.msra.mxu0 0
    %1217 = vmatprep.subr.bf16.mxu0 0
    %1218 = vmatpush2.bf16.msra.mxu0 0
    %1219 = vmatprep.subr.bf16.mxu0 0
    %1220 = vmatpush2.bf16.msra.mxu0 0
    %1221 = vmatprep.mubr.bf16.mxu0 0
    %1222 = vmatmul.mubr.bf16.gmra.mxu0 %v1098
    %v1223 = vpop.f32.mrf.mxu0
    %v1224 = vadd.f32 0.0, %v1223
    %v1225 = vpop.f32.mrf.mxu0
    %v1226 = vpop.f32.mrf.mxu0
    %v1227 = vadd.f32 0.0, %v1226
    %v1228 = vpop.f32.mrf.mxu0
    %1229 = vdwg.mxu0
    %1232 = vrot.lane.b32.xlu0 %v1224, 16
    %v1233 = vpop.permute.xlu0 %1232
    %1234 = vrot.lane.b32.xlu0 %v1227, 16
    %v1235 = vpop.permute.xlu0 %1234
    %v1238 = vadd.f32 %v204, %v1233
    %v1239 = vadd.f32 %v207, %v1235
    %v1240 = vmax.f32 %v1238, 0.0
    %v1241 = vmax.f32 %v1239, 0.0
    %v1242 = vpack.c.bf16 %v1188, %v1187
    %v1243 = vpack.c.bf16 %v1241, %v1240
    %1245 = vrot.lane.b32.xlu0 %v1243, 112
    %v1246 = vpop.permute.xlu0 %1245
    %v1248 = vsel %vm61, %v1246, 0
    %1250 = vmatprep.subr.bf16.mxu0 0
    %1251 = vmatpush1.bf16.msra.mxu0 0
    %1252 = vmatprep.subr.bf16.mxu0 0
    %1253 = vmatpush1.bf16.msra.mxu0 0
    %1254 = vmatprep.subr.bf16.mxu0 0
    %1255 = vmatpush1.bf16.msra.mxu0 0
    %1256 = vmatprep.subr.bf16.mxu0 0
    %1257 = vmatpush1.bf16.msra.mxu0 0
    %1258 = vmatprep.subr.bf16.mxu0 0
    %1259 = vmatpush1.bf16.msra.mxu0 0
    %1260 = vmatprep.subr.bf16.mxu0 0
    %1261 = vmatpush1.bf16.msra.mxu0 0
    %1262 = vmatprep.subr.bf16.mxu0 0
    %1263 = vmatpush1.bf16.msra.mxu0 0
    %1264 = vmatprep.subr.bf16.mxu0 0
    %1265 = vmatpush1.bf16.msra.mxu0 %v483
    %1266 = vmatprep.subr.bf16.mxu0 0
    %1267 = vmatpush2.bf16.msra.mxu0 0
    %1268 = vmatprep.subr.bf16.mxu0 0
    %1269 = vmatpush2.bf16.msra.mxu0 0
    %1270 = vmatprep.subr.bf16.mxu0 0
    %1271 = vmatpush2.bf16.msra.mxu0 0
    %1272 = vmatprep.subr.bf16.mxu0 0
    %1273 = vmatpush2.bf16.msra.mxu0 0
    %1274 = vmatprep.subr.bf16.mxu0 0
    %1275 = vmatpush2.bf16.msra.mxu0 0
    %1276 = vmatprep.subr.bf16.mxu0 0
    %1277 = vmatpush2.bf16.msra.mxu0 0
    %1278 = vmatprep.subr.bf16.mxu0 0
    %1279 = vmatpush2.bf16.msra.mxu0 0
    %1280 = vmatprep.subr.bf16.mxu0 0
    %1281 = vmatpush2.bf16.msra.mxu0 0
    %1282 = vmatprep.mubr.bf16.mxu0 0
    %1283 = vmatmul.mubr.bf16.gmra.mxu0 %v1248
    %v1284 = vpop.f32.mrf.mxu0
    %v1285 = vadd.f32 0.0, %v1284
    %v1286 = vpop.f32.mrf.mxu0
    %v1287 = vpop.f32.mrf.mxu0
    %v1288 = vadd.f32 0.0, %v1287
    %v1289 = vpop.f32.mrf.mxu0
    %1290 = vdwg.mxu0
    %v1292 = vsel %vm61, %v1242, 0
    %1294 = vmatprep.subr.bf16.mxu0 0
    %1295 = vmatpush1.bf16.msra.mxu0 0
    %1296 = vmatprep.subr.bf16.mxu0 0
    %1297 = vmatpush1.bf16.msra.mxu0 0
    %1298 = vmatprep.subr.bf16.mxu0 0
    %1299 = vmatpush1.bf16.msra.mxu0 0
    %1300 = vmatprep.subr.bf16.mxu0 0
    %1301 = vmatpush1.bf16.msra.mxu0 0
    %1302 = vmatprep.subr.bf16.mxu0 0
    %1303 = vmatpush1.bf16.msra.mxu0 0
    %1304 = vmatprep.subr.bf16.mxu0 0
    %1305 = vmatpush1.bf16.msra.mxu0 0
    %1306 = vmatprep.subr.bf16.mxu0 0
    %1307 = vmatpush1.bf16.msra.mxu0 0
    %1308 = vmatprep.subr.bf16.mxu0 0
    %1309 = vmatpush1.bf16.msra.mxu0 %v533
    %1310 = vmatprep.subr.bf16.mxu0 0
    %1311 = vmatpush2.bf16.msra.mxu0 0
    %1312 = vmatprep.subr.bf16.mxu0 0
    %1313 = vmatpush2.bf16.msra.mxu0 0
    %1314 = vmatprep.subr.bf16.mxu0 0
    %1315 = vmatpush2.bf16.msra.mxu0 0
    %1316 = vmatprep.subr.bf16.mxu0 0
    %1317 = vmatpush2.bf16.msra.mxu0 0
    %1318 = vmatprep.subr.bf16.mxu0 0
    %1319 = vmatpush2.bf16.msra.mxu0 0
    %1320 = vmatprep.subr.bf16.mxu0 0
    %1321 = vmatpush2.bf16.msra.mxu0 0
    %1322 = vmatprep.subr.bf16.mxu0 0
    %1323 = vmatpush2.bf16.msra.mxu0 0
    %1324 = vmatprep.subr.bf16.mxu0 0
    %1325 = vmatpush2.bf16.msra.mxu0 0
    %1326 = vmatprep.mubr.bf16.mxu0 0
    %1327 = vmatmul.mubr.bf16.gmra.mxu0 %v1292
    %v1328 = vpop.f32.mrf.mxu0
    %v1329 = vadd.f32 0.0, %v1328
    %v1330 = vpop.f32.mrf.mxu0
    %v1331 = vpop.f32.mrf.mxu0
    %v1332 = vadd.f32 0.0, %v1331
    %v1333 = vpop.f32.mrf.mxu0
    %1334 = vdwg.mxu0
    %v1335 = vadd.f32 %v412, %v1329
    %v1336 = vadd.f32 %v415, %v1332
    %v1337 = vmax.f32 %v1335, 0.0
    %v1338 = vmax.f32 %v1336, 0.0
    %1339 = vmatprep.subr.bf16.mxu0 0
    %1340 = vmatpush1.bf16.msra.mxu0 0
    %1341 = vmatprep.subr.bf16.mxu0 0
    %1342 = vmatpush1.bf16.msra.mxu0 0
    %1343 = vmatprep.subr.bf16.mxu0 0
    %1344 = vmatpush1.bf16.msra.mxu0 0
    %1345 = vmatprep.subr.bf16.mxu0 0
    %1346 = vmatpush1.bf16.msra.mxu0 0
    %1347 = vmatprep.subr.bf16.mxu0 0
    %1348 = vmatpush1.bf16.msra.mxu0 0
    %1349 = vmatprep.subr.bf16.mxu0 0
    %1350 = vmatpush1.bf16.msra.mxu0 0
    %1351 = vmatprep.subr.bf16.mxu0 0
    %1352 = vmatpush1.bf16.msra.mxu0 0
    %1353 = vmatprep.subr.bf16.mxu0 0
    %1354 = vmatpush1.bf16.msra.mxu0 %v587
    %1355 = vmatprep.subr.bf16.mxu0 0
    %1356 = vmatpush2.bf16.msra.mxu0 0
    %1357 = vmatprep.subr.bf16.mxu0 0
    %1358 = vmatpush2.bf16.msra.mxu0 0
    %1359 = vmatprep.subr.bf16.mxu0 0
    %1360 = vmatpush2.bf16.msra.mxu0 0
    %1361 = vmatprep.subr.bf16.mxu0 0
    %1362 = vmatpush2.bf16.msra.mxu0 0
    %1363 = vmatprep.subr.bf16.mxu0 0
    %1364 = vmatpush2.bf16.msra.mxu0 0
    %1365 = vmatprep.subr.bf16.mxu0 0
    %1366 = vmatpush2.bf16.msra.mxu0 0
    %1367 = vmatprep.subr.bf16.mxu0 0
    %1368 = vmatpush2.bf16.msra.mxu0 0
    %1369 = vmatprep.subr.bf16.mxu0 0
    %1370 = vmatpush2.bf16.msra.mxu0 0
    %1371 = vmatprep.mubr.bf16.mxu0 0
    %1372 = vmatmul.mubr.bf16.gmra.mxu0 %v1248
    %v1373 = vpop.f32.mrf.mxu0
    %v1374 = vadd.f32 0.0, %v1373
    %v1375 = vpop.f32.mrf.mxu0
    %v1376 = vpop.f32.mrf.mxu0
    %v1377 = vadd.f32 0.0, %v1376
    %v1378 = vpop.f32.mrf.mxu0
    %1379 = vdwg.mxu0
    %1382 = vrot.lane.b32.xlu0 %v1374, 16
    %v1383 = vpop.permute.xlu0 %1382
    %1384 = vrot.lane.b32.xlu0 %v1377, 16
    %v1385 = vpop.permute.xlu0 %1384
    %v1388 = vadd.f32 %v152, %v1383
    %v1389 = vadd.f32 %v155, %v1385
    %v1390 = vmax.f32 %v1388, 0.0
    %v1391 = vmax.f32 %v1389, 0.0
    %v1392 = vpack.c.bf16 %v1338, %v1337
    %v1393 = vpack.c.bf16 %v1391, %v1390
    %1395 = vrot.lane.b32.xlu0 %v1393, 112
    %v1396 = vpop.permute.xlu0 %1395
    %v1398 = vsel %vm61, %v1396, 0
    %1400 = vmatprep.subr.bf16.mxu0 0
    %1401 = vmatpush1.bf16.msra.mxu0 0
    %1402 = vmatprep.subr.bf16.mxu0 0
    %1403 = vmatpush1.bf16.msra.mxu0 0
    %1404 = vmatprep.subr.bf16.mxu0 0
    %1405 = vmatpush1.bf16.msra.mxu0 0
    %1406 = vmatprep.subr.bf16.mxu0 0
    %1407 = vmatpush1.bf16.msra.mxu0 0
    %1408 = vmatprep.subr.bf16.mxu0 0
    %1409 = vmatpush1.bf16.msra.mxu0 0
    %1410 = vmatprep.subr.bf16.mxu0 0
    %1411 = vmatpush1.bf16.msra.mxu0 0
    %1412 = vmatprep.subr.bf16.mxu0 0
    %1413 = vmatpush1.bf16.msra.mxu0 0
    %1414 = vmatprep.subr.bf16.mxu0 0
    %1415 = vmatpush1.bf16.msra.mxu0 %v483
    %1416 = vmatprep.subr.bf16.mxu0 0
    %1417 = vmatpush2.bf16.msra.mxu0 0
    %1418 = vmatprep.subr.bf16.mxu0 0
    %1419 = vmatpush2.bf16.msra.mxu0 0
    %1420 = vmatprep.subr.bf16.mxu0 0
    %1421 = vmatpush2.bf16.msra.mxu0 0
    %1422 = vmatprep.subr.bf16.mxu0 0
    %1423 = vmatpush2.bf16.msra.mxu0 0
    %1424 = vmatprep.subr.bf16.mxu0 0
    %1425 = vmatpush2.bf16.msra.mxu0 0
    %1426 = vmatprep.subr.bf16.mxu0 0
    %1427 = vmatpush2.bf16.msra.mxu0 0
    %1428 = vmatprep.subr.bf16.mxu0 0
    %1429 = vmatpush2.bf16.msra.mxu0 0
    %1430 = vmatprep.subr.bf16.mxu0 0
    %1431 = vmatpush2.bf16.msra.mxu0 0
    %1432 = vmatprep.mubr.bf16.mxu0 0
    %1433 = vmatmul.mubr.bf16.gmra.mxu0 %v1398
    %v1434 = vpop.f32.mrf.mxu0
    %v1435 = vadd.f32 0.0, %v1434
    %v1436 = vpop.f32.mrf.mxu0
    %v1437 = vpop.f32.mrf.mxu0
    %v1438 = vadd.f32 0.0, %v1437
    %v1439 = vpop.f32.mrf.mxu0
    %1440 = vdwg.mxu0
    %v1442 = vsel %vm61, %v1392, 0
    %1444 = vmatprep.subr.bf16.mxu0 0
    %1445 = vmatpush1.bf16.msra.mxu0 0
    %1446 = vmatprep.subr.bf16.mxu0 0
    %1447 = vmatpush1.bf16.msra.mxu0 0
    %1448 = vmatprep.subr.bf16.mxu0 0
    %1449 = vmatpush1.bf16.msra.mxu0 0
    %1450 = vmatprep.subr.bf16.mxu0 0
    %1451 = vmatpush1.bf16.msra.mxu0 0
    %1452 = vmatprep.subr.bf16.mxu0 0
    %1453 = vmatpush1.bf16.msra.mxu0 0
    %1454 = vmatprep.subr.bf16.mxu0 0
    %1455 = vmatpush1.bf16.msra.mxu0 0
    %1456 = vmatprep.subr.bf16.mxu0 0
    %1457 = vmatpush1.bf16.msra.mxu0 0
    %1458 = vmatprep.subr.bf16.mxu0 0
    %1459 = vmatpush1.bf16.msra.mxu0 %v533
    %1460 = vmatprep.subr.bf16.mxu0 0
    %1461 = vmatpush2.bf16.msra.mxu0 0
    %1462 = vmatprep.subr.bf16.mxu0 0
    %1463 = vmatpush2.bf16.msra.mxu0 0
    %1464 = vmatprep.subr.bf16.mxu0 0
    %1465 = vmatpush2.bf16.msra.mxu0 0
    %1466 = vmatprep.subr.bf16.mxu0 0
    %1467 = vmatpush2.bf16.msra.mxu0 0
    %1468 = vmatprep.subr.bf16.mxu0 0
    %1469 = vmatpush2.bf16.msra.mxu0 0
    %1470 = vmatprep.subr.bf16.mxu0 0
    %1471 = vmatpush2.bf16.msra.mxu0 0
    %1472 = vmatprep.subr.bf16.mxu0 0
    %1473 = vmatpush2.bf16.msra.mxu0 0
    %1474 = vmatprep.subr.bf16.mxu0 0
    %1475 = vmatpush2.bf16.msra.mxu0 0
    %1476 = vmatprep.mubr.bf16.mxu0 0
    %1477 = vmatmul.mubr.bf16.gmra.mxu0 %v1442
    %v1478 = vpop.f32.mrf.mxu0
    %v1479 = vadd.f32 0.0, %v1478
    %v1480 = vpop.f32.mrf.mxu0
    %v1481 = vpop.f32.mrf.mxu0
    %v1482 = vadd.f32 0.0, %v1481
    %v1483 = vpop.f32.mrf.mxu0
    %1484 = vdwg.mxu0
    %v1485 = vadd.f32 %v464, %v1479
    %v1486 = vadd.f32 %v467, %v1482
    %v1487 = vmax.f32 %v1485, 0.0
    %v1488 = vmax.f32 %v1486, 0.0
    %1489 = vmatprep.subr.bf16.mxu0 0
    %1490 = vmatpush1.bf16.msra.mxu0 0
    %1491 = vmatprep.subr.bf16.mxu0 0
    %1492 = vmatpush1.bf16.msra.mxu0 0
    %1493 = vmatprep.subr.bf16.mxu0 0
    %1494 = vmatpush1.bf16.msra.mxu0 0
    %1495 = vmatprep.subr.bf16.mxu0 0
    %1496 = vmatpush1.bf16.msra.mxu0 0
    %1497 = vmatprep.subr.bf16.mxu0 0
    %1498 = vmatpush1.bf16.msra.mxu0 0
    %1499 = vmatprep.subr.bf16.mxu0 0
    %1500 = vmatpush1.bf16.msra.mxu0 0
    %1501 = vmatprep.subr.bf16.mxu0 0
    %1502 = vmatpush1.bf16.msra.mxu0 0
    %1503 = vmatprep.subr.bf16.mxu0 0
    %1504 = vmatpush1.bf16.msra.mxu0 %v587
    %1505 = vmatprep.subr.bf16.mxu0 0
    %1506 = vmatpush2.bf16.msra.mxu0 0
    %1507 = vmatprep.subr.bf16.mxu0 0
    %1508 = vmatpush2.bf16.msra.mxu0 0
    %1509 = vmatprep.subr.bf16.mxu0 0
    %1510 = vmatpush2.bf16.msra.mxu0 0
    %1511 = vmatprep.subr.bf16.mxu0 0
    %1512 = vmatpush2.bf16.msra.mxu0 0
    %1513 = vmatprep.subr.bf16.mxu0 0
    %1514 = vmatpush2.bf16.msra.mxu0 0
    %1515 = vmatprep.subr.bf16.mxu0 0
    %1516 = vmatpush2.bf16.msra.mxu0 0
    %1517 = vmatprep.subr.bf16.mxu0 0
    %1518 = vmatpush2.bf16.msra.mxu0 0
    %1519 = vmatprep.subr.bf16.mxu0 0
    %1520 = vmatpush2.bf16.msra.mxu0 0
    %1521 = vmatprep.mubr.bf16.mxu0 0
    %1522 = vmatmul.mubr.bf16.gmra.mxu0 %v1398
    %v1523 = vpop.f32.mrf.mxu0
    %v1524 = vadd.f32 0.0, %v1523
    %v1525 = vpop.f32.mrf.mxu0
    %v1526 = vpop.f32.mrf.mxu0
    %v1527 = vadd.f32 0.0, %v1526
    %v1528 = vpop.f32.mrf.mxu0
    %1529 = vdwg.mxu0
    %1532 = vrot.lane.b32.xlu0 %v1524, 16
    %v1533 = vpop.permute.xlu0 %1532
    %1534 = vrot.lane.b32.xlu0 %v1527, 16
    %v1535 = vpop.permute.xlu0 %1534
    %v1538 = vadd.f32 %v100, %v1533
    %v1539 = vadd.f32 %v103, %v1535
    %v1540 = vmax.f32 %v1538, 0.0
    %v1541 = vmax.f32 %v1539, 0.0
    %v1542 = vpack.c.bf16 %v1488, %v1487
    %v1543 = vpack.c.bf16 %v1541, %v1540
    %1545 = vrot.lane.b32.xlu0 %v1543, 112
    %v1546 = vpop.permute.xlu0 %1545
    %v1548 = vsel %vm61, %v1546, 0
    %1550 = vmatprep.subr.bf16.mxu0 0
    %1551 = vmatpush1.bf16.msra.mxu0 0
    %1552 = vmatprep.subr.bf16.mxu0 0
    %1553 = vmatpush1.bf16.msra.mxu0 0
    %1554 = vmatprep.subr.bf16.mxu0 0
    %1555 = vmatpush1.bf16.msra.mxu0 0
    %1556 = vmatprep.subr.bf16.mxu0 0
    %1557 = vmatpush1.bf16.msra.mxu0 0
    %1558 = vmatprep.subr.bf16.mxu0 0
    %1559 = vmatpush1.bf16.msra.mxu0 0
    %1560 = vmatprep.subr.bf16.mxu0 0
    %1561 = vmatpush1.bf16.msra.mxu0 0
    %1562 = vmatprep.subr.bf16.mxu0 0
    %1563 = vmatpush1.bf16.msra.mxu0 0
    %1564 = vmatprep.subr.bf16.mxu0 0
    %1565 = vmatpush1.bf16.msra.mxu0 %v483
    %1566 = vmatprep.subr.bf16.mxu0 0
    %1567 = vmatpush2.bf16.msra.mxu0 0
    %1568 = vmatprep.subr.bf16.mxu0 0
    %1569 = vmatpush2.bf16.msra.mxu0 0
    %1570 = vmatprep.subr.bf16.mxu0 0
    %1571 = vmatpush2.bf16.msra.mxu0 0
    %1572 = vmatprep.subr.bf16.mxu0 0
    %1573 = vmatpush2.bf16.msra.mxu0 0
    %1574 = vmatprep.subr.bf16.mxu0 0
    %1575 = vmatpush2.bf16.msra.mxu0 0
    %1576 = vmatprep.subr.bf16.mxu0 0
    %1577 = vmatpush2.bf16.msra.mxu0 0
    %1578 = vmatprep.subr.bf16.mxu0 0
    %1579 = vmatpush2.bf16.msra.mxu0 0
    %1580 = vmatprep.subr.bf16.mxu0 0
    %1581 = vmatpush2.bf16.msra.mxu0 0
    %1582 = vmatprep.mubr.bf16.mxu0 0
    %1583 = vmatmul.mubr.bf16.gmra.mxu0 %v1548
    %v1584 = vpop.f32.mrf.mxu0
    %v1585 = vadd.f32 0.0, %v1584
    %v1586 = vpop.f32.mrf.mxu0
    %v1587 = vpop.f32.mrf.mxu0
    %v1588 = vadd.f32 0.0, %v1587
    %v1589 = vpop.f32.mrf.mxu0
    %1590 = vdwg.mxu0
    %v1593 = vunpack.c.l.b16 %v28
    %v1594 = vunpack.c.l.b16 %v29
    %v1595 = vpack.c.b16 %v1594, %v1593
    %1597 = vmatprep.subr.bf16.mxu0 0
    %1598 = vmatpush1.bf16.msra.mxu0 0
    %1599 = vmatprep.subr.bf16.mxu0 0
    %1600 = vmatpush1.bf16.msra.mxu0 0
    %1601 = vmatprep.subr.bf16.mxu0 0
    %1602 = vmatpush1.bf16.msra.mxu0 0
    %1603 = vmatprep.subr.bf16.mxu0 0
    %1604 = vmatpush1.bf16.msra.mxu0 0
    %1605 = vmatprep.subr.bf16.mxu0 0
    %1606 = vmatpush1.bf16.msra.mxu0 0
    %1607 = vmatprep.subr.bf16.mxu0 0
    %1608 = vmatpush1.bf16.msra.mxu0 0
    %1609 = vmatprep.subr.bf16.mxu0 0
    %1610 = vmatpush1.bf16.msra.mxu0 0
    %1611 = vmatprep.subr.bf16.mxu0 0
    %1612 = vmatpush1.bf16.msra.mxu0 %v1595
    %1613 = vmatprep.subr.bf16.mxu0 0
    %1614 = vmatpush2.bf16.msra.mxu0 0
    %1615 = vmatprep.subr.bf16.mxu0 0
    %1616 = vmatpush2.bf16.msra.mxu0 0
    %1617 = vmatprep.subr.bf16.mxu0 0
    %1618 = vmatpush2.bf16.msra.mxu0 0
    %1619 = vmatprep.subr.bf16.mxu0 0
    %1620 = vmatpush2.bf16.msra.mxu0 0
    %1621 = vmatprep.subr.bf16.mxu0 0
    %1622 = vmatpush2.bf16.msra.mxu0 0
    %1623 = vmatprep.subr.bf16.mxu0 0
    %1624 = vmatpush2.bf16.msra.mxu0 0
    %1625 = vmatprep.subr.bf16.mxu0 0
    %1626 = vmatpush2.bf16.msra.mxu0 0
    %1627 = vmatprep.subr.bf16.mxu0 0
    %1628 = vmatpush2.bf16.msra.mxu0 0
    %1629 = vmatprep.mubr.bf16.mxu0 0
    %1630 = vmatmul.mubr.bf16.gmra.mxu0 %v486
    %v1631 = vpop.f32.mrf.mxu0
    %v1632 = vadd.f32 0.0, %v1631
    %v1633 = vpop.f32.mrf.mxu0
    %v1634 = vpop.f32.mrf.mxu0
    %v1635 = vadd.f32 0.0, %v1634
    %v1636 = vpop.f32.mrf.mxu0
    %1637 = vdwg.mxu0
    %v1640 = vunpack.c.l.b16 %v26
    %v1641 = vunpack.c.l.b16 %v27
    %v1642 = vpack.c.b16 %v1641, %v1640
    %v1645 = vsel %vm61, %v1542, 0
    %1647 = vmatprep.subr.bf16.mxu0 0
    %1648 = vmatpush1.bf16.msra.mxu0 0
    %1649 = vmatprep.subr.bf16.mxu0 0
    %1650 = vmatpush1.bf16.msra.mxu0 0
    %1651 = vmatprep.subr.bf16.mxu0 0
    %1652 = vmatpush1.bf16.msra.mxu0 0
    %1653 = vmatprep.subr.bf16.mxu0 0
    %1654 = vmatpush1.bf16.msra.mxu0 0
    %1655 = vmatprep.subr.bf16.mxu0 0
    %1656 = vmatpush1.bf16.msra.mxu0 0
    %1657 = vmatprep.subr.bf16.mxu0 0
    %1658 = vmatpush1.bf16.msra.mxu0 0
    %1659 = vmatprep.subr.bf16.mxu0 0
    %1660 = vmatpush1.bf16.msra.mxu0 0
    %1661 = vmatprep.subr.bf16.mxu0 0
    %1662 = vmatpush1.bf16.msra.mxu0 %v1642
    %1663 = vmatprep.subr.bf16.mxu0 0
    %1664 = vmatpush2.bf16.msra.mxu0 0
    %1665 = vmatprep.subr.bf16.mxu0 0
    %1666 = vmatpush2.bf16.msra.mxu0 0
    %1667 = vmatprep.subr.bf16.mxu0 0
    %1668 = vmatpush2.bf16.msra.mxu0 0
    %1669 = vmatprep.subr.bf16.mxu0 0
    %1670 = vmatpush2.bf16.msra.mxu0 0
    %1671 = vmatprep.subr.bf16.mxu0 0
    %1672 = vmatpush2.bf16.msra.mxu0 0
    %1673 = vmatprep.subr.bf16.mxu0 0
    %1674 = vmatpush2.bf16.msra.mxu0 0
    %1675 = vmatprep.subr.bf16.mxu0 0
    %1676 = vmatpush2.bf16.msra.mxu0 0
    %1677 = vmatprep.subr.bf16.mxu0 0
    %1678 = vmatpush2.bf16.msra.mxu0 0
    %1679 = vmatprep.mubr.bf16.mxu0 0
    %1680 = vmatmul.mubr.bf16.gmra.mxu0 %v1645
    %v1681 = vpop.f32.mrf.mxu0
    %v1682 = vadd.f32 %v1632, %v1681
    %v1683 = vpop.f32.mrf.mxu0
    %v1684 = vpop.f32.mrf.mxu0
    %v1685 = vadd.f32 %v1635, %v1684
    %v1686 = vpop.f32.mrf.mxu0
    %1687 = vdwg.mxu0
    %v1688 = vlaneseq
    %v1689 = vshrl.u32 %v1688, 7
    %v1690 = vsub.s32 0, %v1689
    %v1691 = vrot.slane %v41, %v1690
    %1693 = vrot.lane.b32.xlu0 %v1691, 112
    %v1694 = vpop.permute.xlu0 %1693
    %v1696 = vadd.f32 %v1682, %v1694
    %v1697 = vadd.f32 %v1685, %v1694
    %v1698 = vmax.f32 %v1696, 0.0
    %v1699 = vmax.f32 %v1697, 0.0
    %v1700 = vpack.c.bf16 %v1699, %v1698
    %v1703 = vunpack.c.l.b16 %v34
    %v1704 = vunpack.c.l.b16 %v35
    %v1705 = vpack.c.b16 %v1704, %v1703
    %v1708 = vsel %vm61, %v1700, 0
    %1710 = vmatprep.subr.bf16.mxu0 0
    %1711 = vmatpush1.bf16.msra.mxu0 0
    %1712 = vmatprep.subr.bf16.mxu0 0
    %1713 = vmatpush1.bf16.msra.mxu0 0
    %1714 = vmatprep.subr.bf16.mxu0 0
    %1715 = vmatpush1.bf16.msra.mxu0 0
    %1716 = vmatprep.subr.bf16.mxu0 0
    %1717 = vmatpush1.bf16.msra.mxu0 0
    %1718 = vmatprep.subr.bf16.mxu0 0
    %1719 = vmatpush1.bf16.msra.mxu0 0
    %1720 = vmatprep.subr.bf16.mxu0 0
    %1721 = vmatpush1.bf16.msra.mxu0 0
    %1722 = vmatprep.subr.bf16.mxu0 0
    %1723 = vmatpush1.bf16.msra.mxu0 0
    %1724 = vmatprep.subr.bf16.mxu0 0
    %1725 = vmatpush1.bf16.msra.mxu0 %v1705
    %1726 = vmatprep.subr.bf16.mxu0 0
    %1727 = vmatpush2.bf16.msra.mxu0 0
    %1728 = vmatprep.subr.bf16.mxu0 0
    %1729 = vmatpush2.bf16.msra.mxu0 0
    %1730 = vmatprep.subr.bf16.mxu0 0
    %1731 = vmatpush2.bf16.msra.mxu0 0
    %1732 = vmatprep.subr.bf16.mxu0 0
    %1733 = vmatpush2.bf16.msra.mxu0 0
    %1734 = vmatprep.subr.bf16.mxu0 0
    %1735 = vmatpush2.bf16.msra.mxu0 0
    %1736 = vmatprep.subr.bf16.mxu0 0
    %1737 = vmatpush2.bf16.msra.mxu0 0
    %1738 = vmatprep.subr.bf16.mxu0 0
    %1739 = vmatpush2.bf16.msra.mxu0 0
    %1740 = vmatprep.subr.bf16.mxu0 0
    %1741 = vmatpush2.bf16.msra.mxu0 0
    %1742 = vmatprep.mubr.bf16.mxu0 0
    %1743 = vmatmul.mubr.bf16.gmra.mxu0 %v1708
    %v1744 = vpop.f32.mrf.mxu0
    %v1745 = vadd.f32 0.0, %v1744
    %v1746 = vpop.f32.mrf.mxu0
    %v1747 = vpop.f32.mrf.mxu0
    %v1748 = vadd.f32 0.0, %v1747
    %v1749 = vpop.f32.mrf.mxu0
    %1750 = vdwg.mxu0
    %v1753 = vunpack.c.l.b16 %v22
    %v1754 = vunpack.c.l.b16 %v23
    %v1755 = vpack.c.b16 %v1754, %v1753
    %1757 = vmatprep.subr.bf16.mxu0 0
    %1758 = vmatpush1.bf16.msra.mxu0 0
    %1759 = vmatprep.subr.bf16.mxu0 0
    %1760 = vmatpush1.bf16.msra.mxu0 0
    %1761 = vmatprep.subr.bf16.mxu0 0
    %1762 = vmatpush1.bf16.msra.mxu0 0
    %1763 = vmatprep.subr.bf16.mxu0 0
    %1764 = vmatpush1.bf16.msra.mxu0 0
    %1765 = vmatprep.subr.bf16.mxu0 0
    %1766 = vmatpush1.bf16.msra.mxu0 0
    %1767 = vmatprep.subr.bf16.mxu0 0
    %1768 = vmatpush1.bf16.msra.mxu0 0
    %1769 = vmatprep.subr.bf16.mxu0 0
    %1770 = vmatpush1.bf16.msra.mxu0 0
    %1771 = vmatprep.subr.bf16.mxu0 0
    %1772 = vmatpush1.bf16.msra.mxu0 %v1755
    %1773 = vmatprep.subr.bf16.mxu0 0
    %1774 = vmatpush2.bf16.msra.mxu0 0
    %1775 = vmatprep.subr.bf16.mxu0 0
    %1776 = vmatpush2.bf16.msra.mxu0 0
    %1777 = vmatprep.subr.bf16.mxu0 0
    %1778 = vmatpush2.bf16.msra.mxu0 0
    %1779 = vmatprep.subr.bf16.mxu0 0
    %1780 = vmatpush2.bf16.msra.mxu0 0
    %1781 = vmatprep.subr.bf16.mxu0 0
    %1782 = vmatpush2.bf16.msra.mxu0 0
    %1783 = vmatprep.subr.bf16.mxu0 0
    %1784 = vmatpush2.bf16.msra.mxu0 0
    %1785 = vmatprep.subr.bf16.mxu0 0
    %1786 = vmatpush2.bf16.msra.mxu0 0
    %1787 = vmatprep.subr.bf16.mxu0 0
    %1788 = vmatpush2.bf16.msra.mxu0 0
    %1789 = vmatprep.mubr.bf16.mxu0 0
    %1790 = vmatmul.mubr.bf16.gmra.mxu0 %v536
    %v1791 = vpop.f32.mrf.mxu0
    %v1792 = vadd.f32 %v1585, %v1791
    %v1793 = vpop.f32.mrf.mxu0
    %v1794 = vpop.f32.mrf.mxu0
    %v1795 = vadd.f32 %v1588, %v1794
    %v1796 = vpop.f32.mrf.mxu0
    %1797 = vdwg.mxu0
    %v1798 = vadd.f32 %v1792, %v1691
    %v1799 = vadd.f32 %v1795, %v1691
    %v1800 = vmax.f32 %v1798, 0.0
    %v1801 = vmax.f32 %v1799, 0.0
    %1802 = vmatprep.subr.bf16.mxu0 0
    %1803 = vmatpush1.bf16.msra.mxu0 0
    %1804 = vmatprep.subr.bf16.mxu0 0
    %1805 = vmatpush1.bf16.msra.mxu0 0
    %1806 = vmatprep.subr.bf16.mxu0 0
    %1807 = vmatpush1.bf16.msra.mxu0 0
    %1808 = vmatprep.subr.bf16.mxu0 0
    %1809 = vmatpush1.bf16.msra.mxu0 0
    %1810 = vmatprep.subr.bf16.mxu0 0
    %1811 = vmatpush1.bf16.msra.mxu0 0
    %1812 = vmatprep.subr.bf16.mxu0 0
    %1813 = vmatpush1.bf16.msra.mxu0 0
    %1814 = vmatprep.subr.bf16.mxu0 0
    %1815 = vmatpush1.bf16.msra.mxu0 0
    %1816 = vmatprep.subr.bf16.mxu0 0
    %1817 = vmatpush1.bf16.msra.mxu0 %v1755
    %1818 = vmatprep.subr.bf16.mxu0 0
    %1819 = vmatpush2.bf16.msra.mxu0 0
    %1820 = vmatprep.subr.bf16.mxu0 0
    %1821 = vmatpush2.bf16.msra.mxu0 0
    %1822 = vmatprep.subr.bf16.mxu0 0
    %1823 = vmatpush2.bf16.msra.mxu0 0
    %1824 = vmatprep.subr.bf16.mxu0 0
    %1825 = vmatpush2.bf16.msra.mxu0 0
    %1826 = vmatprep.subr.bf16.mxu0 0
    %1827 = vmatpush2.bf16.msra.mxu0 0
    %1828 = vmatprep.subr.bf16.mxu0 0
    %1829 = vmatpush2.bf16.msra.mxu0 0
    %1830 = vmatprep.subr.bf16.mxu0 0
    %1831 = vmatpush2.bf16.msra.mxu0 0
    %1832 = vmatprep.subr.bf16.mxu0 0
    %1833 = vmatpush2.bf16.msra.mxu0 0
    %1834 = vmatprep.mubr.bf16.mxu0 0
    %1835 = vmatmul.mubr.bf16.gmra.mxu0 %v692
    %v1836 = vpop.f32.mrf.mxu0
    %v1837 = vadd.f32 %v1435, %v1836
    %v1838 = vpop.f32.mrf.mxu0
    %v1839 = vpop.f32.mrf.mxu0
    %v1840 = vadd.f32 %v1438, %v1839
    %v1841 = vpop.f32.mrf.mxu0
    %1842 = vdwg.mxu0
    %v1843 = vadd.f32 %v1837, %v1691
    %v1844 = vadd.f32 %v1840, %v1691
    %v1845 = vpack.c.bf16 %v1801, %v1800
    %v1848 = vunpack.c.l.b16 %v30
    %v1849 = vunpack.c.l.b16 %v31
    %v1850 = vpack.c.b16 %v1849, %v1848
    %v1853 = vsel %vm61, %v1845, 0
    %1855 = vmatprep.subr.bf16.mxu0 0
    %1856 = vmatpush1.bf16.msra.mxu0 0
    %1857 = vmatprep.subr.bf16.mxu0 0
    %1858 = vmatpush1.bf16.msra.mxu0 0
    %1859 = vmatprep.subr.bf16.mxu0 0
    %1860 = vmatpush1.bf16.msra.mxu0 0
    %1861 = vmatprep.subr.bf16.mxu0 0
    %1862 = vmatpush1.bf16.msra.mxu0 0
    %1863 = vmatprep.subr.bf16.mxu0 0
    %1864 = vmatpush1.bf16.msra.mxu0 0
    %1865 = vmatprep.subr.bf16.mxu0 0
    %1866 = vmatpush1.bf16.msra.mxu0 0
    %1867 = vmatprep.subr.bf16.mxu0 0
    %1868 = vmatpush1.bf16.msra.mxu0 0
    %1869 = vmatprep.subr.bf16.mxu0 0
    %1870 = vmatpush1.bf16.msra.mxu0 %v1850
    %1871 = vmatprep.subr.bf16.mxu0 0
    %1872 = vmatpush2.bf16.msra.mxu0 0
    %1873 = vmatprep.subr.bf16.mxu0 0
    %1874 = vmatpush2.bf16.msra.mxu0 0
    %1875 = vmatprep.subr.bf16.mxu0 0
    %1876 = vmatpush2.bf16.msra.mxu0 0
    %1877 = vmatprep.subr.bf16.mxu0 0
    %1878 = vmatpush2.bf16.msra.mxu0 0
    %1879 = vmatprep.subr.bf16.mxu0 0
    %1880 = vmatpush2.bf16.msra.mxu0 0
    %1881 = vmatprep.subr.bf16.mxu0 0
    %1882 = vmatpush2.bf16.msra.mxu0 0
    %1883 = vmatprep.subr.bf16.mxu0 0
    %1884 = vmatpush2.bf16.msra.mxu0 0
    %1885 = vmatprep.subr.bf16.mxu0 0
    %1886 = vmatpush2.bf16.msra.mxu0 0
    %1887 = vmatprep.mubr.bf16.mxu0 0
    %1888 = vmatmul.mubr.bf16.gmra.mxu0 %v1853
    %v1889 = vpop.f32.mrf.mxu0
    %v1890 = vadd.f32 0.0, %v1889
    %v1891 = vpop.f32.mrf.mxu0
    %v1892 = vpop.f32.mrf.mxu0
    %v1893 = vadd.f32 0.0, %v1892
    %v1894 = vpop.f32.mrf.mxu0
    %1895 = vdwg.mxu0
    %v1896 = vadd.f32 %v1843, %v1890
    %v1897 = vadd.f32 %v1844, %v1893
    %v1898 = vmax.f32 %v1896, 0.0
    %v1899 = vmax.f32 %v1897, 0.0
    %1900 = vmatprep.subr.bf16.mxu0 0
    %1901 = vmatpush1.bf16.msra.mxu0 0
    %1902 = vmatprep.subr.bf16.mxu0 0
    %1903 = vmatpush1.bf16.msra.mxu0 0
    %1904 = vmatprep.subr.bf16.mxu0 0
    %1905 = vmatpush1.bf16.msra.mxu0 0
    %1906 = vmatprep.subr.bf16.mxu0 0
    %1907 = vmatpush1.bf16.msra.mxu0 0
    %1908 = vmatprep.subr.bf16.mxu0 0
    %1909 = vmatpush1.bf16.msra.mxu0 0
    %1910 = vmatprep.subr.bf16.mxu0 0
    %1911 = vmatpush1.bf16.msra.mxu0 0
    %1912 = vmatprep.subr.bf16.mxu0 0
    %1913 = vmatpush1.bf16.msra.mxu0 0
    %1914 = vmatprep.subr.bf16.mxu0 0
    %1915 = vmatpush1.bf16.msra.mxu0 %v1755
    %1916 = vmatprep.subr.bf16.mxu0 0
    %1917 = vmatpush2.bf16.msra.mxu0 0
    %1918 = vmatprep.subr.bf16.mxu0 0
    %1919 = vmatpush2.bf16.msra.mxu0 0
    %1920 = vmatprep.subr.bf16.mxu0 0
    %1921 = vmatpush2.bf16.msra.mxu0 0
    %1922 = vmatprep.subr.bf16.mxu0 0
    %1923 = vmatpush2.bf16.msra.mxu0 0
    %1924 = vmatprep.subr.bf16.mxu0 0
    %1925 = vmatpush2.bf16.msra.mxu0 0
    %1926 = vmatprep.subr.bf16.mxu0 0
    %1927 = vmatpush2.bf16.msra.mxu0 0
    %1928 = vmatprep.subr.bf16.mxu0 0
    %1929 = vmatpush2.bf16.msra.mxu0 0
    %1930 = vmatprep.subr.bf16.mxu0 0
    %1931 = vmatpush2.bf16.msra.mxu0 0
    %1932 = vmatprep.mubr.bf16.mxu0 0
    %1933 = vmatmul.mubr.bf16.gmra.mxu0 %v842
    %v1934 = vpop.f32.mrf.mxu0
    %v1935 = vadd.f32 %v1285, %v1934
    %v1936 = vpop.f32.mrf.mxu0
    %v1937 = vpop.f32.mrf.mxu0
    %v1938 = vadd.f32 %v1288, %v1937
    %v1939 = vpop.f32.mrf.mxu0
    %1940 = vdwg.mxu0
    %v1941 = vadd.f32 %v1935, %v1691
    %v1942 = vadd.f32 %v1938, %v1691
    %v1943 = vpack.c.bf16 %v1899, %v1898
    %v1945 = vsel %vm61, %v1943, 0
    %1947 = vmatprep.subr.bf16.mxu0 0
    %1948 = vmatpush1.bf16.msra.mxu0 0
    %1949 = vmatprep.subr.bf16.mxu0 0
    %1950 = vmatpush1.bf16.msra.mxu0 0
    %1951 = vmatprep.subr.bf16.mxu0 0
    %1952 = vmatpush1.bf16.msra.mxu0 0
    %1953 = vmatprep.subr.bf16.mxu0 0
    %1954 = vmatpush1.bf16.msra.mxu0 0
    %1955 = vmatprep.subr.bf16.mxu0 0
    %1956 = vmatpush1.bf16.msra.mxu0 0
    %1957 = vmatprep.subr.bf16.mxu0 0
    %1958 = vmatpush1.bf16.msra.mxu0 0
    %1959 = vmatprep.subr.bf16.mxu0 0
    %1960 = vmatpush1.bf16.msra.mxu0 0
    %1961 = vmatprep.subr.bf16.mxu0 0
    %1962 = vmatpush1.bf16.msra.mxu0 %v1850
    %1963 = vmatprep.subr.bf16.mxu0 0
    %1964 = vmatpush2.bf16.msra.mxu0 0
    %1965 = vmatprep.subr.bf16.mxu0 0
    %1966 = vmatpush2.bf16.msra.mxu0 0
    %1967 = vmatprep.subr.bf16.mxu0 0
    %1968 = vmatpush2.bf16.msra.mxu0 0
    %1969 = vmatprep.subr.bf16.mxu0 0
    %1970 = vmatpush2.bf16.msra.mxu0 0
    %1971 = vmatprep.subr.bf16.mxu0 0
    %1972 = vmatpush2.bf16.msra.mxu0 0
    %1973 = vmatprep.subr.bf16.mxu0 0
    %1974 = vmatpush2.bf16.msra.mxu0 0
    %1975 = vmatprep.subr.bf16.mxu0 0
    %1976 = vmatpush2.bf16.msra.mxu0 0
    %1977 = vmatprep.subr.bf16.mxu0 0
    %1978 = vmatpush2.bf16.msra.mxu0 0
    %1979 = vmatprep.mubr.bf16.mxu0 0
    %1980 = vmatmul.mubr.bf16.gmra.mxu0 %v1945
    %v1981 = vpop.f32.mrf.mxu0
    %v1982 = vadd.f32 0.0, %v1981
    %v1983 = vpop.f32.mrf.mxu0
    %v1984 = vpop.f32.mrf.mxu0
    %v1985 = vadd.f32 0.0, %v1984
    %v1986 = vpop.f32.mrf.mxu0
    %1987 = vdwg.mxu0
    %v1988 = vadd.f32 %v1941, %v1982
    %v1989 = vadd.f32 %v1942, %v1985
    %v1990 = vmax.f32 %v1988, 0.0
    %v1991 = vmax.f32 %v1989, 0.0
    %1992 = vmatprep.subr.bf16.mxu0 0
    %1993 = vmatpush1.bf16.msra.mxu0 0
    %1994 = vmatprep.subr.bf16.mxu0 0
    %1995 = vmatpush1.bf16.msra.mxu0 0
    %1996 = vmatprep.subr.bf16.mxu0 0
    %1997 = vmatpush1.bf16.msra.mxu0 0
    %1998 = vmatprep.subr.bf16.mxu0 0
    %1999 = vmatpush1.bf16.msra.mxu0 0
    %2000 = vmatprep.subr.bf16.mxu0 0
    %2001 = vmatpush1.bf16.msra.mxu0 0
    %2002 = vmatprep.subr.bf16.mxu0 0
    %2003 = vmatpush1.bf16.msra.mxu0 0
    %2004 = vmatprep.subr.bf16.mxu0 0
    %2005 = vmatpush1.bf16.msra.mxu0 0
    %2006 = vmatprep.subr.bf16.mxu0 0
    %2007 = vmatpush1.bf16.msra.mxu0 %v1755
    %2008 = vmatprep.subr.bf16.mxu0 0
    %2009 = vmatpush2.bf16.msra.mxu0 0
    %2010 = vmatprep.subr.bf16.mxu0 0
    %2011 = vmatpush2.bf16.msra.mxu0 0
    %2012 = vmatprep.subr.bf16.mxu0 0
    %2013 = vmatpush2.bf16.msra.mxu0 0
    %2014 = vmatprep.subr.bf16.mxu0 0
    %2015 = vmatpush2.bf16.msra.mxu0 0
    %2016 = vmatprep.subr.bf16.mxu0 0
    %2017 = vmatpush2.bf16.msra.mxu0 0
    %2018 = vmatprep.subr.bf16.mxu0 0
    %2019 = vmatpush2.bf16.msra.mxu0 0
    %2020 = vmatprep.subr.bf16.mxu0 0
    %2021 = vmatpush2.bf16.msra.mxu0 0
    %2022 = vmatprep.subr.bf16.mxu0 0
    %2023 = vmatpush2.bf16.msra.mxu0 0
    %2024 = vmatprep.mubr.bf16.mxu0 0
    %2025 = vmatmul.mubr.bf16.gmra.mxu0 %v992
    %v2026 = vpop.f32.mrf.mxu0
    %v2027 = vadd.f32 %v1135, %v2026
    %v2028 = vpop.f32.mrf.mxu0
    %v2029 = vpop.f32.mrf.mxu0
    %v2030 = vadd.f32 %v1138, %v2029
    %v2031 = vpop.f32.mrf.mxu0
    %2032 = vdwg.mxu0
    %v2033 = vadd.f32 %v2027, %v1691
    %v2034 = vadd.f32 %v2030, %v1691
    %v2035 = vpack.c.bf16 %v1991, %v1990
    %v2037 = vsel %vm61, %v2035, 0
    %2039 = vmatprep.subr.bf16.mxu0 0
    %2040 = vmatpush1.bf16.msra.mxu0 0
    %2041 = vmatprep.subr.bf16.mxu0 0
    %2042 = vmatpush1.bf16.msra.mxu0 0
    %2043 = vmatprep.subr.bf16.mxu0 0
    %2044 = vmatpush1.bf16.msra.mxu0 0
    %2045 = vmatprep.subr.bf16.mxu0 0
    %2046 = vmatpush1.bf16.msra.mxu0 0
    %2047 = vmatprep.subr.bf16.mxu0 0
    %2048 = vmatpush1.bf16.msra.mxu0 0
    %2049 = vmatprep.subr.bf16.mxu0 0
    %2050 = vmatpush1.bf16.msra.mxu0 0
    %2051 = vmatprep.subr.bf16.mxu0 0
    %2052 = vmatpush1.bf16.msra.mxu0 0
    %2053 = vmatprep.subr.bf16.mxu0 0
    %2054 = vmatpush1.bf16.msra.mxu0 %v1850
    %2055 = vmatprep.subr.bf16.mxu0 0
    %2056 = vmatpush2.bf16.msra.mxu0 0
    %2057 = vmatprep.subr.bf16.mxu0 0
    %2058 = vmatpush2.bf16.msra.mxu0 0
    %2059 = vmatprep.subr.bf16.mxu0 0
    %2060 = vmatpush2.bf16.msra.mxu0 0
    %2061 = vmatprep.subr.bf16.mxu0 0
    %2062 = vmatpush2.bf16.msra.mxu0 0
    %2063 = vmatprep.subr.bf16.mxu0 0
    %2064 = vmatpush2.bf16.msra.mxu0 0
    %2065 = vmatprep.subr.bf16.mxu0 0
    %2066 = vmatpush2.bf16.msra.mxu0 0
    %2067 = vmatprep.subr.bf16.mxu0 0
    %2068 = vmatpush2.bf16.msra.mxu0 0
    %2069 = vmatprep.subr.bf16.mxu0 0
    %2070 = vmatpush2.bf16.msra.mxu0 0
    %2071 = vmatprep.mubr.bf16.mxu0 0
    %2072 = vmatmul.mubr.bf16.gmra.mxu0 %v2037
    %v2073 = vpop.f32.mrf.mxu0
    %v2074 = vadd.f32 0.0, %v2073
    %v2075 = vpop.f32.mrf.mxu0
    %v2076 = vpop.f32.mrf.mxu0
    %v2077 = vadd.f32 0.0, %v2076
    %v2078 = vpop.f32.mrf.mxu0
    %2079 = vdwg.mxu0
    %v2080 = vadd.f32 %v2033, %v2074
    %v2081 = vadd.f32 %v2034, %v2077
    %v2082 = vmax.f32 %v2080, 0.0
    %v2083 = vmax.f32 %v2081, 0.0
    %2084 = vmatprep.subr.bf16.mxu0 0
    %2085 = vmatpush1.bf16.msra.mxu0 0
    %2086 = vmatprep.subr.bf16.mxu0 0
    %2087 = vmatpush1.bf16.msra.mxu0 0
    %2088 = vmatprep.subr.bf16.mxu0 0
    %2089 = vmatpush1.bf16.msra.mxu0 0
    %2090 = vmatprep.subr.bf16.mxu0 0
    %2091 = vmatpush1.bf16.msra.mxu0 0
    %2092 = vmatprep.subr.bf16.mxu0 0
    %2093 = vmatpush1.bf16.msra.mxu0 0
    %2094 = vmatprep.subr.bf16.mxu0 0
    %2095 = vmatpush1.bf16.msra.mxu0 0
    %2096 = vmatprep.subr.bf16.mxu0 0
    %2097 = vmatpush1.bf16.msra.mxu0 0
    %2098 = vmatprep.subr.bf16.mxu0 0
    %2099 = vmatpush1.bf16.msra.mxu0 %v1755
    %2100 = vmatprep.subr.bf16.mxu0 0
    %2101 = vmatpush2.bf16.msra.mxu0 0
    %2102 = vmatprep.subr.bf16.mxu0 0
    %2103 = vmatpush2.bf16.msra.mxu0 0
    %2104 = vmatprep.subr.bf16.mxu0 0
    %2105 = vmatpush2.bf16.msra.mxu0 0
    %2106 = vmatprep.subr.bf16.mxu0 0
    %2107 = vmatpush2.bf16.msra.mxu0 0
    %2108 = vmatprep.subr.bf16.mxu0 0
    %2109 = vmatpush2.bf16.msra.mxu0 0
    %2110 = vmatprep.subr.bf16.mxu0 0
    %2111 = vmatpush2.bf16.msra.mxu0 0
    %2112 = vmatprep.subr.bf16.mxu0 0
    %2113 = vmatpush2.bf16.msra.mxu0 0
    %2114 = vmatprep.subr.bf16.mxu0 0
    %2115 = vmatpush2.bf16.msra.mxu0 0
    %2116 = vmatprep.mubr.bf16.mxu0 0
    %2117 = vmatmul.mubr.bf16.gmra.mxu0 %v1142
    %v2118 = vpop.f32.mrf.mxu0
    %v2119 = vadd.f32 %v985, %v2118
    %v2120 = vpop.f32.mrf.mxu0
    %v2121 = vpop.f32.mrf.mxu0
    %v2122 = vadd.f32 %v988, %v2121
    %v2123 = vpop.f32.mrf.mxu0
    %2124 = vdwg.mxu0
    %v2125 = vadd.f32 %v2119, %v1691
    %v2126 = vadd.f32 %v2122, %v1691
    %v2127 = vpack.c.bf16 %v2083, %v2082
    %v2129 = vsel %vm61, %v2127, 0
    %2131 = vmatprep.subr.bf16.mxu0 0
    %2132 = vmatpush1.bf16.msra.mxu0 0
    %2133 = vmatprep.subr.bf16.mxu0 0
    %2134 = vmatpush1.bf16.msra.mxu0 0
    %2135 = vmatprep.subr.bf16.mxu0 0
    %2136 = vmatpush1.bf16.msra.mxu0 0
    %2137 = vmatprep.subr.bf16.mxu0 0
    %2138 = vmatpush1.bf16.msra.mxu0 0
    %2139 = vmatprep.subr.bf16.mxu0 0
    %2140 = vmatpush1.bf16.msra.mxu0 0
    %2141 = vmatprep.subr.bf16.mxu0 0
    %2142 = vmatpush1.bf16.msra.mxu0 0
    %2143 = vmatprep.subr.bf16.mxu0 0
    %2144 = vmatpush1.bf16.msra.mxu0 0
    %2145 = vmatprep.subr.bf16.mxu0 0
    %2146 = vmatpush1.bf16.msra.mxu0 %v1850
    %2147 = vmatprep.subr.bf16.mxu0 0
    %2148 = vmatpush2.bf16.msra.mxu0 0
    %2149 = vmatprep.subr.bf16.mxu0 0
    %2150 = vmatpush2.bf16.msra.mxu0 0
    %2151 = vmatprep.subr.bf16.mxu0 0
    %2152 = vmatpush2.bf16.msra.mxu0 0
    %2153 = vmatprep.subr.bf16.mxu0 0
    %2154 = vmatpush2.bf16.msra.mxu0 0
    %2155 = vmatprep.subr.bf16.mxu0 0
    %2156 = vmatpush2.bf16.msra.mxu0 0
    %2157 = vmatprep.subr.bf16.mxu0 0
    %2158 = vmatpush2.bf16.msra.mxu0 0
    %2159 = vmatprep.subr.bf16.mxu0 0
    %2160 = vmatpush2.bf16.msra.mxu0 0
    %2161 = vmatprep.subr.bf16.mxu0 0
    %2162 = vmatpush2.bf16.msra.mxu0 0
    %2163 = vmatprep.mubr.bf16.mxu0 0
    %2164 = vmatmul.mubr.bf16.gmra.mxu0 %v2129
    %v2165 = vpop.f32.mrf.mxu0
    %v2166 = vadd.f32 0.0, %v2165
    %v2167 = vpop.f32.mrf.mxu0
    %v2168 = vpop.f32.mrf.mxu0
    %v2169 = vadd.f32 0.0, %v2168
    %v2170 = vpop.f32.mrf.mxu0
    %2171 = vdwg.mxu0
    %v2172 = vadd.f32 %v2125, %v2166
    %v2173 = vadd.f32 %v2126, %v2169
    %v2174 = vmax.f32 %v2172, 0.0
    %v2175 = vmax.f32 %v2173, 0.0
    %2176 = vmatprep.subr.bf16.mxu0 0
    %2177 = vmatpush1.bf16.msra.mxu0 0
    %2178 = vmatprep.subr.bf16.mxu0 0
    %2179 = vmatpush1.bf16.msra.mxu0 0
    %2180 = vmatprep.subr.bf16.mxu0 0
    %2181 = vmatpush1.bf16.msra.mxu0 0
    %2182 = vmatprep.subr.bf16.mxu0 0
    %2183 = vmatpush1.bf16.msra.mxu0 0
    %2184 = vmatprep.subr.bf16.mxu0 0
    %2185 = vmatpush1.bf16.msra.mxu0 0
    %2186 = vmatprep.subr.bf16.mxu0 0
    %2187 = vmatpush1.bf16.msra.mxu0 0
    %2188 = vmatprep.subr.bf16.mxu0 0
    %2189 = vmatpush1.bf16.msra.mxu0 0
    %2190 = vmatprep.subr.bf16.mxu0 0
    %2191 = vmatpush1.bf16.msra.mxu0 %v1755
    %2192 = vmatprep.subr.bf16.mxu0 0
    %2193 = vmatpush2.bf16.msra.mxu0 0
    %2194 = vmatprep.subr.bf16.mxu0 0
    %2195 = vmatpush2.bf16.msra.mxu0 0
    %2196 = vmatprep.subr.bf16.mxu0 0
    %2197 = vmatpush2.bf16.msra.mxu0 0
    %2198 = vmatprep.subr.bf16.mxu0 0
    %2199 = vmatpush2.bf16.msra.mxu0 0
    %2200 = vmatprep.subr.bf16.mxu0 0
    %2201 = vmatpush2.bf16.msra.mxu0 0
    %2202 = vmatprep.subr.bf16.mxu0 0
    %2203 = vmatpush2.bf16.msra.mxu0 0
    %2204 = vmatprep.subr.bf16.mxu0 0
    %2205 = vmatpush2.bf16.msra.mxu0 0
    %2206 = vmatprep.subr.bf16.mxu0 0
    %2207 = vmatpush2.bf16.msra.mxu0 0
    %2208 = vmatprep.mubr.bf16.mxu0 0
    %2209 = vmatmul.mubr.bf16.gmra.mxu0 %v1292
    %v2210 = vpop.f32.mrf.mxu0
    %v2211 = vadd.f32 %v835, %v2210
    %v2212 = vpop.f32.mrf.mxu0
    %v2213 = vpop.f32.mrf.mxu0
    %v2214 = vadd.f32 %v838, %v2213
    %v2215 = vpop.f32.mrf.mxu0
    %2216 = vdwg.mxu0
    %v2217 = vadd.f32 %v2211, %v1691
    %v2218 = vadd.f32 %v2214, %v1691
    %v2219 = vpack.c.bf16 %v2175, %v2174
    %v2221 = vsel %vm61, %v2219, 0
    %2223 = vmatprep.subr.bf16.mxu0 0
    %2224 = vmatpush1.bf16.msra.mxu0 0
    %2225 = vmatprep.subr.bf16.mxu0 0
    %2226 = vmatpush1.bf16.msra.mxu0 0
    %2227 = vmatprep.subr.bf16.mxu0 0
    %2228 = vmatpush1.bf16.msra.mxu0 0
    %2229 = vmatprep.subr.bf16.mxu0 0
    %2230 = vmatpush1.bf16.msra.mxu0 0
    %2231 = vmatprep.subr.bf16.mxu0 0
    %2232 = vmatpush1.bf16.msra.mxu0 0
    %2233 = vmatprep.subr.bf16.mxu0 0
    %2234 = vmatpush1.bf16.msra.mxu0 0
    %2235 = vmatprep.subr.bf16.mxu0 0
    %2236 = vmatpush1.bf16.msra.mxu0 0
    %2237 = vmatprep.subr.bf16.mxu0 0
    %2238 = vmatpush1.bf16.msra.mxu0 %v1850
    %2239 = vmatprep.subr.bf16.mxu0 0
    %2240 = vmatpush2.bf16.msra.mxu0 0
    %2241 = vmatprep.subr.bf16.mxu0 0
    %2242 = vmatpush2.bf16.msra.mxu0 0
    %2243 = vmatprep.subr.bf16.mxu0 0
    %2244 = vmatpush2.bf16.msra.mxu0 0
    %2245 = vmatprep.subr.bf16.mxu0 0
    %2246 = vmatpush2.bf16.msra.mxu0 0
    %2247 = vmatprep.subr.bf16.mxu0 0
    %2248 = vmatpush2.bf16.msra.mxu0 0
    %2249 = vmatprep.subr.bf16.mxu0 0
    %2250 = vmatpush2.bf16.msra.mxu0 0
    %2251 = vmatprep.subr.bf16.mxu0 0
    %2252 = vmatpush2.bf16.msra.mxu0 0
    %2253 = vmatprep.subr.bf16.mxu0 0
    %2254 = vmatpush2.bf16.msra.mxu0 0
    %2255 = vmatprep.mubr.bf16.mxu0 0
    %2256 = vmatmul.mubr.bf16.gmra.mxu0 %v2221
    %v2257 = vpop.f32.mrf.mxu0
    %v2258 = vadd.f32 0.0, %v2257
    %v2259 = vpop.f32.mrf.mxu0
    %v2260 = vpop.f32.mrf.mxu0
    %v2261 = vadd.f32 0.0, %v2260
    %v2262 = vpop.f32.mrf.mxu0
    %2263 = vdwg.mxu0
    %v2264 = vadd.f32 %v2217, %v2258
    %v2265 = vadd.f32 %v2218, %v2261
    %v2266 = vmax.f32 %v2264, 0.0
    %v2267 = vmax.f32 %v2265, 0.0
    %2268 = vmatprep.subr.bf16.mxu0 0
    %2269 = vmatpush1.bf16.msra.mxu0 0
    %2270 = vmatprep.subr.bf16.mxu0 0
    %2271 = vmatpush1.bf16.msra.mxu0 0
    %2272 = vmatprep.subr.bf16.mxu0 0
    %2273 = vmatpush1.bf16.msra.mxu0 0
    %2274 = vmatprep.subr.bf16.mxu0 0
    %2275 = vmatpush1.bf16.msra.mxu0 0
    %2276 = vmatprep.subr.bf16.mxu0 0
    %2277 = vmatpush1.bf16.msra.mxu0 0
    %2278 = vmatprep.subr.bf16.mxu0 0
    %2279 = vmatpush1.bf16.msra.mxu0 0
    %2280 = vmatprep.subr.bf16.mxu0 0
    %2281 = vmatpush1.bf16.msra.mxu0 0
    %2282 = vmatprep.subr.bf16.mxu0 0
    %2283 = vmatpush1.bf16.msra.mxu0 %v1755
    %2284 = vmatprep.subr.bf16.mxu0 0
    %2285 = vmatpush2.bf16.msra.mxu0 0
    %2286 = vmatprep.subr.bf16.mxu0 0
    %2287 = vmatpush2.bf16.msra.mxu0 0
    %2288 = vmatprep.subr.bf16.mxu0 0
    %2289 = vmatpush2.bf16.msra.mxu0 0
    %2290 = vmatprep.subr.bf16.mxu0 0
    %2291 = vmatpush2.bf16.msra.mxu0 0
    %2292 = vmatprep.subr.bf16.mxu0 0
    %2293 = vmatpush2.bf16.msra.mxu0 0
    %2294 = vmatprep.subr.bf16.mxu0 0
    %2295 = vmatpush2.bf16.msra.mxu0 0
    %2296 = vmatprep.subr.bf16.mxu0 0
    %2297 = vmatpush2.bf16.msra.mxu0 0
    %2298 = vmatprep.subr.bf16.mxu0 0
    %2299 = vmatpush2.bf16.msra.mxu0 0
    %2300 = vmatprep.mubr.bf16.mxu0 0
    %2301 = vmatmul.mubr.bf16.gmra.mxu0 %v1442
    %v2302 = vpop.f32.mrf.mxu0
    %v2303 = vadd.f32 %v685, %v2302
    %v2304 = vpop.f32.mrf.mxu0
    %v2305 = vpop.f32.mrf.mxu0
    %v2306 = vadd.f32 %v688, %v2305
    %v2307 = vpop.f32.mrf.mxu0
    %2308 = vdwg.mxu0
    %v2309 = vadd.f32 %v2303, %v1691
    %v2310 = vadd.f32 %v2306, %v1691
    %v2311 = vpack.c.bf16 %v2267, %v2266
    %v2313 = vsel %vm61, %v2311, 0
    %2315 = vmatprep.subr.bf16.mxu0 0
    %2316 = vmatpush1.bf16.msra.mxu0 0
    %2317 = vmatprep.subr.bf16.mxu0 0
    %2318 = vmatpush1.bf16.msra.mxu0 0
    %2319 = vmatprep.subr.bf16.mxu0 0
    %2320 = vmatpush1.bf16.msra.mxu0 0
    %2321 = vmatprep.subr.bf16.mxu0 0
    %2322 = vmatpush1.bf16.msra.mxu0 0
    %2323 = vmatprep.subr.bf16.mxu0 0
    %2324 = vmatpush1.bf16.msra.mxu0 0
    %2325 = vmatprep.subr.bf16.mxu0 0
    %2326 = vmatpush1.bf16.msra.mxu0 0
    %2327 = vmatprep.subr.bf16.mxu0 0
    %2328 = vmatpush1.bf16.msra.mxu0 0
    %2329 = vmatprep.subr.bf16.mxu0 0
    %2330 = vmatpush1.bf16.msra.mxu0 %v1850
    %2331 = vmatprep.subr.bf16.mxu0 0
    %2332 = vmatpush2.bf16.msra.mxu0 0
    %2333 = vmatprep.subr.bf16.mxu0 0
    %2334 = vmatpush2.bf16.msra.mxu0 0
    %2335 = vmatprep.subr.bf16.mxu0 0
    %2336 = vmatpush2.bf16.msra.mxu0 0
    %2337 = vmatprep.subr.bf16.mxu0 0
    %2338 = vmatpush2.bf16.msra.mxu0 0
    %2339 = vmatprep.subr.bf16.mxu0 0
    %2340 = vmatpush2.bf16.msra.mxu0 0
    %2341 = vmatprep.subr.bf16.mxu0 0
    %2342 = vmatpush2.bf16.msra.mxu0 0
    %2343 = vmatprep.subr.bf16.mxu0 0
    %2344 = vmatpush2.bf16.msra.mxu0 0
    %2345 = vmatprep.subr.bf16.mxu0 0
    %2346 = vmatpush2.bf16.msra.mxu0 0
    %2347 = vmatprep.mubr.bf16.mxu0 0
    %2348 = vmatmul.mubr.bf16.gmra.mxu0 %v2313
    %v2349 = vpop.f32.mrf.mxu0
    %v2350 = vadd.f32 0.0, %v2349
    %v2351 = vpop.f32.mrf.mxu0
    %v2352 = vpop.f32.mrf.mxu0
    %v2353 = vadd.f32 0.0, %v2352
    %v2354 = vpop.f32.mrf.mxu0
    %2355 = vdwg.mxu0
    %v2356 = vadd.f32 %v2309, %v2350
    %v2357 = vadd.f32 %v2310, %v2353
    %v2358 = vmax.f32 %v2356, 0.0
    %v2359 = vmax.f32 %v2357, 0.0
    %2360 = vmatprep.subr.bf16.mxu0 0
    %2361 = vmatpush1.bf16.msra.mxu0 0
    %2362 = vmatprep.subr.bf16.mxu0 0
    %2363 = vmatpush1.bf16.msra.mxu0 0
    %2364 = vmatprep.subr.bf16.mxu0 0
    %2365 = vmatpush1.bf16.msra.mxu0 0
    %2366 = vmatprep.subr.bf16.mxu0 0
    %2367 = vmatpush1.bf16.msra.mxu0 0
    %2368 = vmatprep.subr.bf16.mxu0 0
    %2369 = vmatpush1.bf16.msra.mxu0 0
    %2370 = vmatprep.subr.bf16.mxu0 0
    %2371 = vmatpush1.bf16.msra.mxu0 0
    %2372 = vmatprep.subr.bf16.mxu0 0
    %2373 = vmatpush1.bf16.msra.mxu0 0
    %2374 = vmatprep.subr.bf16.mxu0 0
    %2375 = vmatpush1.bf16.msra.mxu0 %v1755
    %2376 = vmatprep.subr.bf16.mxu0 0
    %2377 = vmatpush2.bf16.msra.mxu0 0
    %2378 = vmatprep.subr.bf16.mxu0 0
    %2379 = vmatpush2.bf16.msra.mxu0 0
    %2380 = vmatprep.subr.bf16.mxu0 0
    %2381 = vmatpush2.bf16.msra.mxu0 0
    %2382 = vmatprep.subr.bf16.mxu0 0
    %2383 = vmatpush2.bf16.msra.mxu0 0
    %2384 = vmatprep.subr.bf16.mxu0 0
    %2385 = vmatpush2.bf16.msra.mxu0 0
    %2386 = vmatprep.subr.bf16.mxu0 0
    %2387 = vmatpush2.bf16.msra.mxu0 0
    %2388 = vmatprep.subr.bf16.mxu0 0
    %2389 = vmatpush2.bf16.msra.mxu0 0
    %2390 = vmatprep.subr.bf16.mxu0 0
    %2391 = vmatpush2.bf16.msra.mxu0 0
    %2392 = vmatprep.mubr.bf16.mxu0 0
    %2393 = vmatmul.mubr.bf16.gmra.mxu0 %v1645
    %v2394 = vpop.f32.mrf.mxu0
    %v2395 = vadd.f32 %v523, %v2394
    %v2396 = vpop.f32.mrf.mxu0
    %v2397 = vpop.f32.mrf.mxu0
    %v2398 = vadd.f32 %v526, %v2397
    %v2399 = vpop.f32.mrf.mxu0
    %2400 = vdwg.mxu0
    %v2401 = vadd.f32 %v2395, %v1691
    %v2402 = vadd.f32 %v2398, %v1691
    %v2403 = vpack.c.bf16 %v2359, %v2358
    %v2405 = vsel %vm61, %v2403, 0
    %2407 = vmatprep.subr.bf16.mxu0 0
    %2408 = vmatpush1.bf16.msra.mxu0 0
    %2409 = vmatprep.subr.bf16.mxu0 0
    %2410 = vmatpush1.bf16.msra.mxu0 0
    %2411 = vmatprep.subr.bf16.mxu0 0
    %2412 = vmatpush1.bf16.msra.mxu0 0
    %2413 = vmatprep.subr.bf16.mxu0 0
    %2414 = vmatpush1.bf16.msra.mxu0 0
    %2415 = vmatprep.subr.bf16.mxu0 0
    %2416 = vmatpush1.bf16.msra.mxu0 0
    %2417 = vmatprep.subr.bf16.mxu0 0
    %2418 = vmatpush1.bf16.msra.mxu0 0
    %2419 = vmatprep.subr.bf16.mxu0 0
    %2420 = vmatpush1.bf16.msra.mxu0 0
    %2421 = vmatprep.subr.bf16.mxu0 0
    %2422 = vmatpush1.bf16.msra.mxu0 %v1850
    %2423 = vmatprep.subr.bf16.mxu0 0
    %2424 = vmatpush2.bf16.msra.mxu0 0
    %2425 = vmatprep.subr.bf16.mxu0 0
    %2426 = vmatpush2.bf16.msra.mxu0 0
    %2427 = vmatprep.subr.bf16.mxu0 0
    %2428 = vmatpush2.bf16.msra.mxu0 0
    %2429 = vmatprep.subr.bf16.mxu0 0
    %2430 = vmatpush2.bf16.msra.mxu0 0
    %2431 = vmatprep.subr.bf16.mxu0 0
    %2432 = vmatpush2.bf16.msra.mxu0 0
    %2433 = vmatprep.subr.bf16.mxu0 0
    %2434 = vmatpush2.bf16.msra.mxu0 0
    %2435 = vmatprep.subr.bf16.mxu0 0
    %2436 = vmatpush2.bf16.msra.mxu0 0
    %2437 = vmatprep.subr.bf16.mxu0 0
    %2438 = vmatpush2.bf16.msra.mxu0 0
    %2439 = vmatprep.mubr.bf16.mxu0 0
    %2440 = vmatmul.mubr.bf16.gmra.mxu0 %v2405
    %v2441 = vpop.f32.mrf.mxu0
    %v2442 = vadd.f32 0.0, %v2441
    %v2443 = vpop.f32.mrf.mxu0
    %v2444 = vpop.f32.mrf.mxu0
    %v2445 = vadd.f32 0.0, %v2444
    %v2446 = vpop.f32.mrf.mxu0
    %2447 = vdwg.mxu0
    %v2448 = vadd.f32 %v2401, %v2442
    %v2449 = vadd.f32 %v2402, %v2445
    %v2450 = vmax.f32 %v2448, 0.0
    %v2451 = vmax.f32 %v2449, 0.0
    %v2452 = vpack.c.bf16 %v2451, %v2450
    %v2455 = vunpack.c.l.b16 %v32
    %v2456 = vunpack.c.l.b16 %v33
    %v2457 = vpack.c.b16 %v2456, %v2455
    %v2460 = vsel %vm61, %v2452, 0
    %2462 = vmatprep.subr.bf16.mxu0 0
    %2463 = vmatpush1.bf16.msra.mxu0 0
    %2464 = vmatprep.subr.bf16.mxu0 0
    %2465 = vmatpush1.bf16.msra.mxu0 0
    %2466 = vmatprep.subr.bf16.mxu0 0
    %2467 = vmatpush1.bf16.msra.mxu0 0
    %2468 = vmatprep.subr.bf16.mxu0 0
    %2469 = vmatpush1.bf16.msra.mxu0 0
    %2470 = vmatprep.subr.bf16.mxu0 0
    %2471 = vmatpush1.bf16.msra.mxu0 0
    %2472 = vmatprep.subr.bf16.mxu0 0
    %2473 = vmatpush1.bf16.msra.mxu0 0
    %2474 = vmatprep.subr.bf16.mxu0 0
    %2475 = vmatpush1.bf16.msra.mxu0 0
    %2476 = vmatprep.subr.bf16.mxu0 0
    %2477 = vmatpush1.bf16.msra.mxu0 %v2457
    %2478 = vmatprep.subr.bf16.mxu0 0
    %2479 = vmatpush2.bf16.msra.mxu0 0
    %2480 = vmatprep.subr.bf16.mxu0 0
    %2481 = vmatpush2.bf16.msra.mxu0 0
    %2482 = vmatprep.subr.bf16.mxu0 0
    %2483 = vmatpush2.bf16.msra.mxu0 0
    %2484 = vmatprep.subr.bf16.mxu0 0
    %2485 = vmatpush2.bf16.msra.mxu0 0
    %2486 = vmatprep.subr.bf16.mxu0 0
    %2487 = vmatpush2.bf16.msra.mxu0 0
    %2488 = vmatprep.subr.bf16.mxu0 0
    %2489 = vmatpush2.bf16.msra.mxu0 0
    %2490 = vmatprep.subr.bf16.mxu0 0
    %2491 = vmatpush2.bf16.msra.mxu0 0
    %2492 = vmatprep.subr.bf16.mxu0 0
    %2493 = vmatpush2.bf16.msra.mxu0 0
    %2494 = vmatprep.mubr.bf16.mxu0 0
    %2495 = vmatmul.mubr.bf16.gmra.mxu0 %v2460
    %v2496 = vpop.f32.mrf.mxu0
    %v2497 = vadd.f32 %v1745, %v2496
    %v2498 = vpop.f32.mrf.mxu0
    %v2499 = vpop.f32.mrf.mxu0
    %v2500 = vadd.f32 %v1748, %v2499
    %v2501 = vpop.f32.mrf.mxu0
    %2502 = vdwg.mxu0
    %v2503 = vlaneseq
    %v2504 = vshrl.u32 %v2503, 7
    %v2505 = vsub.s32 0, %v2504
    %v2506 = vrot.slane %v42, %v2505
    %v2507 = vadd.f32 %v2497, %v2506
    %v2508 = vadd.f32 %v2500, %v2506
    %v2509 = vpack.c.bf16 %v2508, %v2507
    %v2510 = vlaneseq
    %v2511 = vshrl.u32 %v2510, 7
    %v2512 = vsub.s32 0, %v2511
    %v2513 = vrot.slane %v43, %v2512
    %v2518 = vunpack.c.l.b16 %v36
    %v2519 = vunpack.c.l.b16 %v37
    %v2520 = vunpack.c.l.b16 %v38
    %v2521 = vunpack.c.l.b16 %v39
    %v2522 = vpack.c.b16 %v2519, %v2518
    %v2523 = vpack.c.b16 %v2521, %v2520
    %vm2526 = vcmask 261120
    %v2528 = vsel %vm2526, %v2509, 0
    %2530 = vmatprep.subr.bf16.mxu0 0
    %2531 = vmatpush1.bf16.msra.mxu0 0
    %2532 = vmatprep.subr.bf16.mxu0 0
    %2533 = vmatpush1.bf16.msra.mxu0 0
    %2534 = vmatprep.subr.bf16.mxu0 0
    %2535 = vmatpush1.bf16.msra.mxu0 0
    %2536 = vmatprep.subr.bf16.mxu0 0
    %2537 = vmatpush1.bf16.msra.mxu0 0
    %2538 = vmatprep.subr.bf16.mxu0 0
    %2539 = vmatpush1.bf16.msra.mxu0 0
    %2540 = vmatprep.subr.bf16.mxu0 0
    %2541 = vmatpush1.bf16.msra.mxu0 0
    %2542 = vmatprep.subr.bf16.mxu0 0
    %2543 = vmatpush1.bf16.msra.mxu0 %v2523
    %2544 = vmatprep.subr.bf16.mxu0 0
    %2545 = vmatpush1.bf16.msra.mxu0 %v2522
    %2546 = vmatprep.subr.bf16.mxu0 0
    %2547 = vmatpush2.bf16.msra.mxu0 0
    %2548 = vmatprep.subr.bf16.mxu0 0
    %2549 = vmatpush2.bf16.msra.mxu0 0
    %2550 = vmatprep.subr.bf16.mxu0 0
    %2551 = vmatpush2.bf16.msra.mxu0 0
    %2552 = vmatprep.subr.bf16.mxu0 0
    %2553 = vmatpush2.bf16.msra.mxu0 0
    %2554 = vmatprep.subr.bf16.mxu0 0
    %2555 = vmatpush2.bf16.msra.mxu0 0
    %2556 = vmatprep.subr.bf16.mxu0 0
    %2557 = vmatpush2.bf16.msra.mxu0 0
    %2558 = vmatprep.subr.bf16.mxu0 0
    %2559 = vmatpush2.bf16.msra.mxu0 0
    %2560 = vmatprep.subr.bf16.mxu0 0
    %2561 = vmatpush2.bf16.msra.mxu0 0
    %2562 = vmatprep.mubr.bf16.mxu0 0
    %2563 = vmatmul.mubr.bf16.gmra.mxu0 %v2528
    %v2564 = vpop.f32.mrf.mxu0
    %v2565 = vadd.f32 %v2513, %v2564
    %v2566 = vpop.f32.mrf.mxu0
    %v2567 = vpop.f32.mrf.mxu0
    %v2568 = vadd.f32 %v2513, %v2567
    %v2569 = vpop.f32.mrf.mxu0
    %2570 = vdwg.mxu0
    %2571 = vst.msk [vmem:[#allocation2] sm:$0xff] %vm2526, %v2565
    %2572 = vst.msk [vmem:[#allocation2 + $0x8] sm:$0xff] %vm2526, %v2568
    // Predicated region
    $region14: #{tpu_custom_call.1} parent=1 // pred_check
      _
    $region15: #{tpu_custom_call.1} parent=1 // pred_check_branch
      %2574 = sbr.rel (0) target = $region17
    $region16: #{tpu_custom_call.1} parent=1 // pred_region
      %s2576 = ssub.s32 256, 256
      %2577 = vsyncadd [#allocation3], %s2576
      %s2578 = sshll.u32 [#allocation2], 4
      %s2579 = int_to_ptr.vmem [resolvable:$true] %s2578
      %2584 = dma.vmem_to_hbm [thread:$0]  %s2579, 256, %s3, [#allocation3], 128, 128, 8
    $region17: #{tpu_custom_call.1} parent=1 // pred_fallthru
      _
    // Predicated region
    $region18: #{tpu_custom_call.1} parent=1 // pred_check
      _
    $region19: #{tpu_custom_call.1} parent=1 // pred_check_branch
      %2586 = sbr.rel (0) target = $region21
    $region20: #{tpu_custom_call.1} parent=1 // pred_region
      %2587 = dma.done [#allocation3], 256
    $region21: #{tpu_custom_call.1} parent=1 // pred_fallthru
      _
    %2588 = vsyncpa [#allocation3], 1

</llo_original>
